<compile_context>
chip_gen: v7x
topology: tpu7x:2x2x1
jax: 0.10.0
libtpu: 0.0.40
codegen_flags: <defaults>
</compile_context>

<pallas_src>
import functools

import jax
import jax.numpy as jnp
from jax.experimental import pallas as pl
from jax.experimental.pallas import tpu as pltpu


# ------------------------------ Pallas kernel ------------------------------

def _ecnn_kernel(p1_ref, w1_ref, b1_ref, w2_ref, b2_ref, w3_ref, b3_ref,
                 f1_ref, bf1_ref, f2_ref, bf2_ref, out_ref, *,
                 n_tap, n_w2, n_h, n_b, m2):
    """Whole ECNN forward on VMEM-resident operands.

    p1  : (n_tap*m2, C0*K1)  conv1 im2col patches evaluated on conv2's tap grid;
                             row order (kw2, ow2, h, b), cols (c0, kw1); m2=n_w2*n_h*n_b
    w1  : (C0*K1, P)   conv1 weight          b1 : (1, P)
    w2  : (n_tap, P, 2P)  conv2 weight / tap  b2 : (1, 2P)
    w3  : (n_w2, 2P, 6P)  conv3 weight / col  b3 : (1, 6P)
    f1  : (n_h, 6P, 4P)   fc1 blocks per h (NCHW flatten folded in)  bf1 : (1, 4P)
    f2  : (4P, NC)        fc2 weight          bf2 : (1, NC)
    out : (n_b, NC)
    """
    hb = n_h * n_b
    w1 = w1_ref[...]
    b1 = b1_ref[...]

    # conv1(+bias+ReLU) fused with the conv2 accumulation over its taps kw2.
    acc2 = None
    for k in range(n_tap):
        pk = p1_ref[pl.ds(k * m2, m2), :]                            # (m2, C0*K1)
        y1k = jnp.maximum(
            jnp.dot(pk, w1, preferred_element_type=jnp.float32) + b1, 0.0)
        part = jnp.dot(y1k, w2_ref[k], preferred_element_type=jnp.float32)
        acc2 = part if acc2 is None else acc2 + part
    h2 = jnp.maximum(acc2 + b2_ref[...], 0.0)                        # (m2, 2P), rows (ow2,h,b)

    # conv3: its kernel spans the full remaining width -> accumulate over ow2 slabs.
    acc3 = None
    for w in range(n_w2):
        part = jnp.dot(h2[w * hb:(w + 1) * hb, :], w3_ref[w],
                       preferred_element_type=jnp.float32)
        acc3 = part if acc3 is None else acc3 + part
    h3 = jnp.maximum(acc3 + b3_ref[...], 0.0)                        # (hb, 6P), rows (h,b)

    # fc1 (flatten folded into per-h weight blocks) then fc2.
    # No ReLU between fc1 and fc2, matching the reference module.
    accf = None
    for h in range(n_h):
        part = jnp.dot(h3[h * n_b:(h + 1) * n_b, :], f1_ref[h],
                       preferred_element_type=jnp.float32)
        accf = part if accf is None else accf + part
    z1 = accf + bf1_ref[...]                                         # (n_b, 4P)
    out_ref[...] = (jnp.dot(z1, f2_ref[...],
                            preferred_element_type=jnp.float32) + bf2_ref[...])


# ------------------------------ forward wrapper ------------------------------

def ecnn_forward(params, x, *, kernel_size):
    """ECNN forward. x: (B, 3, H, W) NCHW float32 -> (B, num_classes)."""
    B, C0, H, W = x.shape
    K1 = K2 = kernel_size
    P = params["conv1_w"].shape[0]                  # planes
    OC2 = params["conv2_w"].shape[0]                # 2*planes
    OC3 = params["conv3_w"].shape[0]                # 6*planes
    NH = params["fc1_w"].shape[0]                   # 4*planes
    NC = params["fc2_w"].shape[0]                   # num_classes
    W1 = (W - K1) // 2 + 1                          # conv1 output width
    W2 = (W1 - K2) // 2 + 1                         # conv2 output width (= conv3 kernel)
    M2 = W2 * H * B

    # Composed im2col for conv1 evaluated directly at conv2's taps:
    # width index = (s1*s2)*ow2 + s1*kw2 + kw1 with s1 = s2 = 2.
    # TODO(synk): this input-side gather stays in XLA; an in-kernel strided-DMA
    # gather is possible but not worth the lowering risk at this (~12 KB) size.
    ow2 = jnp.arange(W2)
    kw2 = jnp.arange(K2)
    kw1 = jnp.arange(K1)
    widx = 4 * ow2[None, :, None] + 2 * kw2[:, None, None] + kw1[None, None, :]
    g = x[:, :, :, widx]                                             # (B,C0,H,K2,W2,K1)
    p1 = jnp.transpose(g, (3, 4, 2, 0, 1, 5)).reshape(K2 * M2, C0 * K1)

    # Host-side weight relayouts (tiny, one XLA op each, PyTorch layouts in).
    w1m = params["conv1_w"].reshape(P, C0 * K1).T                    # (C0*K1, P)
    b1v = params["conv1_b"].reshape(1, P)
    w2r = jnp.transpose(params["conv2_w"][:, :, 0, :], (2, 1, 0))    # (K2, P, OC2)
    b2v = params["conv2_b"].reshape(1, OC2)
    w3r = jnp.transpose(params["conv3_w"][:, :, 0, :], (2, 1, 0))    # (W2, OC2, OC3)
    b3v = params["conv3_b"].reshape(1, OC3)
    f1r = jnp.transpose(params["fc1_w"].reshape(NH, OC3, H), (2, 1, 0))  # (H, OC3, NH)
    bf1 = params["fc1_b"].reshape(1, NH)
    f2m = params["fc2_w"].T                                          # (NH, NC)
    bf2 = params["fc2_b"].reshape(1, NC)

    kern = functools.partial(_ecnn_kernel, n_tap=K2, n_w2=W2, n_h=H, n_b=B, m2=M2)
    vmem = pl.BlockSpec(memory_space=pltpu.MemorySpace.VMEM)
    return pl.pallas_call(
        kern,
        out_shape=jax.ShapeDtypeStruct((B, NC), jnp.float32),
        in_specs=[vmem] * 11,
        out_specs=vmem,
    )(p1, w1m, b1v, w2r, b2v, w3r, b3v, f1r, bf1, f2m, bf2)


# ------------------------------ pure-JAX reference ------------------------------

def _conv_relu(x, w, b, stride_w):
    y = jax.lax.conv_general_dilated(
        x, w, window_strides=(1, stride_w), padding="VALID",
        dimension_numbers=("NCHW", "OIHW", "NCHW"),
        precision=jax.lax.Precision.HIGHEST)
    return jax.nn.relu(y + b[None, :, None, None])


def ecnn_reference(params, x):
    y = _conv_relu(x, params["conv1_w"], params["conv1_b"], 2)
    y = _conv_relu(y, params["conv2_w"], params["conv2_b"], 2)
    y = _conv_relu(y, params["conv3_w"], params["conv3_b"], 1)
    flat = y.reshape(y.shape[0], -1)                                 # NCHW flatten
    z = jnp.dot(flat, params["fc1_w"].T,
                precision=jax.lax.Precision.HIGHEST) + params["fc1_b"]
    return jnp.dot(z, params["fc2_w"].T,
                   precision=jax.lax.Precision.HIGHEST) + params["fc2_b"]


# ------------------------------ parameters ------------------------------

def init_params(key, num_classes, input_width, input_height, kernel_size, planes):
    """Parameters in the PyTorch module's native layouts."""
    p = planes
    w1_out = (input_width - kernel_size) // 2 + 1
    w2_out = (w1_out - kernel_size) // 2 + 1        # == module's self.temp (conv3 kernel)
    keys = jax.random.split(key, 10)

    def w(k, shape, scale=0.05):
        return (scale * jax.random.normal(k, shape)).astype(jnp.float32)

    return {
        "conv1_w": w(keys[0], (p, 3, 1, kernel_size)),
        "conv1_b": w(keys[1], (p,)),
        "conv2_w": w(keys[2], (2 * p, p, 1, kernel_size)),
        "conv2_b": w(keys[3], (2 * p,)),
        "conv3_w": w(keys[4], (6 * p, 2 * p, 1, w2_out)),
        "conv3_b": w(keys[5], (6 * p,)),
        "fc1_w": w(keys[6], (4 * p, 6 * p * input_height)),
        "fc1_b": w(keys[7], (4 * p,)),
        "fc2_w": w(keys[8], (num_classes, 4 * p)),
        "fc2_b": w(keys[9], (num_classes,)),
    }


if __name__ == "__main__":
    num_classes = 5
    input_width = 64
    input_height = 8
    kernel_size = 4
    planes = 4
    batch = 2
    # `dilations` is accepted by the PyTorch constructor but never used in its
    # forward pass, so it is ignored here.

    key = jax.random.PRNGKey(0)
    kx, kp = jax.random.split(key)
    x = jax.random.normal(kx, (batch, 3, input_height, input_width), dtype=jnp.float32)
    params = init_params(kp, num_classes, input_width, input_height,
                         kernel_size, planes)

    fwd = jax.jit(functools.partial(ecnn_forward, kernel_size=kernel_size))
    out = fwd(params, x)
    jax.block_until_ready(out)
    assert out.shape == (batch, num_classes), out.shape

    ref = jax.jit(ecnn_reference)(params, x)
    jax.block_until_ready(ref)
    max_err = float(jnp.max(jnp.abs(out - ref)))
    assert jnp.allclose(out, ref, rtol=2e-2, atol=2e-4), f"max abs err {max_err}"

    print("KERNEL_OK")
</pallas_src>

<mosaic_0001>
module attributes {stable_mosaic.version = 11 : i64} {
  func.func @_ecnn_kernel(%arg0: memref<896x12xf32, #tpu.memory_space<vmem>>, %arg1: memref<12x4xf32, #tpu.memory_space<vmem>>, %arg2: memref<1x4xf32, #tpu.memory_space<vmem>>, %arg3: memref<4x4x8xf32, #tpu.memory_space<vmem>>, %arg4: memref<1x8xf32, #tpu.memory_space<vmem>>, %arg5: memref<14x8x24xf32, #tpu.memory_space<vmem>>, %arg6: memref<1x24xf32, #tpu.memory_space<vmem>>, %arg7: memref<8x24x16xf32, #tpu.memory_space<vmem>>, %arg8: memref<1x16xf32, #tpu.memory_space<vmem>>, %arg9: memref<16x5xf32, #tpu.memory_space<vmem>>, %arg10: memref<1x5xf32, #tpu.memory_space<vmem>>, %arg11: memref<2x5xf32, #tpu.memory_space<vmem>>) attributes {dimension_semantics = [], scalar_prefetch = 0 : i64, scratch_operands = 0 : i64, tpu.core_type = #tpu.core_type<tc>} {
    %c0 = arith.constant 0 : index
    %c0_0 = arith.constant 0 : index
    %0 = vector.load %arg1[%c0, %c0_0] : memref<12x4xf32, #tpu.memory_space<vmem>>, vector<12x4xf32>
    %c0_1 = arith.constant 0 : index
    %c0_2 = arith.constant 0 : index
    %1 = vector.load %arg2[%c0_1, %c0_2] : memref<1x4xf32, #tpu.memory_space<vmem>>, vector<1x4xf32>
    %c0_3 = arith.constant 0 : index
    %c0_4 = arith.constant 0 : index
    %2 = vector.load %arg0[%c0_3, %c0_4] : memref<896x12xf32, #tpu.memory_space<vmem>>, vector<224x12xf32>
    %cst = arith.constant dense<0.000000e+00> : vector<224x4xf32>
    %3 = tpu.matmul %2, %0, %cst {dimension_numbers = #tpu.dot_dimension_numbers<[1], [0], [0], [1], [0, 0, 1, 1], [], []>} : vector<224x12xf32>, vector<12x4xf32>, vector<224x4xf32> -> vector<224x4xf32>
    %4 = vector.broadcast %1 : vector<1x4xf32> to vector<224x4xf32>
    %5 = arith.addf %3, %4 : vector<224x4xf32>
    %cst_5 = arith.constant 0.000000e+00 : f32
    %6 = vector.broadcast %cst_5 : f32 to vector<224x4xf32>
    %7 = arith.maximumf %5, %6 : vector<224x4xf32>
    %c0_6 = arith.constant 0 : index
    %c0_7 = arith.constant 0 : index
    %c0_8 = arith.constant 0 : index
    %8 = vector.load %arg3[%c0_6, %c0_7, %c0_8] : memref<4x4x8xf32, #tpu.memory_space<vmem>>, vector<1x4x8xf32>
    %9 = vector.shape_cast %8 : vector<1x4x8xf32> to vector<4x8xf32>
    %cst_9 = arith.constant dense<0.000000e+00> : vector<224x8xf32>
    %10 = tpu.matmul %7, %9, %cst_9 {dimension_numbers = #tpu.dot_dimension_numbers<[1], [0], [0], [1], [0, 0, 1, 1], [], []>} : vector<224x4xf32>, vector<4x8xf32>, vector<224x8xf32> -> vector<224x8xf32>
    %c224 = arith.constant 224 : index
    %c0_10 = arith.constant 0 : index
    %11 = vector.load %arg0[%c224, %c0_10] : memref<896x12xf32, #tpu.memory_space<vmem>>, vector<224x12xf32>
    %cst_11 = arith.constant dense<0.000000e+00> : vector<224x4xf32>
    %12 = tpu.matmul %11, %0, %cst_11 {dimension_numbers = #tpu.dot_dimension_numbers<[1], [0], [0], [1], [0, 0, 1, 1], [], []>} : vector<224x12xf32>, vector<12x4xf32>, vector<224x4xf32> -> vector<224x4xf32>
    %13 = vector.broadcast %1 : vector<1x4xf32> to vector<224x4xf32>
    %14 = arith.addf %12, %13 : vector<224x4xf32>
    %cst_12 = arith.constant 0.000000e+00 : f32
    %15 = vector.broadcast %cst_12 : f32 to vector<224x4xf32>
    %16 = arith.maximumf %14, %15 : vector<224x4xf32>
    %c1 = arith.constant 1 : index
    %c0_13 = arith.constant 0 : index
    %c0_14 = arith.constant 0 : index
    %17 = vector.load %arg3[%c1, %c0_13, %c0_14] : memref<4x4x8xf32, #tpu.memory_space<vmem>>, vector<1x4x8xf32>
    %18 = vector.shape_cast %17 : vector<1x4x8xf32> to vector<4x8xf32>
    %cst_15 = arith.constant dense<0.000000e+00> : vector<224x8xf32>
    %19 = tpu.matmul %16, %18, %cst_15 {dimension_numbers = #tpu.dot_dimension_numbers<[1], [0], [0], [1], [0, 0, 1, 1], [], []>} : vector<224x4xf32>, vector<4x8xf32>, vector<224x8xf32> -> vector<224x8xf32>
    %20 = arith.addf %10, %19 : vector<224x8xf32>
    %c448 = arith.constant 448 : index
    %c0_16 = arith.constant 0 : index
    %21 = vector.load %arg0[%c448, %c0_16] : memref<896x12xf32, #tpu.memory_space<vmem>>, vector<224x12xf32>
    %cst_17 = arith.constant dense<0.000000e+00> : vector<224x4xf32>
    %22 = tpu.matmul %21, %0, %cst_17 {dimension_numbers = #tpu.dot_dimension_numbers<[1], [0], [0], [1], [0, 0, 1, 1], [], []>} : vector<224x12xf32>, vector<12x4xf32>, vector<224x4xf32> -> vector<224x4xf32>
    %23 = vector.broadcast %1 : vector<1x4xf32> to vector<224x4xf32>
    %24 = arith.addf %22, %23 : vector<224x4xf32>
    %cst_18 = arith.constant 0.000000e+00 : f32
    %25 = vector.broadcast %cst_18 : f32 to vector<224x4xf32>
    %26 = arith.maximumf %24, %25 : vector<224x4xf32>
    %c2 = arith.constant 2 : index
    %c0_19 = arith.constant 0 : index
    %c0_20 = arith.constant 0 : index
    %27 = vector.load %arg3[%c2, %c0_19, %c0_20] : memref<4x4x8xf32, #tpu.memory_space<vmem>>, vector<1x4x8xf32>
    %28 = vector.shape_cast %27 : vector<1x4x8xf32> to vector<4x8xf32>
    %cst_21 = arith.constant dense<0.000000e+00> : vector<224x8xf32>
    %29 = tpu.matmul %26, %28, %cst_21 {dimension_numbers = #tpu.dot_dimension_numbers<[1], [0], [0], [1], [0, 0, 1, 1], [], []>} : vector<224x4xf32>, vector<4x8xf32>, vector<224x8xf32> -> vector<224x8xf32>
    %30 = arith.addf %20, %29 : vector<224x8xf32>
    %c672 = arith.constant 672 : index
    %c0_22 = arith.constant 0 : index
    %31 = vector.load %arg0[%c672, %c0_22] : memref<896x12xf32, #tpu.memory_space<vmem>>, vector<224x12xf32>
    %cst_23 = arith.constant dense<0.000000e+00> : vector<224x4xf32>
    %32 = tpu.matmul %31, %0, %cst_23 {dimension_numbers = #tpu.dot_dimension_numbers<[1], [0], [0], [1], [0, 0, 1, 1], [], []>} : vector<224x12xf32>, vector<12x4xf32>, vector<224x4xf32> -> vector<224x4xf32>
    %33 = vector.broadcast %1 : vector<1x4xf32> to vector<224x4xf32>
    %34 = arith.addf %32, %33 : vector<224x4xf32>
    %cst_24 = arith.constant 0.000000e+00 : f32
    %35 = vector.broadcast %cst_24 : f32 to vector<224x4xf32>
    %36 = arith.maximumf %34, %35 : vector<224x4xf32>
    %c3 = arith.constant 3 : index
    %c0_25 = arith.constant 0 : index
    %c0_26 = arith.constant 0 : index
    %37 = vector.load %arg3[%c3, %c0_25, %c0_26] : memref<4x4x8xf32, #tpu.memory_space<vmem>>, vector<1x4x8xf32>
    %38 = vector.shape_cast %37 : vector<1x4x8xf32> to vector<4x8xf32>
    %cst_27 = arith.constant dense<0.000000e+00> : vector<224x8xf32>
    %39 = tpu.matmul %36, %38, %cst_27 {dimension_numbers = #tpu.dot_dimension_numbers<[1], [0], [0], [1], [0, 0, 1, 1], [], []>} : vector<224x4xf32>, vector<4x8xf32>, vector<224x8xf32> -> vector<224x8xf32>
    %40 = arith.addf %30, %39 : vector<224x8xf32>
    %c0_28 = arith.constant 0 : index
    %c0_29 = arith.constant 0 : index
    %41 = vector.load %arg4[%c0_28, %c0_29] : memref<1x8xf32, #tpu.memory_space<vmem>>, vector<1x8xf32>
    %42 = vector.broadcast %41 : vector<1x8xf32> to vector<224x8xf32>
    %43 = arith.addf %40, %42 : vector<224x8xf32>
    %cst_30 = arith.constant 0.000000e+00 : f32
    %44 = vector.broadcast %cst_30 : f32 to vector<224x8xf32>
    %45 = arith.maximumf %43, %44 : vector<224x8xf32>
    %46 = vector.extract_strided_slice %45 {offsets = [0, 0], sizes = [16, 8], strides = [1, 1]} : vector<224x8xf32> to vector<16x8xf32>
    %c0_31 = arith.constant 0 : index
    %c0_32 = arith.constant 0 : index
    %c0_33 = arith.constant 0 : index
    %47 = vector.load %arg5[%c0_31, %c0_32, %c0_33] : memref<14x8x24xf32, #tpu.memory_space<vmem>>, vector<1x8x24xf32>
    %48 = vector.shape_cast %47 : vector<1x8x24xf32> to vector<8x24xf32>
    %cst_34 = arith.constant dense<0.000000e+00> : vector<16x24xf32>
    %49 = tpu.matmul %46, %48, %cst_34 {dimension_numbers = #tpu.dot_dimension_numbers<[1], [0], [0], [1], [0, 0, 1, 1], [], []>} : vector<16x8xf32>, vector<8x24xf32>, vector<16x24xf32> -> vector<16x24xf32>
    %50 = vector.extract_strided_slice %45 {offsets = [16, 0], sizes = [16, 8], strides = [1, 1]} : vector<224x8xf32> to vector<16x8xf32>
    %c1_35 = arith.constant 1 : index
    %c0_36 = arith.constant 0 : index
    %c0_37 = arith.constant 0 : index
    %51 = vector.load %arg5[%c1_35, %c0_36, %c0_37] : memref<14x8x24xf32, #tpu.memory_space<vmem>>, vector<1x8x24xf32>
    %52 = vector.shape_cast %51 : vector<1x8x24xf32> to vector<8x24xf32>
    %cst_38 = arith.constant dense<0.000000e+00> : vector<16x24xf32>
    %53 = tpu.matmul %50, %52, %cst_38 {dimension_numbers = #tpu.dot_dimension_numbers<[1], [0], [0], [1], [0, 0, 1, 1], [], []>} : vector<16x8xf32>, vector<8x24xf32>, vector<16x24xf32> -> vector<16x24xf32>
    %54 = arith.addf %49, %53 : vector<16x24xf32>
    %55 = vector.extract_strided_slice %45 {offsets = [32, 0], sizes = [16, 8], strides = [1, 1]} : vector<224x8xf32> to vector<16x8xf32>
    %c2_39 = arith.constant 2 : index
    %c0_40 = arith.constant 0 : index
    %c0_41 = arith.constant 0 : index
    %56 = vector.load %arg5[%c2_39, %c0_40, %c0_41] : memref<14x8x24xf32, #tpu.memory_space<vmem>>, vector<1x8x24xf32>
    %57 = vector.shape_cast %56 : vector<1x8x24xf32> to vector<8x24xf32>
    %cst_42 = arith.constant dense<0.000000e+00> : vector<16x24xf32>
    %58 = tpu.matmul %55, %57, %cst_42 {dimension_numbers = #tpu.dot_dimension_numbers<[1], [0], [0], [1], [0, 0, 1, 1], [], []>} : vector<16x8xf32>, vector<8x24xf32>, vector<16x24xf32> -> vector<16x24xf32>
    %59 = arith.addf %54, %58 : vector<16x24xf32>
    %60 = vector.extract_strided_slice %45 {offsets = [48, 0], sizes = [16, 8], strides = [1, 1]} : vector<224x8xf32> to vector<16x8xf32>
    %c3_43 = arith.constant 3 : index
    %c0_44 = arith.constant 0 : index
    %c0_45 = arith.constant 0 : index
    %61 = vector.load %arg5[%c3_43, %c0_44, %c0_45] : memref<14x8x24xf32, #tpu.memory_space<vmem>>, vector<1x8x24xf32>
    %62 = vector.shape_cast %61 : vector<1x8x24xf32> to vector<8x24xf32>
    %cst_46 = arith.constant dense<0.000000e+00> : vector<16x24xf32>
    %63 = tpu.matmul %60, %62, %cst_46 {dimension_numbers = #tpu.dot_dimension_numbers<[1], [0], [0], [1], [0, 0, 1, 1], [], []>} : vector<16x8xf32>, vector<8x24xf32>, vector<16x24xf32> -> vector<16x24xf32>
    %64 = arith.addf %59, %63 : vector<16x24xf32>
    %65 = vector.extract_strided_slice %45 {offsets = [64, 0], sizes = [16, 8], strides = [1, 1]} : vector<224x8xf32> to vector<16x8xf32>
    %c4 = arith.constant 4 : index
    %c0_47 = arith.constant 0 : index
    %c0_48 = arith.constant 0 : index
    %66 = vector.load %arg5[%c4, %c0_47, %c0_48] : memref<14x8x24xf32, #tpu.memory_space<vmem>>, vector<1x8x24xf32>
    %67 = vector.shape_cast %66 : vector<1x8x24xf32> to vector<8x24xf32>
    %cst_49 = arith.constant dense<0.000000e+00> : vector<16x24xf32>
    %68 = tpu.matmul %65, %67, %cst_49 {dimension_numbers = #tpu.dot_dimension_numbers<[1], [0], [0], [1], [0, 0, 1, 1], [], []>} : vector<16x8xf32>, vector<8x24xf32>, vector<16x24xf32> -> vector<16x24xf32>
    %69 = arith.addf %64, %68 : vector<16x24xf32>
    %70 = vector.extract_strided_slice %45 {offsets = [80, 0], sizes = [16, 8], strides = [1, 1]} : vector<224x8xf32> to vector<16x8xf32>
    %c5 = arith.constant 5 : index
    %c0_50 = arith.constant 0 : index
    %c0_51 = arith.constant 0 : index
    %71 = vector.load %arg5[%c5, %c0_50, %c0_51] : memref<14x8x24xf32, #tpu.memory_space<vmem>>, vector<1x8x24xf32>
    %72 = vector.shape_cast %71 : vector<1x8x24xf32> to vector<8x24xf32>
    %cst_52 = arith.constant dense<0.000000e+00> : vector<16x24xf32>
    %73 = tpu.matmul %70, %72, %cst_52 {dimension_numbers = #tpu.dot_dimension_numbers<[1], [0], [0], [1], [0, 0, 1, 1], [], []>} : vector<16x8xf32>, vector<8x24xf32>, vector<16x24xf32> -> vector<16x24xf32>
    %74 = arith.addf %69, %73 : vector<16x24xf32>
    %75 = vector.extract_strided_slice %45 {offsets = [96, 0], sizes = [16, 8], strides = [1, 1]} : vector<224x8xf32> to vector<16x8xf32>
    %c6 = arith.constant 6 : index
    %c0_53 = arith.constant 0 : index
    %c0_54 = arith.constant 0 : index
    %76 = vector.load %arg5[%c6, %c0_53, %c0_54] : memref<14x8x24xf32, #tpu.memory_space<vmem>>, vector<1x8x24xf32>
    %77 = vector.shape_cast %76 : vector<1x8x24xf32> to vector<8x24xf32>
    %cst_55 = arith.constant dense<0.000000e+00> : vector<16x24xf32>
    %78 = tpu.matmul %75, %77, %cst_55 {dimension_numbers = #tpu.dot_dimension_numbers<[1], [0], [0], [1], [0, 0, 1, 1], [], []>} : vector<16x8xf32>, vector<8x24xf32>, vector<16x24xf32> -> vector<16x24xf32>
    %79 = arith.addf %74, %78 : vector<16x24xf32>
    %80 = vector.extract_strided_slice %45 {offsets = [112, 0], sizes = [16, 8], strides = [1, 1]} : vector<224x8xf32> to vector<16x8xf32>
    %c7 = arith.constant 7 : index
    %c0_56 = arith.constant 0 : index
    %c0_57 = arith.constant 0 : index
    %81 = vector.load %arg5[%c7, %c0_56, %c0_57] : memref<14x8x24xf32, #tpu.memory_space<vmem>>, vector<1x8x24xf32>
    %82 = vector.shape_cast %81 : vector<1x8x24xf32> to vector<8x24xf32>
    %cst_58 = arith.constant dense<0.000000e+00> : vector<16x24xf32>
    %83 = tpu.matmul %80, %82, %cst_58 {dimension_numbers = #tpu.dot_dimension_numbers<[1], [0], [0], [1], [0, 0, 1, 1], [], []>} : vector<16x8xf32>, vector<8x24xf32>, vector<16x24xf32> -> vector<16x24xf32>
    %84 = arith.addf %79, %83 : vector<16x24xf32>
    %85 = vector.extract_strided_slice %45 {offsets = [128, 0], sizes = [16, 8], strides = [1, 1]} : vector<224x8xf32> to vector<16x8xf32>
    %c8 = arith.constant 8 : index
    %c0_59 = arith.constant 0 : index
    %c0_60 = arith.constant 0 : index
    %86 = vector.load %arg5[%c8, %c0_59, %c0_60] : memref<14x8x24xf32, #tpu.memory_space<vmem>>, vector<1x8x24xf32>
    %87 = vector.shape_cast %86 : vector<1x8x24xf32> to vector<8x24xf32>
    %cst_61 = arith.constant dense<0.000000e+00> : vector<16x24xf32>
    %88 = tpu.matmul %85, %87, %cst_61 {dimension_numbers = #tpu.dot_dimension_numbers<[1], [0], [0], [1], [0, 0, 1, 1], [], []>} : vector<16x8xf32>, vector<8x24xf32>, vector<16x24xf32> -> vector<16x24xf32>
    %89 = arith.addf %84, %88 : vector<16x24xf32>
    %90 = vector.extract_strided_slice %45 {offsets = [144, 0], sizes = [16, 8], strides = [1, 1]} : vector<224x8xf32> to vector<16x8xf32>
    %c9 = arith.constant 9 : index
    %c0_62 = arith.constant 0 : index
    %c0_63 = arith.constant 0 : index
    %91 = vector.load %arg5[%c9, %c0_62, %c0_63] : memref<14x8x24xf32, #tpu.memory_space<vmem>>, vector<1x8x24xf32>
    %92 = vector.shape_cast %91 : vector<1x8x24xf32> to vector<8x24xf32>
    %cst_64 = arith.constant dense<0.000000e+00> : vector<16x24xf32>
    %93 = tpu.matmul %90, %92, %cst_64 {dimension_numbers = #tpu.dot_dimension_numbers<[1], [0], [0], [1], [0, 0, 1, 1], [], []>} : vector<16x8xf32>, vector<8x24xf32>, vector<16x24xf32> -> vector<16x24xf32>
    %94 = arith.addf %89, %93 : vector<16x24xf32>
    %95 = vector.extract_strided_slice %45 {offsets = [160, 0], sizes = [16, 8], strides = [1, 1]} : vector<224x8xf32> to vector<16x8xf32>
    %c10 = arith.constant 10 : index
    %c0_65 = arith.constant 0 : index
    %c0_66 = arith.constant 0 : index
    %96 = vector.load %arg5[%c10, %c0_65, %c0_66] : memref<14x8x24xf32, #tpu.memory_space<vmem>>, vector<1x8x24xf32>
    %97 = vector.shape_cast %96 : vector<1x8x24xf32> to vector<8x24xf32>
    %cst_67 = arith.constant dense<0.000000e+00> : vector<16x24xf32>
    %98 = tpu.matmul %95, %97, %cst_67 {dimension_numbers = #tpu.dot_dimension_numbers<[1], [0], [0], [1], [0, 0, 1, 1], [], []>} : vector<16x8xf32>, vector<8x24xf32>, vector<16x24xf32> -> vector<16x24xf32>
    %99 = arith.addf %94, %98 : vector<16x24xf32>
    %100 = vector.extract_strided_slice %45 {offsets = [176, 0], sizes = [16, 8], strides = [1, 1]} : vector<224x8xf32> to vector<16x8xf32>
    %c11 = arith.constant 11 : index
    %c0_68 = arith.constant 0 : index
    %c0_69 = arith.constant 0 : index
    %101 = vector.load %arg5[%c11, %c0_68, %c0_69] : memref<14x8x24xf32, #tpu.memory_space<vmem>>, vector<1x8x24xf32>
    %102 = vector.shape_cast %101 : vector<1x8x24xf32> to vector<8x24xf32>
    %cst_70 = arith.constant dense<0.000000e+00> : vector<16x24xf32>
    %103 = tpu.matmul %100, %102, %cst_70 {dimension_numbers = #tpu.dot_dimension_numbers<[1], [0], [0], [1], [0, 0, 1, 1], [], []>} : vector<16x8xf32>, vector<8x24xf32>, vector<16x24xf32> -> vector<16x24xf32>
    %104 = arith.addf %99, %103 : vector<16x24xf32>
    %105 = vector.extract_strided_slice %45 {offsets = [192, 0], sizes = [16, 8], strides = [1, 1]} : vector<224x8xf32> to vector<16x8xf32>
    %c12 = arith.constant 12 : index
    %c0_71 = arith.constant 0 : index
    %c0_72 = arith.constant 0 : index
    %106 = vector.load %arg5[%c12, %c0_71, %c0_72] : memref<14x8x24xf32, #tpu.memory_space<vmem>>, vector<1x8x24xf32>
    %107 = vector.shape_cast %106 : vector<1x8x24xf32> to vector<8x24xf32>
    %cst_73 = arith.constant dense<0.000000e+00> : vector<16x24xf32>
    %108 = tpu.matmul %105, %107, %cst_73 {dimension_numbers = #tpu.dot_dimension_numbers<[1], [0], [0], [1], [0, 0, 1, 1], [], []>} : vector<16x8xf32>, vector<8x24xf32>, vector<16x24xf32> -> vector<16x24xf32>
    %109 = arith.addf %104, %108 : vector<16x24xf32>
    %110 = vector.extract_strided_slice %45 {offsets = [208, 0], sizes = [16, 8], strides = [1, 1]} : vector<224x8xf32> to vector<16x8xf32>
    %c13 = arith.constant 13 : index
    %c0_74 = arith.constant 0 : index
    %c0_75 = arith.constant 0 : index
    %111 = vector.load %arg5[%c13, %c0_74, %c0_75] : memref<14x8x24xf32, #tpu.memory_space<vmem>>, vector<1x8x24xf32>
    %112 = vector.shape_cast %111 : vector<1x8x24xf32> to vector<8x24xf32>
    %cst_76 = arith.constant dense<0.000000e+00> : vector<16x24xf32>
    %113 = tpu.matmul %110, %112, %cst_76 {dimension_numbers = #tpu.dot_dimension_numbers<[1], [0], [0], [1], [0, 0, 1, 1], [], []>} : vector<16x8xf32>, vector<8x24xf32>, vector<16x24xf32> -> vector<16x24xf32>
    %114 = arith.addf %109, %113 : vector<16x24xf32>
    %c0_77 = arith.constant 0 : index
    %c0_78 = arith.constant 0 : index
    %115 = vector.load %arg6[%c0_77, %c0_78] : memref<1x24xf32, #tpu.memory_space<vmem>>, vector<1x24xf32>
    %116 = vector.broadcast %115 : vector<1x24xf32> to vector<16x24xf32>
    %117 = arith.addf %114, %116 : vector<16x24xf32>
    %cst_79 = arith.constant 0.000000e+00 : f32
    %118 = vector.broadcast %cst_79 : f32 to vector<16x24xf32>
    %119 = arith.maximumf %117, %118 : vector<16x24xf32>
    %120 = vector.extract_strided_slice %119 {offsets = [0, 0], sizes = [2, 24], strides = [1, 1]} : vector<16x24xf32> to vector<2x24xf32>
    %c0_80 = arith.constant 0 : index
    %c0_81 = arith.constant 0 : index
    %c0_82 = arith.constant 0 : index
    %121 = vector.load %arg7[%c0_80, %c0_81, %c0_82] : memref<8x24x16xf32, #tpu.memory_space<vmem>>, vector<1x24x16xf32>
    %122 = vector.shape_cast %121 : vector<1x24x16xf32> to vector<24x16xf32>
    %cst_83 = arith.constant dense<0.000000e+00> : vector<2x16xf32>
    %123 = tpu.matmul %120, %122, %cst_83 {dimension_numbers = #tpu.dot_dimension_numbers<[1], [0], [0], [1], [0, 0, 1, 1], [], []>} : vector<2x24xf32>, vector<24x16xf32>, vector<2x16xf32> -> vector<2x16xf32>
    %124 = vector.extract_strided_slice %119 {offsets = [2, 0], sizes = [2, 24], strides = [1, 1]} : vector<16x24xf32> to vector<2x24xf32>
    %c1_84 = arith.constant 1 : index
    %c0_85 = arith.constant 0 : index
    %c0_86 = arith.constant 0 : index
    %125 = vector.load %arg7[%c1_84, %c0_85, %c0_86] : memref<8x24x16xf32, #tpu.memory_space<vmem>>, vector<1x24x16xf32>
    %126 = vector.shape_cast %125 : vector<1x24x16xf32> to vector<24x16xf32>
    %cst_87 = arith.constant dense<0.000000e+00> : vector<2x16xf32>
    %127 = tpu.matmul %124, %126, %cst_87 {dimension_numbers = #tpu.dot_dimension_numbers<[1], [0], [0], [1], [0, 0, 1, 1], [], []>} : vector<2x24xf32>, vector<24x16xf32>, vector<2x16xf32> -> vector<2x16xf32>
    %128 = arith.addf %123, %127 : vector<2x16xf32>
    %129 = vector.extract_strided_slice %119 {offsets = [4, 0], sizes = [2, 24], strides = [1, 1]} : vector<16x24xf32> to vector<2x24xf32>
    %c2_88 = arith.constant 2 : index
    %c0_89 = arith.constant 0 : index
    %c0_90 = arith.constant 0 : index
    %130 = vector.load %arg7[%c2_88, %c0_89, %c0_90] : memref<8x24x16xf32, #tpu.memory_space<vmem>>, vector<1x24x16xf32>
    %131 = vector.shape_cast %130 : vector<1x24x16xf32> to vector<24x16xf32>
    %cst_91 = arith.constant dense<0.000000e+00> : vector<2x16xf32>
    %132 = tpu.matmul %129, %131, %cst_91 {dimension_numbers = #tpu.dot_dimension_numbers<[1], [0], [0], [1], [0, 0, 1, 1], [], []>} : vector<2x24xf32>, vector<24x16xf32>, vector<2x16xf32> -> vector<2x16xf32>
    %133 = arith.addf %128, %132 : vector<2x16xf32>
    %134 = vector.extract_strided_slice %119 {offsets = [6, 0], sizes = [2, 24], strides = [1, 1]} : vector<16x24xf32> to vector<2x24xf32>
    %c3_92 = arith.constant 3 : index
    %c0_93 = arith.constant 0 : index
    %c0_94 = arith.constant 0 : index
    %135 = vector.load %arg7[%c3_92, %c0_93, %c0_94] : memref<8x24x16xf32, #tpu.memory_space<vmem>>, vector<1x24x16xf32>
    %136 = vector.shape_cast %135 : vector<1x24x16xf32> to vector<24x16xf32>
    %cst_95 = arith.constant dense<0.000000e+00> : vector<2x16xf32>
    %137 = tpu.matmul %134, %136, %cst_95 {dimension_numbers = #tpu.dot_dimension_numbers<[1], [0], [0], [1], [0, 0, 1, 1], [], []>} : vector<2x24xf32>, vector<24x16xf32>, vector<2x16xf32> -> vector<2x16xf32>
    %138 = arith.addf %133, %137 : vector<2x16xf32>
    %139 = vector.extract_strided_slice %119 {offsets = [8, 0], sizes = [2, 24], strides = [1, 1]} : vector<16x24xf32> to vector<2x24xf32>
    %c4_96 = arith.constant 4 : index
    %c0_97 = arith.constant 0 : index
    %c0_98 = arith.constant 0 : index
    %140 = vector.load %arg7[%c4_96, %c0_97, %c0_98] : memref<8x24x16xf32, #tpu.memory_space<vmem>>, vector<1x24x16xf32>
    %141 = vector.shape_cast %140 : vector<1x24x16xf32> to vector<24x16xf32>
    %cst_99 = arith.constant dense<0.000000e+00> : vector<2x16xf32>
    %142 = tpu.matmul %139, %141, %cst_99 {dimension_numbers = #tpu.dot_dimension_numbers<[1], [0], [0], [1], [0, 0, 1, 1], [], []>} : vector<2x24xf32>, vector<24x16xf32>, vector<2x16xf32> -> vector<2x16xf32>
    %143 = arith.addf %138, %142 : vector<2x16xf32>
    %144 = vector.extract_strided_slice %119 {offsets = [10, 0], sizes = [2, 24], strides = [1, 1]} : vector<16x24xf32> to vector<2x24xf32>
    %c5_100 = arith.constant 5 : index
    %c0_101 = arith.constant 0 : index
    %c0_102 = arith.constant 0 : index
    %145 = vector.load %arg7[%c5_100, %c0_101, %c0_102] : memref<8x24x16xf32, #tpu.memory_space<vmem>>, vector<1x24x16xf32>
    %146 = vector.shape_cast %145 : vector<1x24x16xf32> to vector<24x16xf32>
    %cst_103 = arith.constant dense<0.000000e+00> : vector<2x16xf32>
    %147 = tpu.matmul %144, %146, %cst_103 {dimension_numbers = #tpu.dot_dimension_numbers<[1], [0], [0], [1], [0, 0, 1, 1], [], []>} : vector<2x24xf32>, vector<24x16xf32>, vector<2x16xf32> -> vector<2x16xf32>
    %148 = arith.addf %143, %147 : vector<2x16xf32>
    %149 = vector.extract_strided_slice %119 {offsets = [12, 0], sizes = [2, 24], strides = [1, 1]} : vector<16x24xf32> to vector<2x24xf32>
    %c6_104 = arith.constant 6 : index
    %c0_105 = arith.constant 0 : index
    %c0_106 = arith.constant 0 : index
    %150 = vector.load %arg7[%c6_104, %c0_105, %c0_106] : memref<8x24x16xf32, #tpu.memory_space<vmem>>, vector<1x24x16xf32>
    %151 = vector.shape_cast %150 : vector<1x24x16xf32> to vector<24x16xf32>
    %cst_107 = arith.constant dense<0.000000e+00> : vector<2x16xf32>
    %152 = tpu.matmul %149, %151, %cst_107 {dimension_numbers = #tpu.dot_dimension_numbers<[1], [0], [0], [1], [0, 0, 1, 1], [], []>} : vector<2x24xf32>, vector<24x16xf32>, vector<2x16xf32> -> vector<2x16xf32>
    %153 = arith.addf %148, %152 : vector<2x16xf32>
    %154 = vector.extract_strided_slice %119 {offsets = [14, 0], sizes = [2, 24], strides = [1, 1]} : vector<16x24xf32> to vector<2x24xf32>
    %c7_108 = arith.constant 7 : index
    %c0_109 = arith.constant 0 : index
    %c0_110 = arith.constant 0 : index
    %155 = vector.load %arg7[%c7_108, %c0_109, %c0_110] : memref<8x24x16xf32, #tpu.memory_space<vmem>>, vector<1x24x16xf32>
    %156 = vector.shape_cast %155 : vector<1x24x16xf32> to vector<24x16xf32>
    %cst_111 = arith.constant dense<0.000000e+00> : vector<2x16xf32>
    %157 = tpu.matmul %154, %156, %cst_111 {dimension_numbers = #tpu.dot_dimension_numbers<[1], [0], [0], [1], [0, 0, 1, 1], [], []>} : vector<2x24xf32>, vector<24x16xf32>, vector<2x16xf32> -> vector<2x16xf32>
    %158 = arith.addf %153, %157 : vector<2x16xf32>
    %c0_112 = arith.constant 0 : index
    %c0_113 = arith.constant 0 : index
    %159 = vector.load %arg8[%c0_112, %c0_113] : memref<1x16xf32, #tpu.memory_space<vmem>>, vector<1x16xf32>
    %160 = vector.broadcast %159 : vector<1x16xf32> to vector<2x16xf32>
    %161 = arith.addf %158, %160 : vector<2x16xf32>
    %c0_114 = arith.constant 0 : index
    %c0_115 = arith.constant 0 : index
    %162 = vector.load %arg9[%c0_114, %c0_115] : memref<16x5xf32, #tpu.memory_space<vmem>>, vector<16x5xf32>
    %cst_116 = arith.constant dense<0.000000e+00> : vector<2x5xf32>
    %163 = tpu.matmul %161, %162, %cst_116 {dimension_numbers = #tpu.dot_dimension_numbers<[1], [0], [0], [1], [0, 0, 1, 1], [], []>} : vector<2x16xf32>, vector<16x5xf32>, vector<2x5xf32> -> vector<2x5xf32>
    %c0_117 = arith.constant 0 : index
    %c0_118 = arith.constant 0 : index
    %164 = vector.load %arg10[%c0_117, %c0_118] : memref<1x5xf32, #tpu.memory_space<vmem>>, vector<1x5xf32>
    %165 = vector.broadcast %164 : vector<1x5xf32> to vector<2x5xf32>
    %166 = arith.addf %163, %165 : vector<2x5xf32>
    %c0_119 = arith.constant 0 : index
    %c0_120 = arith.constant 0 : index
    %167 = vector.load %arg11[%c0_119, %c0_120] : memref<2x5xf32, #tpu.memory_space<vmem>>, vector<2x5xf32>
    tpu.vector_store %arg11[%c0_119, %c0_120], %166 {strides = array<i32>} : memref<2x5xf32, #tpu.memory_space<vmem>>, vector<2x5xf32>,
    return
  }
}

</mosaic_0001>

<llo_original>
// kernel: ecnn_forward.1
$region0: #{ecnn_forward.1}
  #allocation0 [shape = 'u32[]', space=smem, size = 0x4, offset = 0x4, fixed_abs, tag = 'smem constant byte address 0x4 - core index']
  #allocation1 [shape = 'u32[144,128]{1,0:T(1,128)}', space=vmem, size = 0x12000, scoped, tag = 'internal scratch']
  %s0 = inlined_call_operand.vmem [shape: f32[896,12], index: 0, kind: input, shape index: {}]
  %s1 = inlined_call_operand.vmem [shape: f32[12,4], index: 1, kind: input, shape index: {}]
  %s2 = inlined_call_operand.vmem [shape: f32[1,4], index: 2, kind: input, shape index: {}]
  %s3 = inlined_call_operand.vmem [shape: f32[4,4,8], index: 3, kind: input, shape index: {}]
  %s4 = inlined_call_operand.vmem [shape: f32[1,8], index: 4, kind: input, shape index: {}]
  %s5 = inlined_call_operand.vmem [shape: f32[14,8,24], index: 5, kind: input, shape index: {}]
  %s6 = inlined_call_operand.vmem [shape: f32[1,24], index: 6, kind: input, shape index: {}]
  %s7 = inlined_call_operand.vmem [shape: f32[8,24,16], index: 7, kind: input, shape index: {}]
  %s8 = inlined_call_operand.vmem [shape: f32[1,16], index: 8, kind: input, shape index: {}]
  %s9 = inlined_call_operand.vmem [shape: f32[16,5], index: 9, kind: input, shape index: {}]
  %s10 = inlined_call_operand.vmem [shape: f32[1,5], index: 10, kind: input, shape index: {}]
  %s11 = inlined_call_operand.hbm [shape: f32[2,5], index: 11, kind: output, shape index: {}]
  %s12 = sld [smem:[#allocation0]]
  $region54: #{ecnn_forward.1} parent=0
    _
  %s14 = ssub.s32 1, %s12
  %s15 = scalar_select 0, %s14, %s12
  $region1: #{ecnn_forward.1} parent=0
    #allocation2 [shape = 'u8[1024]{0}', space=vmem, size = 0x400, scoped, tag = 'output window, operand 0, single buffered']
    #allocation3 [shape = 's32[1]{0}', space=sflag, size = 0x4, scoped, tag = 'scoped memory for ecnn_forward.1']
    %16 = vsyncpa [#allocation3], 0
    // Predicated region
    $region2: #{ecnn_forward.1} parent=1 // pred_check
      _
    $region3: #{ecnn_forward.1} parent=1 // pred_check_branch
      %18 = sbr.rel (0) target = $region5
    $region4: #{ecnn_forward.1} parent=1 // pred_region
      _
    $region5: #{ecnn_forward.1} parent=1 // pred_fallthru
      _
    // Predicated region
    $region6: #{ecnn_forward.1} parent=1 // pred_check
      _
    $region7: #{ecnn_forward.1} parent=1 // pred_check_branch
      %20 = sbr.rel (0) target = $region9
    $region8: #{ecnn_forward.1} parent=1 // pred_region
      _
    $region9: #{ecnn_forward.1} parent=1 // pred_fallthru
      _
    // Predicated region
    $region10: #{ecnn_forward.1} parent=1 // pred_check
      _
    $region11: #{ecnn_forward.1} parent=1 // pred_check_branch
      %22 = sbr.rel (0) target = $region13
    $region12: #{ecnn_forward.1} parent=1 // pred_region
      _
    $region13: #{ecnn_forward.1} parent=1 // pred_fallthru
      _
    // Predicated region
    $region14: #{ecnn_forward.1} parent=1 // pred_check
      _
    $region15: #{ecnn_forward.1} parent=1 // pred_check_branch
      %24 = sbr.rel (0) target = $region17
    $region16: #{ecnn_forward.1} parent=1 // pred_region
      _
    $region17: #{ecnn_forward.1} parent=1 // pred_fallthru
      _
    // Predicated region
    $region18: #{ecnn_forward.1} parent=1 // pred_check
      _
    $region19: #{ecnn_forward.1} parent=1 // pred_check_branch
      %26 = sbr.rel (0) target = $region21
    $region20: #{ecnn_forward.1} parent=1 // pred_region
      _
    $region21: #{ecnn_forward.1} parent=1 // pred_fallthru
      _
    // Predicated region
    $region22: #{ecnn_forward.1} parent=1 // pred_check
      _
    $region23: #{ecnn_forward.1} parent=1 // pred_check_branch
      %28 = sbr.rel (0) target = $region25
    $region24: #{ecnn_forward.1} parent=1 // pred_region
      _
    $region25: #{ecnn_forward.1} parent=1 // pred_fallthru
      _
    // Predicated region
    $region26: #{ecnn_forward.1} parent=1 // pred_check
      _
    $region27: #{ecnn_forward.1} parent=1 // pred_check_branch
      %30 = sbr.rel (0) target = $region29
    $region28: #{ecnn_forward.1} parent=1 // pred_region
      _
    $region29: #{ecnn_forward.1} parent=1 // pred_fallthru
      _
    // Predicated region
    $region30: #{ecnn_forward.1} parent=1 // pred_check
      _
    $region31: #{ecnn_forward.1} parent=1 // pred_check_branch
      %32 = sbr.rel (0) target = $region33
    $region32: #{ecnn_forward.1} parent=1 // pred_region
      _
    $region33: #{ecnn_forward.1} parent=1 // pred_fallthru
      _
    // Predicated region
    $region34: #{ecnn_forward.1} parent=1 // pred_check
      _
    $region35: #{ecnn_forward.1} parent=1 // pred_check_branch
      %34 = sbr.rel (0) target = $region37
    $region36: #{ecnn_forward.1} parent=1 // pred_region
      _
    $region37: #{ecnn_forward.1} parent=1 // pred_fallthru
      _
    // Predicated region
    $region38: #{ecnn_forward.1} parent=1 // pred_check
      _
    $region39: #{ecnn_forward.1} parent=1 // pred_check_branch
      %36 = sbr.rel (0) target = $region41
    $region40: #{ecnn_forward.1} parent=1 // pred_region
      _
    $region41: #{ecnn_forward.1} parent=1 // pred_fallthru
      _
    // Predicated region
    $region42: #{ecnn_forward.1} parent=1 // pred_check
      _
    $region43: #{ecnn_forward.1} parent=1 // pred_check_branch
      %38 = sbr.rel (0) target = $region45
    $region44: #{ecnn_forward.1} parent=1 // pred_region
      _
    $region45: #{ecnn_forward.1} parent=1 // pred_fallthru
      _
    %v39 = vld [vmem:[%s1] sm:$0xff]
    %v40 = vld [vmem:[%s1 + $0x8] sm:$0xf]
    %v41 = vld [vmem:[%s2] sm:$0x1]
    %v42 = vld [vmem:[%s0] sm:$0xff]
    %v43 = vld [vmem:[%s0 + $0x8] sm:$0xff]
    %v44 = vld [vmem:[%s0 + $0x10] sm:$0xff]
    %v45 = vld [vmem:[%s0 + $0x18] sm:$0xff]
    %v46 = vld [vmem:[%s0 + $0x20] sm:$0xff]
    %v47 = vld [vmem:[%s0 + $0x28] sm:$0xff]
    %v48 = vld [vmem:[%s0 + $0x30] sm:$0xff]
    %v49 = vld [vmem:[%s0 + $0x38] sm:$0xff]
    %v50 = vld [vmem:[%s0 + $0x40] sm:$0xff]
    %v51 = vld [vmem:[%s0 + $0x48] sm:$0xff]
    %v52 = vld [vmem:[%s0 + $0x50] sm:$0xff]
    %v53 = vld [vmem:[%s0 + $0x58] sm:$0xff]
    %v54 = vld [vmem:[%s0 + $0x60] sm:$0xff]
    %v55 = vld [vmem:[%s0 + $0x68] sm:$0xff]
    %v56 = vld [vmem:[%s0 + $0x70] sm:$0xff]
    %v57 = vld [vmem:[%s0 + $0x78] sm:$0xff]
    %v58 = vld [vmem:[%s0 + $0x80] sm:$0xff]
    %v59 = vld [vmem:[%s0 + $0x88] sm:$0xff]
    %v60 = vld [vmem:[%s0 + $0x90] sm:$0xff]
    %v61 = vld [vmem:[%s0 + $0x98] sm:$0xff]
    %v62 = vld [vmem:[%s0 + $0xa0] sm:$0xff]
    %v63 = vld [vmem:[%s0 + $0xa8] sm:$0xff]
    %v64 = vld [vmem:[%s0 + $0xb0] sm:$0xff]
    %v65 = vld [vmem:[%s0 + $0xb8] sm:$0xff]
    %v66 = vld [vmem:[%s0 + $0xc0] sm:$0xff]
    %v67 = vld [vmem:[%s0 + $0xc8] sm:$0xff]
    %v68 = vld [vmem:[%s0 + $0xd0] sm:$0xff]
    %v69 = vld [vmem:[%s0 + $0xd8] sm:$0xff]
    %v71 = vlaneseq
    %v72 = vshrl.u32 %v71, 7
    %v73 = vsub.s32 0, %v72
    %v74 = vrot.slane %v41, %v73
    %vm76 = vcmask 97280
    %v78 = vsel %vm76, %v42, 0
    %v81 = vsel %vm76, %v43, 0
    %v84 = vsel %vm76, %v44, 0
    %v87 = vsel %vm76, %v45, 0
    %v90 = vsel %vm76, %v46, 0
    %v93 = vsel %vm76, %v47, 0
    %v96 = vsel %vm76, %v48, 0
    %v99 = vsel %vm76, %v49, 0
    %v102 = vsel %vm76, %v50, 0
    %v105 = vsel %vm76, %v51, 0
    %v108 = vsel %vm76, %v52, 0
    %v111 = vsel %vm76, %v53, 0
    %v114 = vsel %vm76, %v54, 0
    %v117 = vsel %vm76, %v55, 0
    %v120 = vsel %vm76, %v56, 0
    %v123 = vsel %vm76, %v57, 0
    %v126 = vsel %vm76, %v58, 0
    %v129 = vsel %vm76, %v59, 0
    %v132 = vsel %vm76, %v60, 0
    %v135 = vsel %vm76, %v61, 0
    %v138 = vsel %vm76, %v62, 0
    %v141 = vsel %vm76, %v63, 0
    %v144 = vsel %vm76, %v64, 0
    %v147 = vsel %vm76, %v65, 0
    %v150 = vsel %vm76, %v66, 0
    %v153 = vsel %vm76, %v67, 0
    %v156 = vsel %vm76, %v68, 0
    %v159 = vsel %vm76, %v69, 0
    %vm161 = vcmask 1043456
    %v163 = vsel %vm161, %v40, 0
    %165 = vmatprep.subr.mxu0 0.0
    %166 = vmatpush1.msra.mxu0 %v39
    %167 = vmatprep.subr.mxu0 0.0
    %168 = vmatpush1.msra.mxu0 %v163
    %169 = vmatprep.subr.mxu0 0.0
    %170 = vmatpush1.msra.mxu0 0.0
    %171 = vmatprep.subr.mxu0 0.0
    %172 = vmatpush1.msra.mxu0 0.0
    %173 = vmatprep.subr.mxu0 0.0
    %174 = vmatpush1.msra.mxu0 0.0
    %175 = vmatprep.subr.mxu0 0.0
    %176 = vmatpush1.msra.mxu0 0.0
    %177 = vmatprep.subr.mxu0 0.0
    %178 = vmatpush1.msra.mxu0 0.0
    %179 = vmatprep.subr.mxu0 0.0
    %180 = vmatpush1.msra.mxu0 0.0
    %181 = vmatprep.subr.mxu0 0.0
    %182 = vmatpush1.msra.mxu0 0.0
    %183 = vmatprep.subr.mxu0 0.0
    %184 = vmatpush1.msra.mxu0 0.0
    %185 = vmatprep.subr.mxu0 0.0
    %186 = vmatpush1.msra.mxu0 0.0
    %187 = vmatprep.subr.mxu0 0.0
    %188 = vmatpush1.msra.mxu0 0.0
    %189 = vmatprep.subr.mxu0 0.0
    %190 = vmatpush1.msra.mxu0 0.0
    %191 = vmatprep.subr.mxu0 0.0
    %192 = vmatpush1.msra.mxu0 0.0
    %193 = vmatprep.subr.mxu0 0.0
    %194 = vmatpush1.msra.mxu0 0.0
    %195 = vmatprep.subr.mxu0 0.0
    %196 = vmatpush1.msra.mxu0 0.0
    %197 = vmatprep.subr.mxu0 0.0
    %198 = vmatpush1.msra.mxu0 0.0
    %199 = vmatprep.subr.mxu0 0.0
    %200 = vmatpush1.msra.mxu0 0.0
    %201 = vmatprep.subr.mxu0 0.0
    %202 = vmatpush1.msra.mxu0 0.0
    %203 = vmatprep.subr.mxu0 0.0
    %204 = vmatpush1.msra.mxu0 0.0
    %205 = vmatprep.subr.mxu0 0.0
    %206 = vmatpush1.msra.mxu0 0.0
    %207 = vmatprep.subr.mxu0 0.0
    %208 = vmatpush1.msra.mxu0 0.0
    %209 = vmatprep.subr.mxu0 0.0
    %210 = vmatpush1.msra.mxu0 0.0
    %211 = vmatprep.subr.mxu0 0.0
    %212 = vmatpush1.msra.mxu0 0.0
    %213 = vmatprep.subr.mxu0 0.0
    %214 = vmatpush1.msra.mxu0 0.0
    %215 = vmatprep.subr.mxu0 0.0
    %216 = vmatpush1.msra.mxu0 0.0
    %217 = vmatprep.subr.mxu0 0.0
    %218 = vmatpush1.msra.mxu0 0.0
    %219 = vmatprep.subr.mxu0 0.0
    %220 = vmatpush1.msra.mxu0 0.0
    %221 = vmatprep.subr.mxu0 0.0
    %222 = vmatpush1.msra.mxu0 0.0
    %223 = vmatprep.subr.mxu0 0.0
    %224 = vmatpush1.msra.mxu0 0.0
    %225 = vmatprep.subr.mxu0 0.0
    %226 = vmatpush1.msra.mxu0 0.0
    %227 = vmatprep.subr.mxu0 0.0
    %228 = vmatpush1.msra.mxu0 0.0
    %229 = vmatprep.mubr.f32.mxu0 0.0
    %230 = vmatmul.mubr.f32.gmra.mrb[0].mxu0 %v78
    %v231 = vpop.f32.mrb[0].mxu0
    %v232 = vadd.f32 %v74, %v231
    %v233 = vpop.f32.mrb[0].mxu0
    %234 = vmatprep.mubr.f32.mxu0 0.0
    %235 = vmatmul.mubr.f32.gmra.mrb[0].mxu0 %v81
    %v236 = vpop.f32.mrb[0].mxu0
    %v237 = vadd.f32 %v74, %v236
    %v238 = vpop.f32.mrb[0].mxu0
    %239 = vmatprep.mubr.f32.mxu0 0.0
    %240 = vmatmul.mubr.f32.gmra.mrb[0].mxu0 %v84
    %v241 = vpop.f32.mrb[0].mxu0
    %v242 = vadd.f32 %v74, %v241
    %v243 = vpop.f32.mrb[0].mxu0
    %244 = vmatprep.mubr.f32.mxu0 0.0
    %245 = vmatmul.mubr.f32.gmra.mrb[0].mxu0 %v87
    %v246 = vpop.f32.mrb[0].mxu0
    %v247 = vadd.f32 %v74, %v246
    %v248 = vpop.f32.mrb[0].mxu0
    %249 = vmatprep.mubr.f32.mxu0 0.0
    %250 = vmatmul.mubr.f32.gmra.mrb[0].mxu0 %v90
    %v251 = vpop.f32.mrb[0].mxu0
    %v252 = vadd.f32 %v74, %v251
    %v253 = vpop.f32.mrb[0].mxu0
    %254 = vmatprep.mubr.f32.mxu0 0.0
    %255 = vmatmul.mubr.f32.gmra.mrb[0].mxu0 %v93
    %v256 = vpop.f32.mrb[0].mxu0
    %v257 = vadd.f32 %v74, %v256
    %v258 = vpop.f32.mrb[0].mxu0
    %259 = vmatprep.mubr.f32.mxu0 0.0
    %260 = vmatmul.mubr.f32.gmra.mrb[0].mxu0 %v96
    %v261 = vpop.f32.mrb[0].mxu0
    %v262 = vadd.f32 %v74, %v261
    %v263 = vpop.f32.mrb[0].mxu0
    %264 = vmatprep.mubr.f32.mxu0 0.0
    %265 = vmatmul.mubr.f32.gmra.mrb[0].mxu0 %v99
    %v266 = vpop.f32.mrb[0].mxu0
    %v267 = vadd.f32 %v74, %v266
    %v268 = vpop.f32.mrb[0].mxu0
    %269 = vmatprep.mubr.f32.mxu0 0.0
    %270 = vmatmul.mubr.f32.gmra.mrb[0].mxu0 %v102
    %v271 = vpop.f32.mrb[0].mxu0
    %v272 = vadd.f32 %v74, %v271
    %v273 = vpop.f32.mrb[0].mxu0
    %274 = vmatprep.mubr.f32.mxu0 0.0
    %275 = vmatmul.mubr.f32.gmra.mrb[0].mxu0 %v105
    %v276 = vpop.f32.mrb[0].mxu0
    %v277 = vadd.f32 %v74, %v276
    %v278 = vpop.f32.mrb[0].mxu0
    %279 = vmatprep.mubr.f32.mxu0 0.0
    %280 = vmatmul.mubr.f32.gmra.mrb[0].mxu0 %v108
    %v281 = vpop.f32.mrb[0].mxu0
    %v282 = vadd.f32 %v74, %v281
    %v283 = vpop.f32.mrb[0].mxu0
    %284 = vmatprep.mubr.f32.mxu0 0.0
    %285 = vmatmul.mubr.f32.gmra.mrb[0].mxu0 %v111
    %v286 = vpop.f32.mrb[0].mxu0
    %v287 = vadd.f32 %v74, %v286
    %v288 = vpop.f32.mrb[0].mxu0
    %289 = vmatprep.mubr.f32.mxu0 0.0
    %290 = vmatmul.mubr.f32.gmra.mrb[0].mxu0 %v114
    %v291 = vpop.f32.mrb[0].mxu0
    %v292 = vadd.f32 %v74, %v291
    %v293 = vpop.f32.mrb[0].mxu0
    %294 = vmatprep.mubr.f32.mxu0 0.0
    %295 = vmatmul.mubr.f32.gmra.mrb[0].mxu0 %v117
    %v296 = vpop.f32.mrb[0].mxu0
    %v297 = vadd.f32 %v74, %v296
    %v298 = vpop.f32.mrb[0].mxu0
    %299 = vmatprep.mubr.f32.mxu0 0.0
    %300 = vmatmul.mubr.f32.gmra.mrb[0].mxu0 %v120
    %v301 = vpop.f32.mrb[0].mxu0
    %v302 = vadd.f32 %v74, %v301
    %v303 = vpop.f32.mrb[0].mxu0
    %304 = vmatprep.mubr.f32.mxu0 0.0
    %305 = vmatmul.mubr.f32.gmra.mrb[0].mxu0 %v123
    %v306 = vpop.f32.mrb[0].mxu0
    %v307 = vadd.f32 %v74, %v306
    %v308 = vpop.f32.mrb[0].mxu0
    %309 = vmatprep.mubr.f32.mxu0 0.0
    %310 = vmatmul.mubr.f32.gmra.mrb[0].mxu0 %v126
    %v311 = vpop.f32.mrb[0].mxu0
    %v312 = vadd.f32 %v74, %v311
    %v313 = vpop.f32.mrb[0].mxu0
    %314 = vmatprep.mubr.f32.mxu0 0.0
    %315 = vmatmul.mubr.f32.gmra.mrb[0].mxu0 %v129
    %v316 = vpop.f32.mrb[0].mxu0
    %v317 = vadd.f32 %v74, %v316
    %v318 = vpop.f32.mrb[0].mxu0
    %319 = vmatprep.mubr.f32.mxu0 0.0
    %320 = vmatmul.mubr.f32.gmra.mrb[0].mxu0 %v132
    %v321 = vpop.f32.mrb[0].mxu0
    %v322 = vadd.f32 %v74, %v321
    %v323 = vpop.f32.mrb[0].mxu0
    %324 = vmatprep.mubr.f32.mxu0 0.0
    %325 = vmatmul.mubr.f32.gmra.mrb[0].mxu0 %v135
    %v326 = vpop.f32.mrb[0].mxu0
    %v327 = vadd.f32 %v74, %v326
    %v328 = vpop.f32.mrb[0].mxu0
    %329 = vmatprep.mubr.f32.mxu0 0.0
    %330 = vmatmul.mubr.f32.gmra.mrb[0].mxu0 %v138
    %v331 = vpop.f32.mrb[0].mxu0
    %v332 = vadd.f32 %v74, %v331
    %v333 = vpop.f32.mrb[0].mxu0
    %334 = vmatprep.mubr.f32.mxu0 0.0
    %335 = vmatmul.mubr.f32.gmra.mrb[0].mxu0 %v141
    %v336 = vpop.f32.mrb[0].mxu0
    %v337 = vadd.f32 %v74, %v336
    %v338 = vpop.f32.mrb[0].mxu0
    %339 = vmatprep.mubr.f32.mxu0 0.0
    %340 = vmatmul.mubr.f32.gmra.mrb[0].mxu0 %v144
    %v341 = vpop.f32.mrb[0].mxu0
    %v342 = vadd.f32 %v74, %v341
    %v343 = vpop.f32.mrb[0].mxu0
    %344 = vmatprep.mubr.f32.mxu0 0.0
    %345 = vmatmul.mubr.f32.gmra.mrb[0].mxu0 %v147
    %v346 = vpop.f32.mrb[0].mxu0
    %v347 = vadd.f32 %v74, %v346
    %v348 = vpop.f32.mrb[0].mxu0
    %349 = vmatprep.mubr.f32.mxu0 0.0
    %350 = vmatmul.mubr.f32.gmra.mrb[0].mxu0 %v150
    %v351 = vpop.f32.mrb[0].mxu0
    %v352 = vadd.f32 %v74, %v351
    %v353 = vpop.f32.mrb[0].mxu0
    %354 = vmatprep.mubr.f32.mxu0 0.0
    %355 = vmatmul.mubr.f32.gmra.mrb[0].mxu0 %v153
    %v356 = vpop.f32.mrb[0].mxu0
    %v357 = vadd.f32 %v74, %v356
    %v358 = vpop.f32.mrb[0].mxu0
    %359 = vmatprep.mubr.f32.mxu0 0.0
    %360 = vmatmul.mubr.f32.gmra.mrb[0].mxu0 %v156
    %v361 = vpop.f32.mrb[0].mxu0
    %v362 = vadd.f32 %v74, %v361
    %v363 = vpop.f32.mrb[0].mxu0
    %364 = vmatprep.mubr.f32.mxu0 0.0
    %365 = vmatmul.mubr.f32.gmra.mrb[0].mxu0 %v159
    %v366 = vpop.f32.mrb[0].mxu0
    %v367 = vadd.f32 %v74, %v366
    %v368 = vpop.f32.mrb[0].mxu0
    %369 = vdwg.mxu0
    %v370 = vmax.f32 %v232, 0.0
    %v371 = vmax.f32 %v237, 0.0
    %v372 = vmax.f32 %v242, 0.0
    %v373 = vmax.f32 %v247, 0.0
    %v374 = vmax.f32 %v252, 0.0
    %v375 = vmax.f32 %v257, 0.0
    %v376 = vmax.f32 %v262, 0.0
    %v377 = vmax.f32 %v267, 0.0
    %v378 = vmax.f32 %v272, 0.0
    %v379 = vmax.f32 %v277, 0.0
    %v380 = vmax.f32 %v282, 0.0
    %v381 = vmax.f32 %v287, 0.0
    %v382 = vmax.f32 %v292, 0.0
    %v383 = vmax.f32 %v297, 0.0
    %v384 = vmax.f32 %v302, 0.0
    %v385 = vmax.f32 %v307, 0.0
    %v386 = vmax.f32 %v312, 0.0
    %v387 = vmax.f32 %v317, 0.0
    %v388 = vmax.f32 %v322, 0.0
    %v389 = vmax.f32 %v327, 0.0
    %v390 = vmax.f32 %v332, 0.0
    %v391 = vmax.f32 %v337, 0.0
    %v392 = vmax.f32 %v342, 0.0
    %v393 = vmax.f32 %v347, 0.0
    %v394 = vmax.f32 %v352, 0.0
    %v395 = vmax.f32 %v357, 0.0
    %v396 = vmax.f32 %v362, 0.0
    %v397 = vmax.f32 %v367, 0.0
    %v398 = vld [vmem:[%s3] sm:$0xf]
    %v399 = vld [vmem:[%s0 + $0xe0] sm:$0xff]
    %v400 = vld [vmem:[%s0 + $0xe8] sm:$0xff]
    %v401 = vld [vmem:[%s0 + $0xf0] sm:$0xff]
    %v402 = vld [vmem:[%s0 + $0xf8] sm:$0xff]
    %v403 = vld [vmem:[%s0 + $0x100] sm:$0xff]
    %v404 = vld [vmem:[%s0 + $0x108] sm:$0xff]
    %v405 = vld [vmem:[%s0 + $0x110] sm:$0xff]
    %v406 = vld [vmem:[%s0 + $0x118] sm:$0xff]
    %v407 = vld [vmem:[%s0 + $0x120] sm:$0xff]
    %v408 = vld [vmem:[%s0 + $0x128] sm:$0xff]
    %v409 = vld [vmem:[%s0 + $0x130] sm:$0xff]
    %v410 = vld [vmem:[%s0 + $0x138] sm:$0xff]
    %v411 = vld [vmem:[%s0 + $0x140] sm:$0xff]
    %v412 = vld [vmem:[%s0 + $0x148] sm:$0xff]
    %v413 = vld [vmem:[%s0 + $0x150] sm:$0xff]
    %v414 = vld [vmem:[%s0 + $0x158] sm:$0xff]
    %v415 = vld [vmem:[%s0 + $0x160] sm:$0xff]
    %v416 = vld [vmem:[%s0 + $0x168] sm:$0xff]
    %v417 = vld [vmem:[%s0 + $0x170] sm:$0xff]
    %v418 = vld [vmem:[%s0 + $0x178] sm:$0xff]
    %v419 = vld [vmem:[%s0 + $0x180] sm:$0xff]
    %v420 = vld [vmem:[%s0 + $0x188] sm:$0xff]
    %v421 = vld [vmem:[%s0 + $0x190] sm:$0xff]
    %v422 = vld [vmem:[%s0 + $0x198] sm:$0xff]
    %v423 = vld [vmem:[%s0 + $0x1a0] sm:$0xff]
    %v424 = vld [vmem:[%s0 + $0x1a8] sm:$0xff]
    %v425 = vld [vmem:[%s0 + $0x1b0] sm:$0xff]
    %v426 = vld [vmem:[%s0 + $0x1b8] sm:$0xff]
    %v428 = vsel %vm76, %v399, 0
    %v431 = vsel %vm76, %v400, 0
    %v434 = vsel %vm76, %v401, 0
    %v437 = vsel %vm76, %v402, 0
    %v440 = vsel %vm76, %v403, 0
    %v443 = vsel %vm76, %v404, 0
    %v446 = vsel %vm76, %v405, 0
    %v449 = vsel %vm76, %v406, 0
    %v452 = vsel %vm76, %v407, 0
    %v455 = vsel %vm76, %v408, 0
    %v458 = vsel %vm76, %v409, 0
    %v461 = vsel %vm76, %v410, 0
    %v464 = vsel %vm76, %v411, 0
    %v467 = vsel %vm76, %v412, 0
    %v470 = vsel %vm76, %v413, 0
    %v473 = vsel %vm76, %v414, 0
    %v476 = vsel %vm76, %v415, 0
    %v479 = vsel %vm76, %v416, 0
    %v482 = vsel %vm76, %v417, 0
    %v485 = vsel %vm76, %v418, 0
    %v488 = vsel %vm76, %v419, 0
    %v491 = vsel %vm76, %v420, 0
    %v494 = vsel %vm76, %v421, 0
    %v497 = vsel %vm76, %v422, 0
    %v500 = vsel %vm76, %v423, 0
    %v503 = vsel %vm76, %v424, 0
    %v506 = vsel %vm76, %v425, 0
    %v509 = vsel %vm76, %v426, 0
    %511 = vmatprep.subr.mxu0 0.0
    %512 = vmatpush1.msra.mxu0 %v39
    %513 = vmatprep.subr.mxu0 0.0
    %514 = vmatpush1.msra.mxu0 %v163
    %515 = vmatprep.subr.mxu0 0.0
    %516 = vmatpush1.msra.mxu0 0.0
    %517 = vmatprep.subr.mxu0 0.0
    %518 = vmatpush1.msra.mxu0 0.0
    %519 = vmatprep.subr.mxu0 0.0
    %520 = vmatpush1.msra.mxu0 0.0
    %521 = vmatprep.subr.mxu0 0.0
    %522 = vmatpush1.msra.mxu0 0.0
    %523 = vmatprep.subr.mxu0 0.0
    %524 = vmatpush1.msra.mxu0 0.0
    %525 = vmatprep.subr.mxu0 0.0
    %526 = vmatpush1.msra.mxu0 0.0
    %527 = vmatprep.subr.mxu0 0.0
    %528 = vmatpush1.msra.mxu0 0.0
    %529 = vmatprep.subr.mxu0 0.0
    %530 = vmatpush1.msra.mxu0 0.0
    %531 = vmatprep.subr.mxu0 0.0
    %532 = vmatpush1.msra.mxu0 0.0
    %533 = vmatprep.subr.mxu0 0.0
    %534 = vmatpush1.msra.mxu0 0.0
    %535 = vmatprep.subr.mxu0 0.0
    %536 = vmatpush1.msra.mxu0 0.0
    %537 = vmatprep.subr.mxu0 0.0
    %538 = vmatpush1.msra.mxu0 0.0
    %539 = vmatprep.subr.mxu0 0.0
    %540 = vmatpush1.msra.mxu0 0.0
    %541 = vmatprep.subr.mxu0 0.0
    %542 = vmatpush1.msra.mxu0 0.0
    %543 = vmatprep.subr.mxu0 0.0
    %544 = vmatpush1.msra.mxu0 0.0
    %545 = vmatprep.subr.mxu0 0.0
    %546 = vmatpush1.msra.mxu0 0.0
    %547 = vmatprep.subr.mxu0 0.0
    %548 = vmatpush1.msra.mxu0 0.0
    %549 = vmatprep.subr.mxu0 0.0
    %550 = vmatpush1.msra.mxu0 0.0
    %551 = vmatprep.subr.mxu0 0.0
    %552 = vmatpush1.msra.mxu0 0.0
    %553 = vmatprep.subr.mxu0 0.0
    %554 = vmatpush1.msra.mxu0 0.0
    %555 = vmatprep.subr.mxu0 0.0
    %556 = vmatpush1.msra.mxu0 0.0
    %557 = vmatprep.subr.mxu0 0.0
    %558 = vmatpush1.msra.mxu0 0.0
    %559 = vmatprep.subr.mxu0 0.0
    %560 = vmatpush1.msra.mxu0 0.0
    %561 = vmatprep.subr.mxu0 0.0
    %562 = vmatpush1.msra.mxu0 0.0
    %563 = vmatprep.subr.mxu0 0.0
    %564 = vmatpush1.msra.mxu0 0.0
    %565 = vmatprep.subr.mxu0 0.0
    %566 = vmatpush1.msra.mxu0 0.0
    %567 = vmatprep.subr.mxu0 0.0
    %568 = vmatpush1.msra.mxu0 0.0
    %569 = vmatprep.subr.mxu0 0.0
    %570 = vmatpush1.msra.mxu0 0.0
    %571 = vmatprep.subr.mxu0 0.0
    %572 = vmatpush1.msra.mxu0 0.0
    %573 = vmatprep.subr.mxu0 0.0
    %574 = vmatpush1.msra.mxu0 0.0
    %575 = vmatprep.mubr.f32.mxu0 0.0
    %576 = vmatmul.mubr.f32.gmra.mrb[0].mxu0 %v428
    %v577 = vpop.f32.mrb[0].mxu0
    %v578 = vadd.f32 %v74, %v577
    %v579 = vpop.f32.mrb[0].mxu0
    %580 = vmatprep.mubr.f32.mxu0 0.0
    %581 = vmatmul.mubr.f32.gmra.mrb[0].mxu0 %v431
    %v582 = vpop.f32.mrb[0].mxu0
    %v583 = vadd.f32 %v74, %v582
    %v584 = vpop.f32.mrb[0].mxu0
    %585 = vmatprep.mubr.f32.mxu0 0.0
    %586 = vmatmul.mubr.f32.gmra.mrb[0].mxu0 %v434
    %v587 = vpop.f32.mrb[0].mxu0
    %v588 = vadd.f32 %v74, %v587
    %v589 = vpop.f32.mrb[0].mxu0
    %590 = vmatprep.mubr.f32.mxu0 0.0
    %591 = vmatmul.mubr.f32.gmra.mrb[0].mxu0 %v437
    %v592 = vpop.f32.mrb[0].mxu0
    %v593 = vadd.f32 %v74, %v592
    %v594 = vpop.f32.mrb[0].mxu0
    %595 = vmatprep.mubr.f32.mxu0 0.0
    %596 = vmatmul.mubr.f32.gmra.mrb[0].mxu0 %v440
    %v597 = vpop.f32.mrb[0].mxu0
    %v598 = vadd.f32 %v74, %v597
    %v599 = vpop.f32.mrb[0].mxu0
    %600 = vmatprep.mubr.f32.mxu0 0.0
    %601 = vmatmul.mubr.f32.gmra.mrb[0].mxu0 %v443
    %v602 = vpop.f32.mrb[0].mxu0
    %v603 = vadd.f32 %v74, %v602
    %v604 = vpop.f32.mrb[0].mxu0
    %605 = vmatprep.mubr.f32.mxu0 0.0
    %606 = vmatmul.mubr.f32.gmra.mrb[0].mxu0 %v446
    %v607 = vpop.f32.mrb[0].mxu0
    %v608 = vadd.f32 %v74, %v607
    %v609 = vpop.f32.mrb[0].mxu0
    %610 = vmatprep.mubr.f32.mxu0 0.0
    %611 = vmatmul.mubr.f32.gmra.mrb[0].mxu0 %v449
    %v612 = vpop.f32.mrb[0].mxu0
    %v613 = vadd.f32 %v74, %v612
    %v614 = vpop.f32.mrb[0].mxu0
    %615 = vmatprep.mubr.f32.mxu0 0.0
    %616 = vmatmul.mubr.f32.gmra.mrb[0].mxu0 %v452
    %v617 = vpop.f32.mrb[0].mxu0
    %v618 = vadd.f32 %v74, %v617
    %v619 = vpop.f32.mrb[0].mxu0
    %620 = vmatprep.mubr.f32.mxu0 0.0
    %621 = vmatmul.mubr.f32.gmra.mrb[0].mxu0 %v455
    %v622 = vpop.f32.mrb[0].mxu0
    %v623 = vadd.f32 %v74, %v622
    %v624 = vpop.f32.mrb[0].mxu0
    %625 = vmatprep.mubr.f32.mxu0 0.0
    %626 = vmatmul.mubr.f32.gmra.mrb[0].mxu0 %v458
    %v627 = vpop.f32.mrb[0].mxu0
    %v628 = vadd.f32 %v74, %v627
    %v629 = vpop.f32.mrb[0].mxu0
    %630 = vmatprep.mubr.f32.mxu0 0.0
    %631 = vmatmul.mubr.f32.gmra.mrb[0].mxu0 %v461
    %v632 = vpop.f32.mrb[0].mxu0
    %v633 = vadd.f32 %v74, %v632
    %v634 = vpop.f32.mrb[0].mxu0
    %635 = vmatprep.mubr.f32.mxu0 0.0
    %636 = vmatmul.mubr.f32.gmra.mrb[0].mxu0 %v464
    %v637 = vpop.f32.mrb[0].mxu0
    %v638 = vadd.f32 %v74, %v637
    %v639 = vpop.f32.mrb[0].mxu0
    %640 = vmatprep.mubr.f32.mxu0 0.0
    %641 = vmatmul.mubr.f32.gmra.mrb[0].mxu0 %v467
    %v642 = vpop.f32.mrb[0].mxu0
    %v643 = vadd.f32 %v74, %v642
    %v644 = vpop.f32.mrb[0].mxu0
    %645 = vmatprep.mubr.f32.mxu0 0.0
    %646 = vmatmul.mubr.f32.gmra.mrb[0].mxu0 %v470
    %v647 = vpop.f32.mrb[0].mxu0
    %v648 = vadd.f32 %v74, %v647
    %v649 = vpop.f32.mrb[0].mxu0
    %650 = vmatprep.mubr.f32.mxu0 0.0
    %651 = vmatmul.mubr.f32.gmra.mrb[0].mxu0 %v473
    %v652 = vpop.f32.mrb[0].mxu0
    %v653 = vadd.f32 %v74, %v652
    %v654 = vpop.f32.mrb[0].mxu0
    %655 = vmatprep.mubr.f32.mxu0 0.0
    %656 = vmatmul.mubr.f32.gmra.mrb[0].mxu0 %v476
    %v657 = vpop.f32.mrb[0].mxu0
    %v658 = vadd.f32 %v74, %v657
    %v659 = vpop.f32.mrb[0].mxu0
    %660 = vmatprep.mubr.f32.mxu0 0.0
    %661 = vmatmul.mubr.f32.gmra.mrb[0].mxu0 %v479
    %v662 = vpop.f32.mrb[0].mxu0
    %v663 = vadd.f32 %v74, %v662
    %v664 = vpop.f32.mrb[0].mxu0
    %665 = vmatprep.mubr.f32.mxu0 0.0
    %666 = vmatmul.mubr.f32.gmra.mrb[0].mxu0 %v482
    %v667 = vpop.f32.mrb[0].mxu0
    %v668 = vadd.f32 %v74, %v667
    %v669 = vpop.f32.mrb[0].mxu0
    %670 = vmatprep.mubr.f32.mxu0 0.0
    %671 = vmatmul.mubr.f32.gmra.mrb[0].mxu0 %v485
    %v672 = vpop.f32.mrb[0].mxu0
    %v673 = vadd.f32 %v74, %v672
    %v674 = vpop.f32.mrb[0].mxu0
    %675 = vmatprep.mubr.f32.mxu0 0.0
    %676 = vmatmul.mubr.f32.gmra.mrb[0].mxu0 %v488
    %v677 = vpop.f32.mrb[0].mxu0
    %v678 = vadd.f32 %v74, %v677
    %v679 = vpop.f32.mrb[0].mxu0
    %680 = vmatprep.mubr.f32.mxu0 0.0
    %681 = vmatmul.mubr.f32.gmra.mrb[0].mxu0 %v491
    %v682 = vpop.f32.mrb[0].mxu0
    %v683 = vadd.f32 %v74, %v682
    %v684 = vpop.f32.mrb[0].mxu0
    %685 = vmatprep.mubr.f32.mxu0 0.0
    %686 = vmatmul.mubr.f32.gmra.mrb[0].mxu0 %v494
    %v687 = vpop.f32.mrb[0].mxu0
    %v688 = vadd.f32 %v74, %v687
    %v689 = vpop.f32.mrb[0].mxu0
    %690 = vmatprep.mubr.f32.mxu0 0.0
    %691 = vmatmul.mubr.f32.gmra.mrb[0].mxu0 %v497
    %v692 = vpop.f32.mrb[0].mxu0
    %v693 = vadd.f32 %v74, %v692
    %v694 = vpop.f32.mrb[0].mxu0
    %695 = vmatprep.mubr.f32.mxu0 0.0
    %696 = vmatmul.mubr.f32.gmra.mrb[0].mxu0 %v500
    %v697 = vpop.f32.mrb[0].mxu0
    %v698 = vadd.f32 %v74, %v697
    %v699 = vpop.f32.mrb[0].mxu0
    %700 = vmatprep.mubr.f32.mxu0 0.0
    %701 = vmatmul.mubr.f32.gmra.mrb[0].mxu0 %v503
    %v702 = vpop.f32.mrb[0].mxu0
    %v703 = vadd.f32 %v74, %v702
    %v704 = vpop.f32.mrb[0].mxu0
    %705 = vmatprep.mubr.f32.mxu0 0.0
    %706 = vmatmul.mubr.f32.gmra.mrb[0].mxu0 %v506
    %v707 = vpop.f32.mrb[0].mxu0
    %v708 = vadd.f32 %v74, %v707
    %v709 = vpop.f32.mrb[0].mxu0
    %710 = vmatprep.mubr.f32.mxu0 0.0
    %711 = vmatmul.mubr.f32.gmra.mrb[0].mxu0 %v509
    %v712 = vpop.f32.mrb[0].mxu0
    %v713 = vadd.f32 %v74, %v712
    %v714 = vpop.f32.mrb[0].mxu0
    %715 = vdwg.mxu0
    %v716 = vmax.f32 %v578, 0.0
    %v717 = vmax.f32 %v583, 0.0
    %v718 = vmax.f32 %v588, 0.0
    %v719 = vmax.f32 %v593, 0.0
    %v720 = vmax.f32 %v598, 0.0
    %v721 = vmax.f32 %v603, 0.0
    %v722 = vmax.f32 %v608, 0.0
    %v723 = vmax.f32 %v613, 0.0
    %v724 = vmax.f32 %v618, 0.0
    %v725 = vmax.f32 %v623, 0.0
    %v726 = vmax.f32 %v628, 0.0
    %v727 = vmax.f32 %v633, 0.0
    %v728 = vmax.f32 %v638, 0.0
    %v729 = vmax.f32 %v643, 0.0
    %v730 = vmax.f32 %v648, 0.0
    %v731 = vmax.f32 %v653, 0.0
    %v732 = vmax.f32 %v658, 0.0
    %v733 = vmax.f32 %v663, 0.0
    %v734 = vmax.f32 %v668, 0.0
    %v735 = vmax.f32 %v673, 0.0
    %v736 = vmax.f32 %v678, 0.0
    %v737 = vmax.f32 %v683, 0.0
    %v738 = vmax.f32 %v688, 0.0
    %v739 = vmax.f32 %v693, 0.0
    %v740 = vmax.f32 %v698, 0.0
    %v741 = vmax.f32 %v703, 0.0
    %v742 = vmax.f32 %v708, 0.0
    %v743 = vmax.f32 %v713, 0.0
    %s744 = scalar_lea.vmem %s3, 4
    %v745 = vld [vmem:[%s744] sm:$0xf]
    %vm746 = vcmask 31744
    %v748 = vsel %vm746, %v716, 0
    %v751 = vsel %vm746, %v717, 0
    %v754 = vsel %vm746, %v718, 0
    %v757 = vsel %vm746, %v719, 0
    %v760 = vsel %vm746, %v720, 0
    %v763 = vsel %vm746, %v721, 0
    %v766 = vsel %vm746, %v722, 0
    %v769 = vsel %vm746, %v723, 0
    %v772 = vsel %vm746, %v724, 0
    %v775 = vsel %vm746, %v725, 0
    %v778 = vsel %vm746, %v726, 0
    %v781 = vsel %vm746, %v727, 0
    %v784 = vsel %vm746, %v728, 0
    %v787 = vsel %vm746, %v729, 0
    %v790 = vsel %vm746, %v730, 0
    %v793 = vsel %vm746, %v731, 0
    %v796 = vsel %vm746, %v732, 0
    %v799 = vsel %vm746, %v733, 0
    %v802 = vsel %vm746, %v734, 0
    %v805 = vsel %vm746, %v735, 0
    %v808 = vsel %vm746, %v736, 0
    %v811 = vsel %vm746, %v737, 0
    %v814 = vsel %vm746, %v738, 0
    %v817 = vsel %vm746, %v739, 0
    %v820 = vsel %vm746, %v740, 0
    %v823 = vsel %vm746, %v741, 0
    %v826 = vsel %vm746, %v742, 0
    %v829 = vsel %vm746, %v743, 0
    %v832 = vsel %vm161, %v745, 0
    %834 = vmatprep.subr.mxu0 0.0
    %835 = vmatpush1.msra.mxu0 %v832
    %836 = vmatprep.subr.mxu0 0.0
    %837 = vmatpush1.msra.mxu0 0.0
    %838 = vmatprep.subr.mxu0 0.0
    %839 = vmatpush1.msra.mxu0 0.0
    %840 = vmatprep.subr.mxu0 0.0
    %841 = vmatpush1.msra.mxu0 0.0
    %842 = vmatprep.subr.mxu0 0.0
    %843 = vmatpush1.msra.mxu0 0.0
    %844 = vmatprep.subr.mxu0 0.0
    %845 = vmatpush1.msra.mxu0 0.0
    %846 = vmatprep.subr.mxu0 0.0
    %847 = vmatpush1.msra.mxu0 0.0
    %848 = vmatprep.subr.mxu0 0.0
    %849 = vmatpush1.msra.mxu0 0.0
    %850 = vmatprep.subr.mxu0 0.0
    %851 = vmatpush1.msra.mxu0 0.0
    %852 = vmatprep.subr.mxu0 0.0
    %853 = vmatpush1.msra.mxu0 0.0
    %854 = vmatprep.subr.mxu0 0.0
    %855 = vmatpush1.msra.mxu0 0.0
    %856 = vmatprep.subr.mxu0 0.0
    %857 = vmatpush1.msra.mxu0 0.0
    %858 = vmatprep.subr.mxu0 0.0
    %859 = vmatpush1.msra.mxu0 0.0
    %860 = vmatprep.subr.mxu0 0.0
    %861 = vmatpush1.msra.mxu0 0.0
    %862 = vmatprep.subr.mxu0 0.0
    %863 = vmatpush1.msra.mxu0 0.0
    %864 = vmatprep.subr.mxu0 0.0
    %865 = vmatpush1.msra.mxu0 0.0
    %866 = vmatprep.subr.mxu0 0.0
    %867 = vmatpush1.msra.mxu0 0.0
    %868 = vmatprep.subr.mxu0 0.0
    %869 = vmatpush1.msra.mxu0 0.0
    %870 = vmatprep.subr.mxu0 0.0
    %871 = vmatpush1.msra.mxu0 0.0
    %872 = vmatprep.subr.mxu0 0.0
    %873 = vmatpush1.msra.mxu0 0.0
    %874 = vmatprep.subr.mxu0 0.0
    %875 = vmatpush1.msra.mxu0 0.0
    %876 = vmatprep.subr.mxu0 0.0
    %877 = vmatpush1.msra.mxu0 0.0
    %878 = vmatprep.subr.mxu0 0.0
    %879 = vmatpush1.msra.mxu0 0.0
    %880 = vmatprep.subr.mxu0 0.0
    %881 = vmatpush1.msra.mxu0 0.0
    %882 = vmatprep.subr.mxu0 0.0
    %883 = vmatpush1.msra.mxu0 0.0
    %884 = vmatprep.subr.mxu0 0.0
    %885 = vmatpush1.msra.mxu0 0.0
    %886 = vmatprep.subr.mxu0 0.0
    %887 = vmatpush1.msra.mxu0 0.0
    %888 = vmatprep.subr.mxu0 0.0
    %889 = vmatpush1.msra.mxu0 0.0
    %890 = vmatprep.subr.mxu0 0.0
    %891 = vmatpush1.msra.mxu0 0.0
    %892 = vmatprep.subr.mxu0 0.0
    %893 = vmatpush1.msra.mxu0 0.0
    %894 = vmatprep.subr.mxu0 0.0
    %895 = vmatpush1.msra.mxu0 0.0
    %896 = vmatprep.subr.mxu0 0.0
    %897 = vmatpush1.msra.mxu0 0.0
    %898 = vmatprep.mubr.f32.mxu0 0.0
    %899 = vmatmul.mubr.f32.gmra.mrb[0].mxu0 %v748
    %v900 = vpop.f32.mrb[0].mxu0
    %v901 = vadd.f32 0.0, %v900
    %v902 = vpop.f32.mrb[0].mxu0
    %903 = vmatprep.mubr.f32.mxu0 0.0
    %904 = vmatmul.mubr.f32.gmra.mrb[0].mxu0 %v751
    %v905 = vpop.f32.mrb[0].mxu0
    %v906 = vadd.f32 0.0, %v905
    %v907 = vpop.f32.mrb[0].mxu0
    %908 = vmatprep.mubr.f32.mxu0 0.0
    %909 = vmatmul.mubr.f32.gmra.mrb[0].mxu0 %v754
    %v910 = vpop.f32.mrb[0].mxu0
    %v911 = vadd.f32 0.0, %v910
    %v912 = vpop.f32.mrb[0].mxu0
    %913 = vmatprep.mubr.f32.mxu0 0.0
    %914 = vmatmul.mubr.f32.gmra.mrb[0].mxu0 %v757
    %v915 = vpop.f32.mrb[0].mxu0
    %v916 = vadd.f32 0.0, %v915
    %v917 = vpop.f32.mrb[0].mxu0
    %918 = vmatprep.mubr.f32.mxu0 0.0
    %919 = vmatmul.mubr.f32.gmra.mrb[0].mxu0 %v760
    %v920 = vpop.f32.mrb[0].mxu0
    %v921 = vadd.f32 0.0, %v920
    %v922 = vpop.f32.mrb[0].mxu0
    %923 = vmatprep.mubr.f32.mxu0 0.0
    %924 = vmatmul.mubr.f32.gmra.mrb[0].mxu0 %v763
    %v925 = vpop.f32.mrb[0].mxu0
    %v926 = vadd.f32 0.0, %v925
    %v927 = vpop.f32.mrb[0].mxu0
    %928 = vmatprep.mubr.f32.mxu0 0.0
    %929 = vmatmul.mubr.f32.gmra.mrb[0].mxu0 %v766
    %v930 = vpop.f32.mrb[0].mxu0
    %v931 = vadd.f32 0.0, %v930
    %v932 = vpop.f32.mrb[0].mxu0
    %933 = vmatprep.mubr.f32.mxu0 0.0
    %934 = vmatmul.mubr.f32.gmra.mrb[0].mxu0 %v769
    %v935 = vpop.f32.mrb[0].mxu0
    %v936 = vadd.f32 0.0, %v935
    %v937 = vpop.f32.mrb[0].mxu0
    %938 = vmatprep.mubr.f32.mxu0 0.0
    %939 = vmatmul.mubr.f32.gmra.mrb[0].mxu0 %v772
    %v940 = vpop.f32.mrb[0].mxu0
    %v941 = vadd.f32 0.0, %v940
    %v942 = vpop.f32.mrb[0].mxu0
    %943 = vmatprep.mubr.f32.mxu0 0.0
    %944 = vmatmul.mubr.f32.gmra.mrb[0].mxu0 %v775
    %v945 = vpop.f32.mrb[0].mxu0
    %v946 = vadd.f32 0.0, %v945
    %v947 = vpop.f32.mrb[0].mxu0
    %948 = vmatprep.mubr.f32.mxu0 0.0
    %949 = vmatmul.mubr.f32.gmra.mrb[0].mxu0 %v778
    %v950 = vpop.f32.mrb[0].mxu0
    %v951 = vadd.f32 0.0, %v950
    %v952 = vpop.f32.mrb[0].mxu0
    %953 = vmatprep.mubr.f32.mxu0 0.0
    %954 = vmatmul.mubr.f32.gmra.mrb[0].mxu0 %v781
    %v955 = vpop.f32.mrb[0].mxu0
    %v956 = vadd.f32 0.0, %v955
    %v957 = vpop.f32.mrb[0].mxu0
    %958 = vmatprep.mubr.f32.mxu0 0.0
    %959 = vmatmul.mubr.f32.gmra.mrb[0].mxu0 %v784
    %v960 = vpop.f32.mrb[0].mxu0
    %v961 = vadd.f32 0.0, %v960
    %v962 = vpop.f32.mrb[0].mxu0
    %963 = vmatprep.mubr.f32.mxu0 0.0
    %964 = vmatmul.mubr.f32.gmra.mrb[0].mxu0 %v787
    %v965 = vpop.f32.mrb[0].mxu0
    %v966 = vadd.f32 0.0, %v965
    %v967 = vpop.f32.mrb[0].mxu0
    %968 = vmatprep.mubr.f32.mxu0 0.0
    %969 = vmatmul.mubr.f32.gmra.mrb[0].mxu0 %v790
    %v970 = vpop.f32.mrb[0].mxu0
    %v971 = vadd.f32 0.0, %v970
    %v972 = vpop.f32.mrb[0].mxu0
    %973 = vmatprep.mubr.f32.mxu0 0.0
    %974 = vmatmul.mubr.f32.gmra.mrb[0].mxu0 %v793
    %v975 = vpop.f32.mrb[0].mxu0
    %v976 = vadd.f32 0.0, %v975
    %v977 = vpop.f32.mrb[0].mxu0
    %978 = vmatprep.mubr.f32.mxu0 0.0
    %979 = vmatmul.mubr.f32.gmra.mrb[0].mxu0 %v796
    %v980 = vpop.f32.mrb[0].mxu0
    %v981 = vadd.f32 0.0, %v980
    %v982 = vpop.f32.mrb[0].mxu0
    %983 = vmatprep.mubr.f32.mxu0 0.0
    %984 = vmatmul.mubr.f32.gmra.mrb[0].mxu0 %v799
    %v985 = vpop.f32.mrb[0].mxu0
    %v986 = vadd.f32 0.0, %v985
    %v987 = vpop.f32.mrb[0].mxu0
    %988 = vmatprep.mubr.f32.mxu0 0.0
    %989 = vmatmul.mubr.f32.gmra.mrb[0].mxu0 %v802
    %v990 = vpop.f32.mrb[0].mxu0
    %v991 = vadd.f32 0.0, %v990
    %v992 = vpop.f32.mrb[0].mxu0
    %993 = vmatprep.mubr.f32.mxu0 0.0
    %994 = vmatmul.mubr.f32.gmra.mrb[0].mxu0 %v805
    %v995 = vpop.f32.mrb[0].mxu0
    %v996 = vadd.f32 0.0, %v995
    %v997 = vpop.f32.mrb[0].mxu0
    %998 = vmatprep.mubr.f32.mxu0 0.0
    %999 = vmatmul.mubr.f32.gmra.mrb[0].mxu0 %v808
    %v1000 = vpop.f32.mrb[0].mxu0
    %v1001 = vadd.f32 0.0, %v1000
    %v1002 = vpop.f32.mrb[0].mxu0
    %1003 = vmatprep.mubr.f32.mxu0 0.0
    %1004 = vmatmul.mubr.f32.gmra.mrb[0].mxu0 %v811
    %v1005 = vpop.f32.mrb[0].mxu0
    %v1006 = vadd.f32 0.0, %v1005
    %v1007 = vpop.f32.mrb[0].mxu0
    %1008 = vmatprep.mubr.f32.mxu0 0.0
    %1009 = vmatmul.mubr.f32.gmra.mrb[0].mxu0 %v814
    %v1010 = vpop.f32.mrb[0].mxu0
    %v1011 = vadd.f32 0.0, %v1010
    %v1012 = vpop.f32.mrb[0].mxu0
    %1013 = vmatprep.mubr.f32.mxu0 0.0
    %1014 = vmatmul.mubr.f32.gmra.mrb[0].mxu0 %v817
    %v1015 = vpop.f32.mrb[0].mxu0
    %v1016 = vadd.f32 0.0, %v1015
    %v1017 = vpop.f32.mrb[0].mxu0
    %1018 = vmatprep.mubr.f32.mxu0 0.0
    %1019 = vmatmul.mubr.f32.gmra.mrb[0].mxu0 %v820
    %v1020 = vpop.f32.mrb[0].mxu0
    %v1021 = vadd.f32 0.0, %v1020
    %v1022 = vpop.f32.mrb[0].mxu0
    %1023 = vmatprep.mubr.f32.mxu0 0.0
    %1024 = vmatmul.mubr.f32.gmra.mrb[0].mxu0 %v823
    %v1025 = vpop.f32.mrb[0].mxu0
    %v1026 = vadd.f32 0.0, %v1025
    %v1027 = vpop.f32.mrb[0].mxu0
    %1028 = vmatprep.mubr.f32.mxu0 0.0
    %1029 = vmatmul.mubr.f32.gmra.mrb[0].mxu0 %v826
    %v1030 = vpop.f32.mrb[0].mxu0
    %v1031 = vadd.f32 0.0, %v1030
    %v1032 = vpop.f32.mrb[0].mxu0
    %1033 = vmatprep.mubr.f32.mxu0 0.0
    %1034 = vmatmul.mubr.f32.gmra.mrb[0].mxu0 %v829
    %v1035 = vpop.f32.mrb[0].mxu0
    %v1036 = vadd.f32 0.0, %v1035
    %v1037 = vpop.f32.mrb[0].mxu0
    %1038 = vdwg.mxu0
    %v1040 = vsel %vm746, %v370, 0
    %v1043 = vsel %vm746, %v371, 0
    %v1046 = vsel %vm746, %v372, 0
    %v1049 = vsel %vm746, %v373, 0
    %v1052 = vsel %vm746, %v374, 0
    %v1055 = vsel %vm746, %v375, 0
    %v1058 = vsel %vm746, %v376, 0
    %v1061 = vsel %vm746, %v377, 0
    %v1064 = vsel %vm746, %v378, 0
    %v1067 = vsel %vm746, %v379, 0
    %v1070 = vsel %vm746, %v380, 0
    %v1073 = vsel %vm746, %v381, 0
    %v1076 = vsel %vm746, %v382, 0
    %v1079 = vsel %vm746, %v383, 0
    %v1082 = vsel %vm746, %v384, 0
    %v1085 = vsel %vm746, %v385, 0
    %v1088 = vsel %vm746, %v386, 0
    %v1091 = vsel %vm746, %v387, 0
    %v1094 = vsel %vm746, %v388, 0
    %v1097 = vsel %vm746, %v389, 0
    %v1100 = vsel %vm746, %v390, 0
    %v1103 = vsel %vm746, %v391, 0
    %v1106 = vsel %vm746, %v392, 0
    %v1109 = vsel %vm746, %v393, 0
    %v1112 = vsel %vm746, %v394, 0
    %v1115 = vsel %vm746, %v395, 0
    %v1118 = vsel %vm746, %v396, 0
    %v1121 = vsel %vm746, %v397, 0
    %v1124 = vsel %vm161, %v398, 0
    %1126 = vmatprep.subr.mxu0 0.0
    %1127 = vmatpush1.msra.mxu0 %v1124
    %1128 = vmatprep.subr.mxu0 0.0
    %1129 = vmatpush1.msra.mxu0 0.0
    %1130 = vmatprep.subr.mxu0 0.0
    %1131 = vmatpush1.msra.mxu0 0.0
    %1132 = vmatprep.subr.mxu0 0.0
    %1133 = vmatpush1.msra.mxu0 0.0
    %1134 = vmatprep.subr.mxu0 0.0
    %1135 = vmatpush1.msra.mxu0 0.0
    %1136 = vmatprep.subr.mxu0 0.0
    %1137 = vmatpush1.msra.mxu0 0.0
    %1138 = vmatprep.subr.mxu0 0.0
    %1139 = vmatpush1.msra.mxu0 0.0
    %1140 = vmatprep.subr.mxu0 0.0
    %1141 = vmatpush1.msra.mxu0 0.0
    %1142 = vmatprep.subr.mxu0 0.0
    %1143 = vmatpush1.msra.mxu0 0.0
    %1144 = vmatprep.subr.mxu0 0.0
    %1145 = vmatpush1.msra.mxu0 0.0
    %1146 = vmatprep.subr.mxu0 0.0
    %1147 = vmatpush1.msra.mxu0 0.0
    %1148 = vmatprep.subr.mxu0 0.0
    %1149 = vmatpush1.msra.mxu0 0.0
    %1150 = vmatprep.subr.mxu0 0.0
    %1151 = vmatpush1.msra.mxu0 0.0
    %1152 = vmatprep.subr.mxu0 0.0
    %1153 = vmatpush1.msra.mxu0 0.0
    %1154 = vmatprep.subr.mxu0 0.0
    %1155 = vmatpush1.msra.mxu0 0.0
    %1156 = vmatprep.subr.mxu0 0.0
    %1157 = vmatpush1.msra.mxu0 0.0
    %1158 = vmatprep.subr.mxu0 0.0
    %1159 = vmatpush1.msra.mxu0 0.0
    %1160 = vmatprep.subr.mxu0 0.0
    %1161 = vmatpush1.msra.mxu0 0.0
    %1162 = vmatprep.subr.mxu0 0.0
    %1163 = vmatpush1.msra.mxu0 0.0
    %1164 = vmatprep.subr.mxu0 0.0
    %1165 = vmatpush1.msra.mxu0 0.0
    %1166 = vmatprep.subr.mxu0 0.0
    %1167 = vmatpush1.msra.mxu0 0.0
    %1168 = vmatprep.subr.mxu0 0.0
    %1169 = vmatpush1.msra.mxu0 0.0
    %1170 = vmatprep.subr.mxu0 0.0
    %1171 = vmatpush1.msra.mxu0 0.0
    %1172 = vmatprep.subr.mxu0 0.0
    %1173 = vmatpush1.msra.mxu0 0.0
    %1174 = vmatprep.subr.mxu0 0.0
    %1175 = vmatpush1.msra.mxu0 0.0
    %1176 = vmatprep.subr.mxu0 0.0
    %1177 = vmatpush1.msra.mxu0 0.0
    %1178 = vmatprep.subr.mxu0 0.0
    %1179 = vmatpush1.msra.mxu0 0.0
    %1180 = vmatprep.subr.mxu0 0.0
    %1181 = vmatpush1.msra.mxu0 0.0
    %1182 = vmatprep.subr.mxu0 0.0
    %1183 = vmatpush1.msra.mxu0 0.0
    %1184 = vmatprep.subr.mxu0 0.0
    %1185 = vmatpush1.msra.mxu0 0.0
    %1186 = vmatprep.subr.mxu0 0.0
    %1187 = vmatpush1.msra.mxu0 0.0
    %1188 = vmatprep.subr.mxu0 0.0
    %1189 = vmatpush1.msra.mxu0 0.0
    %1190 = vmatprep.mubr.f32.mxu0 0.0
    %1191 = vmatmul.mubr.f32.gmra.mrb[0].mxu0 %v1040
    %v1192 = vpop.f32.mrb[0].mxu0
    %v1193 = vadd.f32 %v901, %v1192
    %v1194 = vpop.f32.mrb[0].mxu0
    %1195 = vmatprep.mubr.f32.mxu0 0.0
    %1196 = vmatmul.mubr.f32.gmra.mrb[0].mxu0 %v1043
    %v1197 = vpop.f32.mrb[0].mxu0
    %v1198 = vadd.f32 %v906, %v1197
    %v1199 = vpop.f32.mrb[0].mxu0
    %1200 = vmatprep.mubr.f32.mxu0 0.0
    %1201 = vmatmul.mubr.f32.gmra.mrb[0].mxu0 %v1046
    %v1202 = vpop.f32.mrb[0].mxu0
    %v1203 = vadd.f32 %v911, %v1202
    %v1204 = vpop.f32.mrb[0].mxu0
    %1205 = vmatprep.mubr.f32.mxu0 0.0
    %1206 = vmatmul.mubr.f32.gmra.mrb[0].mxu0 %v1049
    %v1207 = vpop.f32.mrb[0].mxu0
    %v1208 = vadd.f32 %v916, %v1207
    %v1209 = vpop.f32.mrb[0].mxu0
    %1210 = vmatprep.mubr.f32.mxu0 0.0
    %1211 = vmatmul.mubr.f32.gmra.mrb[0].mxu0 %v1052
    %v1212 = vpop.f32.mrb[0].mxu0
    %v1213 = vadd.f32 %v921, %v1212
    %v1214 = vpop.f32.mrb[0].mxu0
    %1215 = vmatprep.mubr.f32.mxu0 0.0
    %1216 = vmatmul.mubr.f32.gmra.mrb[0].mxu0 %v1055
    %v1217 = vpop.f32.mrb[0].mxu0
    %v1218 = vadd.f32 %v926, %v1217
    %v1219 = vpop.f32.mrb[0].mxu0
    %1220 = vmatprep.mubr.f32.mxu0 0.0
    %1221 = vmatmul.mubr.f32.gmra.mrb[0].mxu0 %v1058
    %v1222 = vpop.f32.mrb[0].mxu0
    %v1223 = vadd.f32 %v931, %v1222
    %v1224 = vpop.f32.mrb[0].mxu0
    %1225 = vmatprep.mubr.f32.mxu0 0.0
    %1226 = vmatmul.mubr.f32.gmra.mrb[0].mxu0 %v1061
    %v1227 = vpop.f32.mrb[0].mxu0
    %v1228 = vadd.f32 %v936, %v1227
    %v1229 = vpop.f32.mrb[0].mxu0
    %1230 = vmatprep.mubr.f32.mxu0 0.0
    %1231 = vmatmul.mubr.f32.gmra.mrb[0].mxu0 %v1064
    %v1232 = vpop.f32.mrb[0].mxu0
    %v1233 = vadd.f32 %v941, %v1232
    %v1234 = vpop.f32.mrb[0].mxu0
    %1235 = vmatprep.mubr.f32.mxu0 0.0
    %1236 = vmatmul.mubr.f32.gmra.mrb[0].mxu0 %v1067
    %v1237 = vpop.f32.mrb[0].mxu0
    %v1238 = vadd.f32 %v946, %v1237
    %v1239 = vpop.f32.mrb[0].mxu0
    %1240 = vmatprep.mubr.f32.mxu0 0.0
    %1241 = vmatmul.mubr.f32.gmra.mrb[0].mxu0 %v1070
    %v1242 = vpop.f32.mrb[0].mxu0
    %v1243 = vadd.f32 %v951, %v1242
    %v1244 = vpop.f32.mrb[0].mxu0
    %1245 = vmatprep.mubr.f32.mxu0 0.0
    %1246 = vmatmul.mubr.f32.gmra.mrb[0].mxu0 %v1073
    %v1247 = vpop.f32.mrb[0].mxu0
    %v1248 = vadd.f32 %v956, %v1247
    %v1249 = vpop.f32.mrb[0].mxu0
    %1250 = vmatprep.mubr.f32.mxu0 0.0
    %1251 = vmatmul.mubr.f32.gmra.mrb[0].mxu0 %v1076
    %v1252 = vpop.f32.mrb[0].mxu0
    %v1253 = vadd.f32 %v961, %v1252
    %v1254 = vpop.f32.mrb[0].mxu0
    %1255 = vmatprep.mubr.f32.mxu0 0.0
    %1256 = vmatmul.mubr.f32.gmra.mrb[0].mxu0 %v1079
    %v1257 = vpop.f32.mrb[0].mxu0
    %v1258 = vadd.f32 %v966, %v1257
    %v1259 = vpop.f32.mrb[0].mxu0
    %1260 = vmatprep.mubr.f32.mxu0 0.0
    %1261 = vmatmul.mubr.f32.gmra.mrb[0].mxu0 %v1082
    %v1262 = vpop.f32.mrb[0].mxu0
    %v1263 = vadd.f32 %v971, %v1262
    %v1264 = vpop.f32.mrb[0].mxu0
    %1265 = vmatprep.mubr.f32.mxu0 0.0
    %1266 = vmatmul.mubr.f32.gmra.mrb[0].mxu0 %v1085
    %v1267 = vpop.f32.mrb[0].mxu0
    %v1268 = vadd.f32 %v976, %v1267
    %v1269 = vpop.f32.mrb[0].mxu0
    %1270 = vmatprep.mubr.f32.mxu0 0.0
    %1271 = vmatmul.mubr.f32.gmra.mrb[0].mxu0 %v1088
    %v1272 = vpop.f32.mrb[0].mxu0
    %v1273 = vadd.f32 %v981, %v1272
    %v1274 = vpop.f32.mrb[0].mxu0
    %1275 = vmatprep.mubr.f32.mxu0 0.0
    %1276 = vmatmul.mubr.f32.gmra.mrb[0].mxu0 %v1091
    %v1277 = vpop.f32.mrb[0].mxu0
    %v1278 = vadd.f32 %v986, %v1277
    %v1279 = vpop.f32.mrb[0].mxu0
    %1280 = vmatprep.mubr.f32.mxu0 0.0
    %1281 = vmatmul.mubr.f32.gmra.mrb[0].mxu0 %v1094
    %v1282 = vpop.f32.mrb[0].mxu0
    %v1283 = vadd.f32 %v991, %v1282
    %v1284 = vpop.f32.mrb[0].mxu0
    %1285 = vmatprep.mubr.f32.mxu0 0.0
    %1286 = vmatmul.mubr.f32.gmra.mrb[0].mxu0 %v1097
    %v1287 = vpop.f32.mrb[0].mxu0
    %v1288 = vadd.f32 %v996, %v1287
    %v1289 = vpop.f32.mrb[0].mxu0
    %1290 = vmatprep.mubr.f32.mxu0 0.0
    %1291 = vmatmul.mubr.f32.gmra.mrb[0].mxu0 %v1100
    %v1292 = vpop.f32.mrb[0].mxu0
    %v1293 = vadd.f32 %v1001, %v1292
    %v1294 = vpop.f32.mrb[0].mxu0
    %1295 = vmatprep.mubr.f32.mxu0 0.0
    %1296 = vmatmul.mubr.f32.gmra.mrb[0].mxu0 %v1103
    %v1297 = vpop.f32.mrb[0].mxu0
    %v1298 = vadd.f32 %v1006, %v1297
    %v1299 = vpop.f32.mrb[0].mxu0
    %1300 = vmatprep.mubr.f32.mxu0 0.0
    %1301 = vmatmul.mubr.f32.gmra.mrb[0].mxu0 %v1106
    %v1302 = vpop.f32.mrb[0].mxu0
    %v1303 = vadd.f32 %v1011, %v1302
    %v1304 = vpop.f32.mrb[0].mxu0
    %1305 = vmatprep.mubr.f32.mxu0 0.0
    %1306 = vmatmul.mubr.f32.gmra.mrb[0].mxu0 %v1109
    %v1307 = vpop.f32.mrb[0].mxu0
    %v1308 = vadd.f32 %v1016, %v1307
    %v1309 = vpop.f32.mrb[0].mxu0
    %1310 = vmatprep.mubr.f32.mxu0 0.0
    %1311 = vmatmul.mubr.f32.gmra.mrb[0].mxu0 %v1112
    %v1312 = vpop.f32.mrb[0].mxu0
    %v1313 = vadd.f32 %v1021, %v1312
    %v1314 = vpop.f32.mrb[0].mxu0
    %1315 = vmatprep.mubr.f32.mxu0 0.0
    %1316 = vmatmul.mubr.f32.gmra.mrb[0].mxu0 %v1115
    %v1317 = vpop.f32.mrb[0].mxu0
    %v1318 = vadd.f32 %v1026, %v1317
    %v1319 = vpop.f32.mrb[0].mxu0
    %1320 = vmatprep.mubr.f32.mxu0 0.0
    %1321 = vmatmul.mubr.f32.gmra.mrb[0].mxu0 %v1118
    %v1322 = vpop.f32.mrb[0].mxu0
    %v1323 = vadd.f32 %v1031, %v1322
    %v1324 = vpop.f32.mrb[0].mxu0
    %1325 = vmatprep.mubr.f32.mxu0 0.0
    %1326 = vmatmul.mubr.f32.gmra.mrb[0].mxu0 %v1121
    %v1327 = vpop.f32.mrb[0].mxu0
    %v1328 = vadd.f32 %v1036, %v1327
    %v1329 = vpop.f32.mrb[0].mxu0
    %1330 = vdwg.mxu0
    %v1331 = vld [vmem:[%s0 + $0x1c0] sm:$0xff]
    %v1332 = vld [vmem:[%s0 + $0x1c8] sm:$0xff]
    %v1333 = vld [vmem:[%s0 + $0x1d0] sm:$0xff]
    %v1334 = vld [vmem:[%s0 + $0x1d8] sm:$0xff]
    %v1335 = vld [vmem:[%s0 + $0x1e0] sm:$0xff]
    %v1336 = vld [vmem:[%s0 + $0x1e8] sm:$0xff]
    %v1337 = vld [vmem:[%s0 + $0x1f0] sm:$0xff]
    %v1338 = vld [vmem:[%s0 + $0x1f8] sm:$0xff]
    %v1339 = vld [vmem:[%s0 + $0x200] sm:$0xff]
    %v1340 = vld [vmem:[%s0 + $0x208] sm:$0xff]
    %v1341 = vld [vmem:[%s0 + $0x210] sm:$0xff]
    %v1342 = vld [vmem:[%s0 + $0x218] sm:$0xff]
    %v1343 = vld [vmem:[%s0 + $0x220] sm:$0xff]
    %v1344 = vld [vmem:[%s0 + $0x228] sm:$0xff]
    %v1345 = vld [vmem:[%s0 + $0x230] sm:$0xff]
    %v1346 = vld [vmem:[%s0 + $0x238] sm:$0xff]
    %v1347 = vld [vmem:[%s0 + $0x240] sm:$0xff]
    %v1348 = vld [vmem:[%s0 + $0x248] sm:$0xff]
    %v1349 = vld [vmem:[%s0 + $0x250] sm:$0xff]
    %v1350 = vld [vmem:[%s0 + $0x258] sm:$0xff]
    %v1351 = vld [vmem:[%s0 + $0x260] sm:$0xff]
    %v1352 = vld [vmem:[%s0 + $0x268] sm:$0xff]
    %v1353 = vld [vmem:[%s0 + $0x270] sm:$0xff]
    %v1354 = vld [vmem:[%s0 + $0x278] sm:$0xff]
    %v1355 = vld [vmem:[%s0 + $0x280] sm:$0xff]
    %v1356 = vld [vmem:[%s0 + $0x288] sm:$0xff]
    %v1357 = vld [vmem:[%s0 + $0x290] sm:$0xff]
    %v1358 = vld [vmem:[%s0 + $0x298] sm:$0xff]
    %v1360 = vsel %vm76, %v1331, 0
    %v1363 = vsel %vm76, %v1332, 0
    %v1366 = vsel %vm76, %v1333, 0
    %v1369 = vsel %vm76, %v1334, 0
    %v1372 = vsel %vm76, %v1335, 0
    %v1375 = vsel %vm76, %v1336, 0
    %v1378 = vsel %vm76, %v1337, 0
    %v1381 = vsel %vm76, %v1338, 0
    %v1384 = vsel %vm76, %v1339, 0
    %v1387 = vsel %vm76, %v1340, 0
    %v1390 = vsel %vm76, %v1341, 0
    %v1393 = vsel %vm76, %v1342, 0
    %v1396 = vsel %vm76, %v1343, 0
    %v1399 = vsel %vm76, %v1344, 0
    %v1402 = vsel %vm76, %v1345, 0
    %v1405 = vsel %vm76, %v1346, 0
    %v1408 = vsel %vm76, %v1347, 0
    %v1411 = vsel %vm76, %v1348, 0
    %v1414 = vsel %vm76, %v1349, 0
    %v1417 = vsel %vm76, %v1350, 0
    %v1420 = vsel %vm76, %v1351, 0
    %v1423 = vsel %vm76, %v1352, 0
    %v1426 = vsel %vm76, %v1353, 0
    %v1429 = vsel %vm76, %v1354, 0
    %v1432 = vsel %vm76, %v1355, 0
    %v1435 = vsel %vm76, %v1356, 0
    %v1438 = vsel %vm76, %v1357, 0
    %v1441 = vsel %vm76, %v1358, 0
    %1443 = vmatprep.subr.mxu0 0.0
    %1444 = vmatpush1.msra.mxu0 %v39
    %1445 = vmatprep.subr.mxu0 0.0
    %1446 = vmatpush1.msra.mxu0 %v163
    %1447 = vmatprep.subr.mxu0 0.0
    %1448 = vmatpush1.msra.mxu0 0.0
    %1449 = vmatprep.subr.mxu0 0.0
    %1450 = vmatpush1.msra.mxu0 0.0
    %1451 = vmatprep.subr.mxu0 0.0
    %1452 = vmatpush1.msra.mxu0 0.0
    %1453 = vmatprep.subr.mxu0 0.0
    %1454 = vmatpush1.msra.mxu0 0.0
    %1455 = vmatprep.subr.mxu0 0.0
    %1456 = vmatpush1.msra.mxu0 0.0
    %1457 = vmatprep.subr.mxu0 0.0
    %1458 = vmatpush1.msra.mxu0 0.0
    %1459 = vmatprep.subr.mxu0 0.0
    %1460 = vmatpush1.msra.mxu0 0.0
    %1461 = vmatprep.subr.mxu0 0.0
    %1462 = vmatpush1.msra.mxu0 0.0
    %1463 = vmatprep.subr.mxu0 0.0
    %1464 = vmatpush1.msra.mxu0 0.0
    %1465 = vmatprep.subr.mxu0 0.0
    %1466 = vmatpush1.msra.mxu0 0.0
    %1467 = vmatprep.subr.mxu0 0.0
    %1468 = vmatpush1.msra.mxu0 0.0
    %1469 = vmatprep.subr.mxu0 0.0
    %1470 = vmatpush1.msra.mxu0 0.0
    %1471 = vmatprep.subr.mxu0 0.0
    %1472 = vmatpush1.msra.mxu0 0.0
    %1473 = vmatprep.subr.mxu0 0.0
    %1474 = vmatpush1.msra.mxu0 0.0
    %1475 = vmatprep.subr.mxu0 0.0
    %1476 = vmatpush1.msra.mxu0 0.0
    %1477 = vmatprep.subr.mxu0 0.0
    %1478 = vmatpush1.msra.mxu0 0.0
    %1479 = vmatprep.subr.mxu0 0.0
    %1480 = vmatpush1.msra.mxu0 0.0
    %1481 = vmatprep.subr.mxu0 0.0
    %1482 = vmatpush1.msra.mxu0 0.0
    %1483 = vmatprep.subr.mxu0 0.0
    %1484 = vmatpush1.msra.mxu0 0.0
    %1485 = vmatprep.subr.mxu0 0.0
    %1486 = vmatpush1.msra.mxu0 0.0
    %1487 = vmatprep.subr.mxu0 0.0
    %1488 = vmatpush1.msra.mxu0 0.0
    %1489 = vmatprep.subr.mxu0 0.0
    %1490 = vmatpush1.msra.mxu0 0.0
    %1491 = vmatprep.subr.mxu0 0.0
    %1492 = vmatpush1.msra.mxu0 0.0
    %1493 = vmatprep.subr.mxu0 0.0
    %1494 = vmatpush1.msra.mxu0 0.0
    %1495 = vmatprep.subr.mxu0 0.0
    %1496 = vmatpush1.msra.mxu0 0.0
    %1497 = vmatprep.subr.mxu0 0.0
    %1498 = vmatpush1.msra.mxu0 0.0
    %1499 = vmatprep.subr.mxu0 0.0
    %1500 = vmatpush1.msra.mxu0 0.0
    %1501 = vmatprep.subr.mxu0 0.0
    %1502 = vmatpush1.msra.mxu0 0.0
    %1503 = vmatprep.subr.mxu0 0.0
    %1504 = vmatpush1.msra.mxu0 0.0
    %1505 = vmatprep.subr.mxu0 0.0
    %1506 = vmatpush1.msra.mxu0 0.0
    %1507 = vmatprep.mubr.f32.mxu0 0.0
    %1508 = vmatmul.mubr.f32.gmra.mrb[0].mxu0 %v1360
    %v1509 = vpop.f32.mrb[0].mxu0
    %v1510 = vadd.f32 %v74, %v1509
    %v1511 = vpop.f32.mrb[0].mxu0
    %1512 = vmatprep.mubr.f32.mxu0 0.0
    %1513 = vmatmul.mubr.f32.gmra.mrb[0].mxu0 %v1363
    %v1514 = vpop.f32.mrb[0].mxu0
    %v1515 = vadd.f32 %v74, %v1514
    %v1516 = vpop.f32.mrb[0].mxu0
    %1517 = vmatprep.mubr.f32.mxu0 0.0
    %1518 = vmatmul.mubr.f32.gmra.mrb[0].mxu0 %v1366
    %v1519 = vpop.f32.mrb[0].mxu0
    %v1520 = vadd.f32 %v74, %v1519
    %v1521 = vpop.f32.mrb[0].mxu0
    %1522 = vmatprep.mubr.f32.mxu0 0.0
    %1523 = vmatmul.mubr.f32.gmra.mrb[0].mxu0 %v1369
    %v1524 = vpop.f32.mrb[0].mxu0
    %v1525 = vadd.f32 %v74, %v1524
    %v1526 = vpop.f32.mrb[0].mxu0
    %1527 = vmatprep.mubr.f32.mxu0 0.0
    %1528 = vmatmul.mubr.f32.gmra.mrb[0].mxu0 %v1372
    %v1529 = vpop.f32.mrb[0].mxu0
    %v1530 = vadd.f32 %v74, %v1529
    %v1531 = vpop.f32.mrb[0].mxu0
    %1532 = vmatprep.mubr.f32.mxu0 0.0
    %1533 = vmatmul.mubr.f32.gmra.mrb[0].mxu0 %v1375
    %v1534 = vpop.f32.mrb[0].mxu0
    %v1535 = vadd.f32 %v74, %v1534
    %v1536 = vpop.f32.mrb[0].mxu0
    %1537 = vmatprep.mubr.f32.mxu0 0.0
    %1538 = vmatmul.mubr.f32.gmra.mrb[0].mxu0 %v1378
    %v1539 = vpop.f32.mrb[0].mxu0
    %v1540 = vadd.f32 %v74, %v1539
    %v1541 = vpop.f32.mrb[0].mxu0
    %1542 = vmatprep.mubr.f32.mxu0 0.0
    %1543 = vmatmul.mubr.f32.gmra.mrb[0].mxu0 %v1381
    %v1544 = vpop.f32.mrb[0].mxu0
    %v1545 = vadd.f32 %v74, %v1544
    %v1546 = vpop.f32.mrb[0].mxu0
    %1547 = vmatprep.mubr.f32.mxu0 0.0
    %1548 = vmatmul.mubr.f32.gmra.mrb[0].mxu0 %v1384
    %v1549 = vpop.f32.mrb[0].mxu0
    %v1550 = vadd.f32 %v74, %v1549
    %v1551 = vpop.f32.mrb[0].mxu0
    %1552 = vmatprep.mubr.f32.mxu0 0.0
    %1553 = vmatmul.mubr.f32.gmra.mrb[0].mxu0 %v1387
    %v1554 = vpop.f32.mrb[0].mxu0
    %v1555 = vadd.f32 %v74, %v1554
    %v1556 = vpop.f32.mrb[0].mxu0
    %1557 = vmatprep.mubr.f32.mxu0 0.0
    %1558 = vmatmul.mubr.f32.gmra.mrb[0].mxu0 %v1390
    %v1559 = vpop.f32.mrb[0].mxu0
    %v1560 = vadd.f32 %v74, %v1559
    %v1561 = vpop.f32.mrb[0].mxu0
    %1562 = vmatprep.mubr.f32.mxu0 0.0
    %1563 = vmatmul.mubr.f32.gmra.mrb[0].mxu0 %v1393
    %v1564 = vpop.f32.mrb[0].mxu0
    %v1565 = vadd.f32 %v74, %v1564
    %v1566 = vpop.f32.mrb[0].mxu0
    %1567 = vmatprep.mubr.f32.mxu0 0.0
    %1568 = vmatmul.mubr.f32.gmra.mrb[0].mxu0 %v1396
    %v1569 = vpop.f32.mrb[0].mxu0
    %v1570 = vadd.f32 %v74, %v1569
    %v1571 = vpop.f32.mrb[0].mxu0
    %1572 = vmatprep.mubr.f32.mxu0 0.0
    %1573 = vmatmul.mubr.f32.gmra.mrb[0].mxu0 %v1399
    %v1574 = vpop.f32.mrb[0].mxu0
    %v1575 = vadd.f32 %v74, %v1574
    %v1576 = vpop.f32.mrb[0].mxu0
    %1577 = vmatprep.mubr.f32.mxu0 0.0
    %1578 = vmatmul.mubr.f32.gmra.mrb[0].mxu0 %v1402
    %v1579 = vpop.f32.mrb[0].mxu0
    %v1580 = vadd.f32 %v74, %v1579
    %v1581 = vpop.f32.mrb[0].mxu0
    %1582 = vmatprep.mubr.f32.mxu0 0.0
    %1583 = vmatmul.mubr.f32.gmra.mrb[0].mxu0 %v1405
    %v1584 = vpop.f32.mrb[0].mxu0
    %v1585 = vadd.f32 %v74, %v1584
    %v1586 = vpop.f32.mrb[0].mxu0
    %1587 = vmatprep.mubr.f32.mxu0 0.0
    %1588 = vmatmul.mubr.f32.gmra.mrb[0].mxu0 %v1408
    %v1589 = vpop.f32.mrb[0].mxu0
    %v1590 = vadd.f32 %v74, %v1589
    %v1591 = vpop.f32.mrb[0].mxu0
    %1592 = vmatprep.mubr.f32.mxu0 0.0
    %1593 = vmatmul.mubr.f32.gmra.mrb[0].mxu0 %v1411
    %v1594 = vpop.f32.mrb[0].mxu0
    %v1595 = vadd.f32 %v74, %v1594
    %v1596 = vpop.f32.mrb[0].mxu0
    %1597 = vmatprep.mubr.f32.mxu0 0.0
    %1598 = vmatmul.mubr.f32.gmra.mrb[0].mxu0 %v1414
    %v1599 = vpop.f32.mrb[0].mxu0
    %v1600 = vadd.f32 %v74, %v1599
    %v1601 = vpop.f32.mrb[0].mxu0
    %1602 = vmatprep.mubr.f32.mxu0 0.0
    %1603 = vmatmul.mubr.f32.gmra.mrb[0].mxu0 %v1417
    %v1604 = vpop.f32.mrb[0].mxu0
    %v1605 = vadd.f32 %v74, %v1604
    %v1606 = vpop.f32.mrb[0].mxu0
    %1607 = vmatprep.mubr.f32.mxu0 0.0
    %1608 = vmatmul.mubr.f32.gmra.mrb[0].mxu0 %v1420
    %v1609 = vpop.f32.mrb[0].mxu0
    %v1610 = vadd.f32 %v74, %v1609
    %v1611 = vpop.f32.mrb[0].mxu0
    %1612 = vmatprep.mubr.f32.mxu0 0.0
    %1613 = vmatmul.mubr.f32.gmra.mrb[0].mxu0 %v1423
    %v1614 = vpop.f32.mrb[0].mxu0
    %v1615 = vadd.f32 %v74, %v1614
    %v1616 = vpop.f32.mrb[0].mxu0
    %1617 = vmatprep.mubr.f32.mxu0 0.0
    %1618 = vmatmul.mubr.f32.gmra.mrb[0].mxu0 %v1426
    %v1619 = vpop.f32.mrb[0].mxu0
    %v1620 = vadd.f32 %v74, %v1619
    %v1621 = vpop.f32.mrb[0].mxu0
    %1622 = vmatprep.mubr.f32.mxu0 0.0
    %1623 = vmatmul.mubr.f32.gmra.mrb[0].mxu0 %v1429
    %v1624 = vpop.f32.mrb[0].mxu0
    %v1625 = vadd.f32 %v74, %v1624
    %v1626 = vpop.f32.mrb[0].mxu0
    %1627 = vmatprep.mubr.f32.mxu0 0.0
    %1628 = vmatmul.mubr.f32.gmra.mrb[0].mxu0 %v1432
    %v1629 = vpop.f32.mrb[0].mxu0
    %v1630 = vadd.f32 %v74, %v1629
    %v1631 = vpop.f32.mrb[0].mxu0
    %1632 = vmatprep.mubr.f32.mxu0 0.0
    %1633 = vmatmul.mubr.f32.gmra.mrb[0].mxu0 %v1435
    %v1634 = vpop.f32.mrb[0].mxu0
    %v1635 = vadd.f32 %v74, %v1634
    %v1636 = vpop.f32.mrb[0].mxu0
    %1637 = vmatprep.mubr.f32.mxu0 0.0
    %1638 = vmatmul.mubr.f32.gmra.mrb[0].mxu0 %v1438
    %v1639 = vpop.f32.mrb[0].mxu0
    %v1640 = vadd.f32 %v74, %v1639
    %v1641 = vpop.f32.mrb[0].mxu0
    %1642 = vmatprep.mubr.f32.mxu0 0.0
    %1643 = vmatmul.mubr.f32.gmra.mrb[0].mxu0 %v1441
    %v1644 = vpop.f32.mrb[0].mxu0
    %v1645 = vadd.f32 %v74, %v1644
    %v1646 = vpop.f32.mrb[0].mxu0
    %1647 = vdwg.mxu0
    %v1648 = vmax.f32 %v1510, 0.0
    %v1649 = vmax.f32 %v1515, 0.0
    %v1650 = vmax.f32 %v1520, 0.0
    %v1651 = vmax.f32 %v1525, 0.0
    %v1652 = vmax.f32 %v1530, 0.0
    %v1653 = vmax.f32 %v1535, 0.0
    %v1654 = vmax.f32 %v1540, 0.0
    %v1655 = vmax.f32 %v1545, 0.0
    %v1656 = vmax.f32 %v1550, 0.0
    %v1657 = vmax.f32 %v1555, 0.0
    %v1658 = vmax.f32 %v1560, 0.0
    %v1659 = vmax.f32 %v1565, 0.0
    %v1660 = vmax.f32 %v1570, 0.0
    %v1661 = vmax.f32 %v1575, 0.0
    %v1662 = vmax.f32 %v1580, 0.0
    %v1663 = vmax.f32 %v1585, 0.0
    %v1664 = vmax.f32 %v1590, 0.0
    %v1665 = vmax.f32 %v1595, 0.0
    %v1666 = vmax.f32 %v1600, 0.0
    %v1667 = vmax.f32 %v1605, 0.0
    %v1668 = vmax.f32 %v1610, 0.0
    %v1669 = vmax.f32 %v1615, 0.0
    %v1670 = vmax.f32 %v1620, 0.0
    %v1671 = vmax.f32 %v1625, 0.0
    %v1672 = vmax.f32 %v1630, 0.0
    %v1673 = vmax.f32 %v1635, 0.0
    %v1674 = vmax.f32 %v1640, 0.0
    %v1675 = vmax.f32 %v1645, 0.0
    %s1676 = scalar_lea.vmem %s3, 8
    %v1677 = vld [vmem:[%s1676] sm:$0xf]
    %v1679 = vsel %vm746, %v1648, 0
    %v1682 = vsel %vm746, %v1649, 0
    %v1685 = vsel %vm746, %v1650, 0
    %v1688 = vsel %vm746, %v1651, 0
    %v1691 = vsel %vm746, %v1652, 0
    %v1694 = vsel %vm746, %v1653, 0
    %v1697 = vsel %vm746, %v1654, 0
    %v1700 = vsel %vm746, %v1655, 0
    %v1703 = vsel %vm746, %v1656, 0
    %v1706 = vsel %vm746, %v1657, 0
    %v1709 = vsel %vm746, %v1658, 0
    %v1712 = vsel %vm746, %v1659, 0
    %v1715 = vsel %vm746, %v1660, 0
    %v1718 = vsel %vm746, %v1661, 0
    %v1721 = vsel %vm746, %v1662, 0
    %v1724 = vsel %vm746, %v1663, 0
    %v1727 = vsel %vm746, %v1664, 0
    %v1730 = vsel %vm746, %v1665, 0
    %v1733 = vsel %vm746, %v1666, 0
    %v1736 = vsel %vm746, %v1667, 0
    %v1739 = vsel %vm746, %v1668, 0
    %v1742 = vsel %vm746, %v1669, 0
    %v1745 = vsel %vm746, %v1670, 0
    %v1748 = vsel %vm746, %v1671, 0
    %v1751 = vsel %vm746, %v1672, 0
    %v1754 = vsel %vm746, %v1673, 0
    %v1757 = vsel %vm746, %v1674, 0
    %v1760 = vsel %vm746, %v1675, 0
    %v1763 = vsel %vm161, %v1677, 0
    %1765 = vmatprep.subr.mxu0 0.0
    %1766 = vmatpush1.msra.mxu0 %v1763
    %1767 = vmatprep.subr.mxu0 0.0
    %1768 = vmatpush1.msra.mxu0 0.0
    %1769 = vmatprep.subr.mxu0 0.0
    %1770 = vmatpush1.msra.mxu0 0.0
    %1771 = vmatprep.subr.mxu0 0.0
    %1772 = vmatpush1.msra.mxu0 0.0
    %1773 = vmatprep.subr.mxu0 0.0
    %1774 = vmatpush1.msra.mxu0 0.0
    %1775 = vmatprep.subr.mxu0 0.0
    %1776 = vmatpush1.msra.mxu0 0.0
    %1777 = vmatprep.subr.mxu0 0.0
    %1778 = vmatpush1.msra.mxu0 0.0
    %1779 = vmatprep.subr.mxu0 0.0
    %1780 = vmatpush1.msra.mxu0 0.0
    %1781 = vmatprep.subr.mxu0 0.0
    %1782 = vmatpush1.msra.mxu0 0.0
    %1783 = vmatprep.subr.mxu0 0.0
    %1784 = vmatpush1.msra.mxu0 0.0
    %1785 = vmatprep.subr.mxu0 0.0
    %1786 = vmatpush1.msra.mxu0 0.0
    %1787 = vmatprep.subr.mxu0 0.0
    %1788 = vmatpush1.msra.mxu0 0.0
    %1789 = vmatprep.subr.mxu0 0.0
    %1790 = vmatpush1.msra.mxu0 0.0
    %1791 = vmatprep.subr.mxu0 0.0
    %1792 = vmatpush1.msra.mxu0 0.0
    %1793 = vmatprep.subr.mxu0 0.0
    %1794 = vmatpush1.msra.mxu0 0.0
    %1795 = vmatprep.subr.mxu0 0.0
    %1796 = vmatpush1.msra.mxu0 0.0
    %1797 = vmatprep.subr.mxu0 0.0
    %1798 = vmatpush1.msra.mxu0 0.0
    %1799 = vmatprep.subr.mxu0 0.0
    %1800 = vmatpush1.msra.mxu0 0.0
    %1801 = vmatprep.subr.mxu0 0.0
    %1802 = vmatpush1.msra.mxu0 0.0
    %1803 = vmatprep.subr.mxu0 0.0
    %1804 = vmatpush1.msra.mxu0 0.0
    %1805 = vmatprep.subr.mxu0 0.0
    %1806 = vmatpush1.msra.mxu0 0.0
    %1807 = vmatprep.subr.mxu0 0.0
    %1808 = vmatpush1.msra.mxu0 0.0
    %1809 = vmatprep.subr.mxu0 0.0
    %1810 = vmatpush1.msra.mxu0 0.0
    %1811 = vmatprep.subr.mxu0 0.0
    %1812 = vmatpush1.msra.mxu0 0.0
    %1813 = vmatprep.subr.mxu0 0.0
    %1814 = vmatpush1.msra.mxu0 0.0
    %1815 = vmatprep.subr.mxu0 0.0
    %1816 = vmatpush1.msra.mxu0 0.0
    %1817 = vmatprep.subr.mxu0 0.0
    %1818 = vmatpush1.msra.mxu0 0.0
    %1819 = vmatprep.subr.mxu0 0.0
    %1820 = vmatpush1.msra.mxu0 0.0
    %1821 = vmatprep.subr.mxu0 0.0
    %1822 = vmatpush1.msra.mxu0 0.0
    %1823 = vmatprep.subr.mxu0 0.0
    %1824 = vmatpush1.msra.mxu0 0.0
    %1825 = vmatprep.subr.mxu0 0.0
    %1826 = vmatpush1.msra.mxu0 0.0
    %1827 = vmatprep.subr.mxu0 0.0
    %1828 = vmatpush1.msra.mxu0 0.0
    %1829 = vmatprep.mubr.f32.mxu0 0.0
    %1830 = vmatmul.mubr.f32.gmra.mrb[0].mxu0 %v1679
    %v1831 = vpop.f32.mrb[0].mxu0
    %v1832 = vadd.f32 0.0, %v1831
    %v1833 = vpop.f32.mrb[0].mxu0
    %1834 = vmatprep.mubr.f32.mxu0 0.0
    %1835 = vmatmul.mubr.f32.gmra.mrb[0].mxu0 %v1682
    %v1836 = vpop.f32.mrb[0].mxu0
    %v1837 = vadd.f32 0.0, %v1836
    %v1838 = vpop.f32.mrb[0].mxu0
    %1839 = vmatprep.mubr.f32.mxu0 0.0
    %1840 = vmatmul.mubr.f32.gmra.mrb[0].mxu0 %v1685
    %v1841 = vpop.f32.mrb[0].mxu0
    %v1842 = vadd.f32 0.0, %v1841
    %v1843 = vpop.f32.mrb[0].mxu0
    %1844 = vmatprep.mubr.f32.mxu0 0.0
    %1845 = vmatmul.mubr.f32.gmra.mrb[0].mxu0 %v1688
    %v1846 = vpop.f32.mrb[0].mxu0
    %v1847 = vadd.f32 0.0, %v1846
    %v1848 = vpop.f32.mrb[0].mxu0
    %1849 = vmatprep.mubr.f32.mxu0 0.0
    %1850 = vmatmul.mubr.f32.gmra.mrb[0].mxu0 %v1691
    %v1851 = vpop.f32.mrb[0].mxu0
    %v1852 = vadd.f32 0.0, %v1851
    %v1853 = vpop.f32.mrb[0].mxu0
    %1854 = vmatprep.mubr.f32.mxu0 0.0
    %1855 = vmatmul.mubr.f32.gmra.mrb[0].mxu0 %v1694
    %v1856 = vpop.f32.mrb[0].mxu0
    %v1857 = vadd.f32 0.0, %v1856
    %v1858 = vpop.f32.mrb[0].mxu0
    %1859 = vmatprep.mubr.f32.mxu0 0.0
    %1860 = vmatmul.mubr.f32.gmra.mrb[0].mxu0 %v1697
    %v1861 = vpop.f32.mrb[0].mxu0
    %v1862 = vadd.f32 0.0, %v1861
    %v1863 = vpop.f32.mrb[0].mxu0
    %1864 = vmatprep.mubr.f32.mxu0 0.0
    %1865 = vmatmul.mubr.f32.gmra.mrb[0].mxu0 %v1700
    %v1866 = vpop.f32.mrb[0].mxu0
    %v1867 = vadd.f32 0.0, %v1866
    %v1868 = vpop.f32.mrb[0].mxu0
    %1869 = vmatprep.mubr.f32.mxu0 0.0
    %1870 = vmatmul.mubr.f32.gmra.mrb[0].mxu0 %v1703
    %v1871 = vpop.f32.mrb[0].mxu0
    %v1872 = vadd.f32 0.0, %v1871
    %v1873 = vpop.f32.mrb[0].mxu0
    %1874 = vmatprep.mubr.f32.mxu0 0.0
    %1875 = vmatmul.mubr.f32.gmra.mrb[0].mxu0 %v1706
    %v1876 = vpop.f32.mrb[0].mxu0
    %v1877 = vadd.f32 0.0, %v1876
    %v1878 = vpop.f32.mrb[0].mxu0
    %1879 = vmatprep.mubr.f32.mxu0 0.0
    %1880 = vmatmul.mubr.f32.gmra.mrb[0].mxu0 %v1709
    %v1881 = vpop.f32.mrb[0].mxu0
    %v1882 = vadd.f32 0.0, %v1881
    %v1883 = vpop.f32.mrb[0].mxu0
    %1884 = vmatprep.mubr.f32.mxu0 0.0
    %1885 = vmatmul.mubr.f32.gmra.mrb[0].mxu0 %v1712
    %v1886 = vpop.f32.mrb[0].mxu0
    %v1887 = vadd.f32 0.0, %v1886
    %v1888 = vpop.f32.mrb[0].mxu0
    %1889 = vmatprep.mubr.f32.mxu0 0.0
    %1890 = vmatmul.mubr.f32.gmra.mrb[0].mxu0 %v1715
    %v1891 = vpop.f32.mrb[0].mxu0
    %v1892 = vadd.f32 0.0, %v1891
    %v1893 = vpop.f32.mrb[0].mxu0
    %1894 = vmatprep.mubr.f32.mxu0 0.0
    %1895 = vmatmul.mubr.f32.gmra.mrb[0].mxu0 %v1718
    %v1896 = vpop.f32.mrb[0].mxu0
    %v1897 = vadd.f32 0.0, %v1896
    %v1898 = vpop.f32.mrb[0].mxu0
    %1899 = vmatprep.mubr.f32.mxu0 0.0
    %1900 = vmatmul.mubr.f32.gmra.mrb[0].mxu0 %v1721
    %v1901 = vpop.f32.mrb[0].mxu0
    %v1902 = vadd.f32 0.0, %v1901
    %v1903 = vpop.f32.mrb[0].mxu0
    %1904 = vmatprep.mubr.f32.mxu0 0.0
    %1905 = vmatmul.mubr.f32.gmra.mrb[0].mxu0 %v1724
    %v1906 = vpop.f32.mrb[0].mxu0
    %v1907 = vadd.f32 0.0, %v1906
    %v1908 = vpop.f32.mrb[0].mxu0
    %1909 = vmatprep.mubr.f32.mxu0 0.0
    %1910 = vmatmul.mubr.f32.gmra.mrb[0].mxu0 %v1727
    %v1911 = vpop.f32.mrb[0].mxu0
    %v1912 = vadd.f32 0.0, %v1911
    %v1913 = vpop.f32.mrb[0].mxu0
    %1914 = vmatprep.mubr.f32.mxu0 0.0
    %1915 = vmatmul.mubr.f32.gmra.mrb[0].mxu0 %v1730
    %v1916 = vpop.f32.mrb[0].mxu0
    %v1917 = vadd.f32 0.0, %v1916
    %v1918 = vpop.f32.mrb[0].mxu0
    %1919 = vmatprep.mubr.f32.mxu0 0.0
    %1920 = vmatmul.mubr.f32.gmra.mrb[0].mxu0 %v1733
    %v1921 = vpop.f32.mrb[0].mxu0
    %v1922 = vadd.f32 0.0, %v1921
    %v1923 = vpop.f32.mrb[0].mxu0
    %1924 = vmatprep.mubr.f32.mxu0 0.0
    %1925 = vmatmul.mubr.f32.gmra.mrb[0].mxu0 %v1736
    %v1926 = vpop.f32.mrb[0].mxu0
    %v1927 = vadd.f32 0.0, %v1926
    %v1928 = vpop.f32.mrb[0].mxu0
    %1929 = vmatprep.mubr.f32.mxu0 0.0
    %1930 = vmatmul.mubr.f32.gmra.mrb[0].mxu0 %v1739
    %v1931 = vpop.f32.mrb[0].mxu0
    %v1932 = vadd.f32 0.0, %v1931
    %v1933 = vpop.f32.mrb[0].mxu0
    %1934 = vmatprep.mubr.f32.mxu0 0.0
    %1935 = vmatmul.mubr.f32.gmra.mrb[0].mxu0 %v1742
    %v1936 = vpop.f32.mrb[0].mxu0
    %v1937 = vadd.f32 0.0, %v1936
    %v1938 = vpop.f32.mrb[0].mxu0
    %1939 = vmatprep.mubr.f32.mxu0 0.0
    %1940 = vmatmul.mubr.f32.gmra.mrb[0].mxu0 %v1745
    %v1941 = vpop.f32.mrb[0].mxu0
    %v1942 = vadd.f32 0.0, %v1941
    %v1943 = vpop.f32.mrb[0].mxu0
    %1944 = vmatprep.mubr.f32.mxu0 0.0
    %1945 = vmatmul.mubr.f32.gmra.mrb[0].mxu0 %v1748
    %v1946 = vpop.f32.mrb[0].mxu0
    %v1947 = vadd.f32 0.0, %v1946
    %v1948 = vpop.f32.mrb[0].mxu0
    %1949 = vmatprep.mubr.f32.mxu0 0.0
    %1950 = vmatmul.mubr.f32.gmra.mrb[0].mxu0 %v1751
    %v1951 = vpop.f32.mrb[0].mxu0
    %v1952 = vadd.f32 0.0, %v1951
    %v1953 = vpop.f32.mrb[0].mxu0
    %1954 = vmatprep.mubr.f32.mxu0 0.0
    %1955 = vmatmul.mubr.f32.gmra.mrb[0].mxu0 %v1754
    %v1956 = vpop.f32.mrb[0].mxu0
    %v1957 = vadd.f32 0.0, %v1956
    %v1958 = vpop.f32.mrb[0].mxu0
    %1959 = vmatprep.mubr.f32.mxu0 0.0
    %1960 = vmatmul.mubr.f32.gmra.mrb[0].mxu0 %v1757
    %v1961 = vpop.f32.mrb[0].mxu0
    %v1962 = vadd.f32 0.0, %v1961
    %v1963 = vpop.f32.mrb[0].mxu0
    %1964 = vmatprep.mubr.f32.mxu0 0.0
    %1965 = vmatmul.mubr.f32.gmra.mrb[0].mxu0 %v1760
    %v1966 = vpop.f32.mrb[0].mxu0
    %v1967 = vadd.f32 0.0, %v1966
    %v1968 = vpop.f32.mrb[0].mxu0
    %1969 = vdwg.mxu0
    %v1970 = vadd.f32 %v1193, %v1832
    %v1971 = vadd.f32 %v1198, %v1837
    %v1972 = vadd.f32 %v1203, %v1842
    %v1973 = vadd.f32 %v1208, %v1847
    %v1974 = vadd.f32 %v1213, %v1852
    %v1975 = vadd.f32 %v1218, %v1857
    %v1976 = vadd.f32 %v1223, %v1862
    %v1977 = vadd.f32 %v1228, %v1867
    %v1978 = vadd.f32 %v1233, %v1872
    %v1979 = vadd.f32 %v1238, %v1877
    %v1980 = vadd.f32 %v1243, %v1882
    %v1981 = vadd.f32 %v1248, %v1887
    %v1982 = vadd.f32 %v1253, %v1892
    %v1983 = vadd.f32 %v1258, %v1897
    %v1984 = vadd.f32 %v1263, %v1902
    %v1985 = vadd.f32 %v1268, %v1907
    %v1986 = vadd.f32 %v1273, %v1912
    %v1987 = vadd.f32 %v1278, %v1917
    %v1988 = vadd.f32 %v1283, %v1922
    %v1989 = vadd.f32 %v1288, %v1927
    %v1990 = vadd.f32 %v1293, %v1932
    %v1991 = vadd.f32 %v1298, %v1937
    %v1992 = vadd.f32 %v1303, %v1942
    %v1993 = vadd.f32 %v1308, %v1947
    %v1994 = vadd.f32 %v1313, %v1952
    %v1995 = vadd.f32 %v1318, %v1957
    %v1996 = vadd.f32 %v1323, %v1962
    %v1997 = vadd.f32 %v1328, %v1967
    %v1998 = vld [vmem:[%s0 + $0x2a0] sm:$0xff]
    %v1999 = vld [vmem:[%s0 + $0x2a8] sm:$0xff]
    %v2000 = vld [vmem:[%s0 + $0x2b0] sm:$0xff]
    %v2001 = vld [vmem:[%s0 + $0x2b8] sm:$0xff]
    %v2002 = vld [vmem:[%s0 + $0x2c0] sm:$0xff]
    %v2003 = vld [vmem:[%s0 + $0x2c8] sm:$0xff]
    %v2004 = vld [vmem:[%s0 + $0x2d0] sm:$0xff]
    %v2005 = vld [vmem:[%s0 + $0x2d8] sm:$0xff]
    %v2006 = vld [vmem:[%s0 + $0x2e0] sm:$0xff]
    %v2007 = vld [vmem:[%s0 + $0x2e8] sm:$0xff]
    %v2008 = vld [vmem:[%s0 + $0x2f0] sm:$0xff]
    %v2009 = vld [vmem:[%s0 + $0x2f8] sm:$0xff]
    %v2010 = vld [vmem:[%s0 + $0x300] sm:$0xff]
    %v2011 = vld [vmem:[%s0 + $0x308] sm:$0xff]
    %v2012 = vld [vmem:[%s0 + $0x310] sm:$0xff]
    %v2013 = vld [vmem:[%s0 + $0x318] sm:$0xff]
    %v2014 = vld [vmem:[%s0 + $0x320] sm:$0xff]
    %v2015 = vld [vmem:[%s0 + $0x328] sm:$0xff]
    %v2016 = vld [vmem:[%s0 + $0x330] sm:$0xff]
    %v2017 = vld [vmem:[%s0 + $0x338] sm:$0xff]
    %v2018 = vld [vmem:[%s0 + $0x340] sm:$0xff]
    %v2019 = vld [vmem:[%s0 + $0x348] sm:$0xff]
    %v2020 = vld [vmem:[%s0 + $0x350] sm:$0xff]
    %v2021 = vld [vmem:[%s0 + $0x358] sm:$0xff]
    %v2022 = vld [vmem:[%s0 + $0x360] sm:$0xff]
    %v2023 = vld [vmem:[%s0 + $0x368] sm:$0xff]
    %v2024 = vld [vmem:[%s0 + $0x370] sm:$0xff]
    %v2025 = vld [vmem:[%s0 + $0x378] sm:$0xff]
    %v2027 = vsel %vm76, %v1998, 0
    %v2030 = vsel %vm76, %v1999, 0
    %v2033 = vsel %vm76, %v2000, 0
    %v2036 = vsel %vm76, %v2001, 0
    %v2039 = vsel %vm76, %v2002, 0
    %v2042 = vsel %vm76, %v2003, 0
    %v2045 = vsel %vm76, %v2004, 0
    %v2048 = vsel %vm76, %v2005, 0
    %v2051 = vsel %vm76, %v2006, 0
    %v2054 = vsel %vm76, %v2007, 0
    %v2057 = vsel %vm76, %v2008, 0
    %v2060 = vsel %vm76, %v2009, 0
    %v2063 = vsel %vm76, %v2010, 0
    %v2066 = vsel %vm76, %v2011, 0
    %v2069 = vsel %vm76, %v2012, 0
    %v2072 = vsel %vm76, %v2013, 0
    %v2075 = vsel %vm76, %v2014, 0
    %v2078 = vsel %vm76, %v2015, 0
    %v2081 = vsel %vm76, %v2016, 0
    %v2084 = vsel %vm76, %v2017, 0
    %v2087 = vsel %vm76, %v2018, 0
    %v2090 = vsel %vm76, %v2019, 0
    %v2093 = vsel %vm76, %v2020, 0
    %v2096 = vsel %vm76, %v2021, 0
    %v2099 = vsel %vm76, %v2022, 0
    %v2102 = vsel %vm76, %v2023, 0
    %v2105 = vsel %vm76, %v2024, 0
    %v2108 = vsel %vm76, %v2025, 0
    %2110 = vmatprep.subr.mxu0 0.0
    %2111 = vmatpush1.msra.mxu0 %v39
    %2112 = vmatprep.subr.mxu0 0.0
    %2113 = vmatpush1.msra.mxu0 %v163
    %2114 = vmatprep.subr.mxu0 0.0
    %2115 = vmatpush1.msra.mxu0 0.0
    %2116 = vmatprep.subr.mxu0 0.0
    %2117 = vmatpush1.msra.mxu0 0.0
    %2118 = vmatprep.subr.mxu0 0.0
    %2119 = vmatpush1.msra.mxu0 0.0
    %2120 = vmatprep.subr.mxu0 0.0
    %2121 = vmatpush1.msra.mxu0 0.0
    %2122 = vmatprep.subr.mxu0 0.0
    %2123 = vmatpush1.msra.mxu0 0.0
    %2124 = vmatprep.subr.mxu0 0.0
    %2125 = vmatpush1.msra.mxu0 0.0
    %2126 = vmatprep.subr.mxu0 0.0
    %2127 = vmatpush1.msra.mxu0 0.0
    %2128 = vmatprep.subr.mxu0 0.0
    %2129 = vmatpush1.msra.mxu0 0.0
    %2130 = vmatprep.subr.mxu0 0.0
    %2131 = vmatpush1.msra.mxu0 0.0
    %2132 = vmatprep.subr.mxu0 0.0
    %2133 = vmatpush1.msra.mxu0 0.0
    %2134 = vmatprep.subr.mxu0 0.0
    %2135 = vmatpush1.msra.mxu0 0.0
    %2136 = vmatprep.subr.mxu0 0.0
    %2137 = vmatpush1.msra.mxu0 0.0
    %2138 = vmatprep.subr.mxu0 0.0
    %2139 = vmatpush1.msra.mxu0 0.0
    %2140 = vmatprep.subr.mxu0 0.0
    %2141 = vmatpush1.msra.mxu0 0.0
    %2142 = vmatprep.subr.mxu0 0.0
    %2143 = vmatpush1.msra.mxu0 0.0
    %2144 = vmatprep.subr.mxu0 0.0
    %2145 = vmatpush1.msra.mxu0 0.0
    %2146 = vmatprep.subr.mxu0 0.0
    %2147 = vmatpush1.msra.mxu0 0.0
    %2148 = vmatprep.subr.mxu0 0.0
    %2149 = vmatpush1.msra.mxu0 0.0
    %2150 = vmatprep.subr.mxu0 0.0
    %2151 = vmatpush1.msra.mxu0 0.0
    %2152 = vmatprep.subr.mxu0 0.0
    %2153 = vmatpush1.msra.mxu0 0.0
    %2154 = vmatprep.subr.mxu0 0.0
    %2155 = vmatpush1.msra.mxu0 0.0
    %2156 = vmatprep.subr.mxu0 0.0
    %2157 = vmatpush1.msra.mxu0 0.0
    %2158 = vmatprep.subr.mxu0 0.0
    %2159 = vmatpush1.msra.mxu0 0.0
    %2160 = vmatprep.subr.mxu0 0.0
    %2161 = vmatpush1.msra.mxu0 0.0
    %2162 = vmatprep.subr.mxu0 0.0
    %2163 = vmatpush1.msra.mxu0 0.0
    %2164 = vmatprep.subr.mxu0 0.0
    %2165 = vmatpush1.msra.mxu0 0.0
    %2166 = vmatprep.subr.mxu0 0.0
    %2167 = vmatpush1.msra.mxu0 0.0
    %2168 = vmatprep.subr.mxu0 0.0
    %2169 = vmatpush1.msra.mxu0 0.0
    %2170 = vmatprep.subr.mxu0 0.0
    %2171 = vmatpush1.msra.mxu0 0.0
    %2172 = vmatprep.subr.mxu0 0.0
    %2173 = vmatpush1.msra.mxu0 0.0
    %2174 = vmatprep.mubr.f32.mxu0 0.0
    %2175 = vmatmul.mubr.f32.gmra.mrb[0].mxu0 %v2027
    %v2176 = vpop.f32.mrb[0].mxu0
    %v2177 = vadd.f32 %v74, %v2176
    %v2178 = vpop.f32.mrb[0].mxu0
    %2179 = vmatprep.mubr.f32.mxu0 0.0
    %2180 = vmatmul.mubr.f32.gmra.mrb[0].mxu0 %v2030
    %v2181 = vpop.f32.mrb[0].mxu0
    %v2182 = vadd.f32 %v74, %v2181
    %v2183 = vpop.f32.mrb[0].mxu0
    %2184 = vmatprep.mubr.f32.mxu0 0.0
    %2185 = vmatmul.mubr.f32.gmra.mrb[0].mxu0 %v2033
    %v2186 = vpop.f32.mrb[0].mxu0
    %v2187 = vadd.f32 %v74, %v2186
    %v2188 = vpop.f32.mrb[0].mxu0
    %2189 = vmatprep.mubr.f32.mxu0 0.0
    %2190 = vmatmul.mubr.f32.gmra.mrb[0].mxu0 %v2036
    %v2191 = vpop.f32.mrb[0].mxu0
    %v2192 = vadd.f32 %v74, %v2191
    %v2193 = vpop.f32.mrb[0].mxu0
    %2194 = vmatprep.mubr.f32.mxu0 0.0
    %2195 = vmatmul.mubr.f32.gmra.mrb[0].mxu0 %v2039
    %v2196 = vpop.f32.mrb[0].mxu0
    %v2197 = vadd.f32 %v74, %v2196
    %v2198 = vpop.f32.mrb[0].mxu0
    %2199 = vmatprep.mubr.f32.mxu0 0.0
    %2200 = vmatmul.mubr.f32.gmra.mrb[0].mxu0 %v2042
    %v2201 = vpop.f32.mrb[0].mxu0
    %v2202 = vadd.f32 %v74, %v2201
    %v2203 = vpop.f32.mrb[0].mxu0
    %2204 = vmatprep.mubr.f32.mxu0 0.0
    %2205 = vmatmul.mubr.f32.gmra.mrb[0].mxu0 %v2045
    %v2206 = vpop.f32.mrb[0].mxu0
    %v2207 = vadd.f32 %v74, %v2206
    %v2208 = vpop.f32.mrb[0].mxu0
    %2209 = vmatprep.mubr.f32.mxu0 0.0
    %2210 = vmatmul.mubr.f32.gmra.mrb[0].mxu0 %v2048
    %v2211 = vpop.f32.mrb[0].mxu0
    %v2212 = vadd.f32 %v74, %v2211
    %v2213 = vpop.f32.mrb[0].mxu0
    %2214 = vmatprep.mubr.f32.mxu0 0.0
    %2215 = vmatmul.mubr.f32.gmra.mrb[0].mxu0 %v2051
    %v2216 = vpop.f32.mrb[0].mxu0
    %v2217 = vadd.f32 %v74, %v2216
    %v2218 = vpop.f32.mrb[0].mxu0
    %2219 = vmatprep.mubr.f32.mxu0 0.0
    %2220 = vmatmul.mubr.f32.gmra.mrb[0].mxu0 %v2054
    %v2221 = vpop.f32.mrb[0].mxu0
    %v2222 = vadd.f32 %v74, %v2221
    %v2223 = vpop.f32.mrb[0].mxu0
    %2224 = vmatprep.mubr.f32.mxu0 0.0
    %2225 = vmatmul.mubr.f32.gmra.mrb[0].mxu0 %v2057
    %v2226 = vpop.f32.mrb[0].mxu0
    %v2227 = vadd.f32 %v74, %v2226
    %v2228 = vpop.f32.mrb[0].mxu0
    %2229 = vmatprep.mubr.f32.mxu0 0.0
    %2230 = vmatmul.mubr.f32.gmra.mrb[0].mxu0 %v2060
    %v2231 = vpop.f32.mrb[0].mxu0
    %v2232 = vadd.f32 %v74, %v2231
    %v2233 = vpop.f32.mrb[0].mxu0
    %2234 = vmatprep.mubr.f32.mxu0 0.0
    %2235 = vmatmul.mubr.f32.gmra.mrb[0].mxu0 %v2063
    %v2236 = vpop.f32.mrb[0].mxu0
    %v2237 = vadd.f32 %v74, %v2236
    %v2238 = vpop.f32.mrb[0].mxu0
    %2239 = vmatprep.mubr.f32.mxu0 0.0
    %2240 = vmatmul.mubr.f32.gmra.mrb[0].mxu0 %v2066
    %v2241 = vpop.f32.mrb[0].mxu0
    %v2242 = vadd.f32 %v74, %v2241
    %v2243 = vpop.f32.mrb[0].mxu0
    %2244 = vmatprep.mubr.f32.mxu0 0.0
    %2245 = vmatmul.mubr.f32.gmra.mrb[0].mxu0 %v2069
    %v2246 = vpop.f32.mrb[0].mxu0
    %v2247 = vadd.f32 %v74, %v2246
    %v2248 = vpop.f32.mrb[0].mxu0
    %2249 = vmatprep.mubr.f32.mxu0 0.0
    %2250 = vmatmul.mubr.f32.gmra.mrb[0].mxu0 %v2072
    %v2251 = vpop.f32.mrb[0].mxu0
    %v2252 = vadd.f32 %v74, %v2251
    %v2253 = vpop.f32.mrb[0].mxu0
    %2254 = vmatprep.mubr.f32.mxu0 0.0
    %2255 = vmatmul.mubr.f32.gmra.mrb[0].mxu0 %v2075
    %v2256 = vpop.f32.mrb[0].mxu0
    %v2257 = vadd.f32 %v74, %v2256
    %v2258 = vpop.f32.mrb[0].mxu0
    %2259 = vmatprep.mubr.f32.mxu0 0.0
    %2260 = vmatmul.mubr.f32.gmra.mrb[0].mxu0 %v2078
    %v2261 = vpop.f32.mrb[0].mxu0
    %v2262 = vadd.f32 %v74, %v2261
    %v2263 = vpop.f32.mrb[0].mxu0
    %2264 = vmatprep.mubr.f32.mxu0 0.0
    %2265 = vmatmul.mubr.f32.gmra.mrb[0].mxu0 %v2081
    %v2266 = vpop.f32.mrb[0].mxu0
    %v2267 = vadd.f32 %v74, %v2266
    %v2268 = vpop.f32.mrb[0].mxu0
    %2269 = vmatprep.mubr.f32.mxu0 0.0
    %2270 = vmatmul.mubr.f32.gmra.mrb[0].mxu0 %v2084
    %v2271 = vpop.f32.mrb[0].mxu0
    %v2272 = vadd.f32 %v74, %v2271
    %v2273 = vpop.f32.mrb[0].mxu0
    %2274 = vmatprep.mubr.f32.mxu0 0.0
    %2275 = vmatmul.mubr.f32.gmra.mrb[0].mxu0 %v2087
    %v2276 = vpop.f32.mrb[0].mxu0
    %v2277 = vadd.f32 %v74, %v2276
    %v2278 = vpop.f32.mrb[0].mxu0
    %2279 = vmatprep.mubr.f32.mxu0 0.0
    %2280 = vmatmul.mubr.f32.gmra.mrb[0].mxu0 %v2090
    %v2281 = vpop.f32.mrb[0].mxu0
    %v2282 = vadd.f32 %v74, %v2281
    %v2283 = vpop.f32.mrb[0].mxu0
    %2284 = vmatprep.mubr.f32.mxu0 0.0
    %2285 = vmatmul.mubr.f32.gmra.mrb[0].mxu0 %v2093
    %v2286 = vpop.f32.mrb[0].mxu0
    %v2287 = vadd.f32 %v74, %v2286
    %v2288 = vpop.f32.mrb[0].mxu0
    %2289 = vmatprep.mubr.f32.mxu0 0.0
    %2290 = vmatmul.mubr.f32.gmra.mrb[0].mxu0 %v2096
    %v2291 = vpop.f32.mrb[0].mxu0
    %v2292 = vadd.f32 %v74, %v2291
    %v2293 = vpop.f32.mrb[0].mxu0
    %2294 = vmatprep.mubr.f32.mxu0 0.0
    %2295 = vmatmul.mubr.f32.gmra.mrb[0].mxu0 %v2099
    %v2296 = vpop.f32.mrb[0].mxu0
    %v2297 = vadd.f32 %v74, %v2296
    %v2298 = vpop.f32.mrb[0].mxu0
    %2299 = vmatprep.mubr.f32.mxu0 0.0
    %2300 = vmatmul.mubr.f32.gmra.mrb[0].mxu0 %v2102
    %v2301 = vpop.f32.mrb[0].mxu0
    %v2302 = vadd.f32 %v74, %v2301
    %v2303 = vpop.f32.mrb[0].mxu0
    %2304 = vmatprep.mubr.f32.mxu0 0.0
    %2305 = vmatmul.mubr.f32.gmra.mrb[0].mxu0 %v2105
    %v2306 = vpop.f32.mrb[0].mxu0
    %v2307 = vadd.f32 %v74, %v2306
    %v2308 = vpop.f32.mrb[0].mxu0
    %2309 = vmatprep.mubr.f32.mxu0 0.0
    %2310 = vmatmul.mubr.f32.gmra.mrb[0].mxu0 %v2108
    %v2311 = vpop.f32.mrb[0].mxu0
    %v2312 = vadd.f32 %v74, %v2311
    %v2313 = vpop.f32.mrb[0].mxu0
    %2314 = vdwg.mxu0
    %v2315 = vmax.f32 %v2177, 0.0
    %v2316 = vmax.f32 %v2182, 0.0
    %v2317 = vmax.f32 %v2187, 0.0
    %v2318 = vmax.f32 %v2192, 0.0
    %v2319 = vmax.f32 %v2197, 0.0
    %v2320 = vmax.f32 %v2202, 0.0
    %v2321 = vmax.f32 %v2207, 0.0
    %v2322 = vmax.f32 %v2212, 0.0
    %v2323 = vmax.f32 %v2217, 0.0
    %v2324 = vmax.f32 %v2222, 0.0
    %v2325 = vmax.f32 %v2227, 0.0
    %v2326 = vmax.f32 %v2232, 0.0
    %v2327 = vmax.f32 %v2237, 0.0
    %v2328 = vmax.f32 %v2242, 0.0
    %v2329 = vmax.f32 %v2247, 0.0
    %v2330 = vmax.f32 %v2252, 0.0
    %v2331 = vmax.f32 %v2257, 0.0
    %v2332 = vmax.f32 %v2262, 0.0
    %v2333 = vmax.f32 %v2267, 0.0
    %v2334 = vmax.f32 %v2272, 0.0
    %v2335 = vmax.f32 %v2277, 0.0
    %v2336 = vmax.f32 %v2282, 0.0
    %v2337 = vmax.f32 %v2287, 0.0
    %v2338 = vmax.f32 %v2292, 0.0
    %v2339 = vmax.f32 %v2297, 0.0
    %v2340 = vmax.f32 %v2302, 0.0
    %v2341 = vmax.f32 %v2307, 0.0
    %v2342 = vmax.f32 %v2312, 0.0
    %s2343 = scalar_lea.vmem %s3, 12
    %v2344 = vld [vmem:[%s2343] sm:$0xf]
    %v2346 = vsel %vm746, %v2315, 0
    %v2349 = vsel %vm746, %v2316, 0
    %v2352 = vsel %vm746, %v2317, 0
    %v2355 = vsel %vm746, %v2318, 0
    %v2358 = vsel %vm746, %v2319, 0
    %v2361 = vsel %vm746, %v2320, 0
    %v2364 = vsel %vm746, %v2321, 0
    %v2367 = vsel %vm746, %v2322, 0
    %v2370 = vsel %vm746, %v2323, 0
    %v2373 = vsel %vm746, %v2324, 0
    %v2376 = vsel %vm746, %v2325, 0
    %v2379 = vsel %vm746, %v2326, 0
    %v2382 = vsel %vm746, %v2327, 0
    %v2385 = vsel %vm746, %v2328, 0
    %v2388 = vsel %vm746, %v2329, 0
    %v2391 = vsel %vm746, %v2330, 0
    %v2394 = vsel %vm746, %v2331, 0
    %v2397 = vsel %vm746, %v2332, 0
    %v2400 = vsel %vm746, %v2333, 0
    %v2403 = vsel %vm746, %v2334, 0
    %v2406 = vsel %vm746, %v2335, 0
    %v2409 = vsel %vm746, %v2336, 0
    %v2412 = vsel %vm746, %v2337, 0
    %v2415 = vsel %vm746, %v2338, 0
    %v2418 = vsel %vm746, %v2339, 0
    %v2421 = vsel %vm746, %v2340, 0
    %v2424 = vsel %vm746, %v2341, 0
    %v2427 = vsel %vm746, %v2342, 0
    %v2430 = vsel %vm161, %v2344, 0
    %2432 = vmatprep.subr.mxu0 0.0
    %2433 = vmatpush1.msra.mxu0 %v2430
    %2434 = vmatprep.subr.mxu0 0.0
    %2435 = vmatpush1.msra.mxu0 0.0
    %2436 = vmatprep.subr.mxu0 0.0
    %2437 = vmatpush1.msra.mxu0 0.0
    %2438 = vmatprep.subr.mxu0 0.0
    %2439 = vmatpush1.msra.mxu0 0.0
    %2440 = vmatprep.subr.mxu0 0.0
    %2441 = vmatpush1.msra.mxu0 0.0
    %2442 = vmatprep.subr.mxu0 0.0
    %2443 = vmatpush1.msra.mxu0 0.0
    %2444 = vmatprep.subr.mxu0 0.0
    %2445 = vmatpush1.msra.mxu0 0.0
    %2446 = vmatprep.subr.mxu0 0.0
    %2447 = vmatpush1.msra.mxu0 0.0
    %2448 = vmatprep.subr.mxu0 0.0
    %2449 = vmatpush1.msra.mxu0 0.0
    %2450 = vmatprep.subr.mxu0 0.0
    %2451 = vmatpush1.msra.mxu0 0.0
    %2452 = vmatprep.subr.mxu0 0.0
    %2453 = vmatpush1.msra.mxu0 0.0
    %2454 = vmatprep.subr.mxu0 0.0
    %2455 = vmatpush1.msra.mxu0 0.0
    %2456 = vmatprep.subr.mxu0 0.0
    %2457 = vmatpush1.msra.mxu0 0.0
    %2458 = vmatprep.subr.mxu0 0.0
    %2459 = vmatpush1.msra.mxu0 0.0
    %2460 = vmatprep.subr.mxu0 0.0
    %2461 = vmatpush1.msra.mxu0 0.0
    %2462 = vmatprep.subr.mxu0 0.0
    %2463 = vmatpush1.msra.mxu0 0.0
    %2464 = vmatprep.subr.mxu0 0.0
    %2465 = vmatpush1.msra.mxu0 0.0
    %2466 = vmatprep.subr.mxu0 0.0
    %2467 = vmatpush1.msra.mxu0 0.0
    %2468 = vmatprep.subr.mxu0 0.0
    %2469 = vmatpush1.msra.mxu0 0.0
    %2470 = vmatprep.subr.mxu0 0.0
    %2471 = vmatpush1.msra.mxu0 0.0
    %2472 = vmatprep.subr.mxu0 0.0
    %2473 = vmatpush1.msra.mxu0 0.0
    %2474 = vmatprep.subr.mxu0 0.0
    %2475 = vmatpush1.msra.mxu0 0.0
    %2476 = vmatprep.subr.mxu0 0.0
    %2477 = vmatpush1.msra.mxu0 0.0
    %2478 = vmatprep.subr.mxu0 0.0
    %2479 = vmatpush1.msra.mxu0 0.0
    %2480 = vmatprep.subr.mxu0 0.0
    %2481 = vmatpush1.msra.mxu0 0.0
    %2482 = vmatprep.subr.mxu0 0.0
    %2483 = vmatpush1.msra.mxu0 0.0
    %2484 = vmatprep.subr.mxu0 0.0
    %2485 = vmatpush1.msra.mxu0 0.0
    %2486 = vmatprep.subr.mxu0 0.0
    %2487 = vmatpush1.msra.mxu0 0.0
    %2488 = vmatprep.subr.mxu0 0.0
    %2489 = vmatpush1.msra.mxu0 0.0
    %2490 = vmatprep.subr.mxu0 0.0
    %2491 = vmatpush1.msra.mxu0 0.0
    %2492 = vmatprep.subr.mxu0 0.0
    %2493 = vmatpush1.msra.mxu0 0.0
    %2494 = vmatprep.subr.mxu0 0.0
    %2495 = vmatpush1.msra.mxu0 0.0
    %2496 = vmatprep.mubr.f32.mxu0 0.0
    %2497 = vmatmul.mubr.f32.gmra.mrb[0].mxu0 %v2346
    %v2498 = vpop.f32.mrb[0].mxu0
    %v2499 = vadd.f32 0.0, %v2498
    %v2500 = vpop.f32.mrb[0].mxu0
    %2501 = vmatprep.mubr.f32.mxu0 0.0
    %2502 = vmatmul.mubr.f32.gmra.mrb[0].mxu0 %v2349
    %v2503 = vpop.f32.mrb[0].mxu0
    %v2504 = vadd.f32 0.0, %v2503
    %v2505 = vpop.f32.mrb[0].mxu0
    %2506 = vmatprep.mubr.f32.mxu0 0.0
    %2507 = vmatmul.mubr.f32.gmra.mrb[0].mxu0 %v2352
    %v2508 = vpop.f32.mrb[0].mxu0
    %v2509 = vadd.f32 0.0, %v2508
    %v2510 = vpop.f32.mrb[0].mxu0
    %2511 = vmatprep.mubr.f32.mxu0 0.0
    %2512 = vmatmul.mubr.f32.gmra.mrb[0].mxu0 %v2355
    %v2513 = vpop.f32.mrb[0].mxu0
    %v2514 = vadd.f32 0.0, %v2513
    %v2515 = vpop.f32.mrb[0].mxu0
    %2516 = vmatprep.mubr.f32.mxu0 0.0
    %2517 = vmatmul.mubr.f32.gmra.mrb[0].mxu0 %v2358
    %v2518 = vpop.f32.mrb[0].mxu0
    %v2519 = vadd.f32 0.0, %v2518
    %v2520 = vpop.f32.mrb[0].mxu0
    %2521 = vmatprep.mubr.f32.mxu0 0.0
    %2522 = vmatmul.mubr.f32.gmra.mrb[0].mxu0 %v2361
    %v2523 = vpop.f32.mrb[0].mxu0
    %v2524 = vadd.f32 0.0, %v2523
    %v2525 = vpop.f32.mrb[0].mxu0
    %2526 = vmatprep.mubr.f32.mxu0 0.0
    %2527 = vmatmul.mubr.f32.gmra.mrb[0].mxu0 %v2364
    %v2528 = vpop.f32.mrb[0].mxu0
    %v2529 = vadd.f32 0.0, %v2528
    %v2530 = vpop.f32.mrb[0].mxu0
    %2531 = vmatprep.mubr.f32.mxu0 0.0
    %2532 = vmatmul.mubr.f32.gmra.mrb[0].mxu0 %v2367
    %v2533 = vpop.f32.mrb[0].mxu0
    %v2534 = vadd.f32 0.0, %v2533
    %v2535 = vpop.f32.mrb[0].mxu0
    %2536 = vmatprep.mubr.f32.mxu0 0.0
    %2537 = vmatmul.mubr.f32.gmra.mrb[0].mxu0 %v2370
    %v2538 = vpop.f32.mrb[0].mxu0
    %v2539 = vadd.f32 0.0, %v2538
    %v2540 = vpop.f32.mrb[0].mxu0
    %2541 = vmatprep.mubr.f32.mxu0 0.0
    %2542 = vmatmul.mubr.f32.gmra.mrb[0].mxu0 %v2373
    %v2543 = vpop.f32.mrb[0].mxu0
    %v2544 = vadd.f32 0.0, %v2543
    %v2545 = vpop.f32.mrb[0].mxu0
    %2546 = vmatprep.mubr.f32.mxu0 0.0
    %2547 = vmatmul.mubr.f32.gmra.mrb[0].mxu0 %v2376
    %v2548 = vpop.f32.mrb[0].mxu0
    %v2549 = vadd.f32 0.0, %v2548
    %v2550 = vpop.f32.mrb[0].mxu0
    %2551 = vmatprep.mubr.f32.mxu0 0.0
    %2552 = vmatmul.mubr.f32.gmra.mrb[0].mxu0 %v2379
    %v2553 = vpop.f32.mrb[0].mxu0
    %v2554 = vadd.f32 0.0, %v2553
    %v2555 = vpop.f32.mrb[0].mxu0
    %2556 = vmatprep.mubr.f32.mxu0 0.0
    %2557 = vmatmul.mubr.f32.gmra.mrb[0].mxu0 %v2382
    %v2558 = vpop.f32.mrb[0].mxu0
    %v2559 = vadd.f32 0.0, %v2558
    %v2560 = vpop.f32.mrb[0].mxu0
    %2561 = vmatprep.mubr.f32.mxu0 0.0
    %2562 = vmatmul.mubr.f32.gmra.mrb[0].mxu0 %v2385
    %v2563 = vpop.f32.mrb[0].mxu0
    %v2564 = vadd.f32 0.0, %v2563
    %v2565 = vpop.f32.mrb[0].mxu0
    %2566 = vmatprep.mubr.f32.mxu0 0.0
    %2567 = vmatmul.mubr.f32.gmra.mrb[0].mxu0 %v2388
    %v2568 = vpop.f32.mrb[0].mxu0
    %v2569 = vadd.f32 0.0, %v2568
    %v2570 = vpop.f32.mrb[0].mxu0
    %2571 = vmatprep.mubr.f32.mxu0 0.0
    %2572 = vmatmul.mubr.f32.gmra.mrb[0].mxu0 %v2391
    %v2573 = vpop.f32.mrb[0].mxu0
    %v2574 = vadd.f32 0.0, %v2573
    %v2575 = vpop.f32.mrb[0].mxu0
    %2576 = vmatprep.mubr.f32.mxu0 0.0
    %2577 = vmatmul.mubr.f32.gmra.mrb[0].mxu0 %v2394
    %v2578 = vpop.f32.mrb[0].mxu0
    %v2579 = vadd.f32 0.0, %v2578
    %v2580 = vpop.f32.mrb[0].mxu0
    %2581 = vmatprep.mubr.f32.mxu0 0.0
    %2582 = vmatmul.mubr.f32.gmra.mrb[0].mxu0 %v2397
    %v2583 = vpop.f32.mrb[0].mxu0
    %v2584 = vadd.f32 0.0, %v2583
    %v2585 = vpop.f32.mrb[0].mxu0
    %2586 = vmatprep.mubr.f32.mxu0 0.0
    %2587 = vmatmul.mubr.f32.gmra.mrb[0].mxu0 %v2400
    %v2588 = vpop.f32.mrb[0].mxu0
    %v2589 = vadd.f32 0.0, %v2588
    %v2590 = vpop.f32.mrb[0].mxu0
    %2591 = vmatprep.mubr.f32.mxu0 0.0
    %2592 = vmatmul.mubr.f32.gmra.mrb[0].mxu0 %v2403
    %v2593 = vpop.f32.mrb[0].mxu0
    %v2594 = vadd.f32 0.0, %v2593
    %v2595 = vpop.f32.mrb[0].mxu0
    %2596 = vmatprep.mubr.f32.mxu0 0.0
    %2597 = vmatmul.mubr.f32.gmra.mrb[0].mxu0 %v2406
    %v2598 = vpop.f32.mrb[0].mxu0
    %v2599 = vadd.f32 0.0, %v2598
    %v2600 = vpop.f32.mrb[0].mxu0
    %2601 = vmatprep.mubr.f32.mxu0 0.0
    %2602 = vmatmul.mubr.f32.gmra.mrb[0].mxu0 %v2409
    %v2603 = vpop.f32.mrb[0].mxu0
    %v2604 = vadd.f32 0.0, %v2603
    %v2605 = vpop.f32.mrb[0].mxu0
    %2606 = vmatprep.mubr.f32.mxu0 0.0
    %2607 = vmatmul.mubr.f32.gmra.mrb[0].mxu0 %v2412
    %v2608 = vpop.f32.mrb[0].mxu0
    %v2609 = vadd.f32 0.0, %v2608
    %v2610 = vpop.f32.mrb[0].mxu0
    %2611 = vmatprep.mubr.f32.mxu0 0.0
    %2612 = vmatmul.mubr.f32.gmra.mrb[0].mxu0 %v2415
    %v2613 = vpop.f32.mrb[0].mxu0
    %v2614 = vadd.f32 0.0, %v2613
    %v2615 = vpop.f32.mrb[0].mxu0
    %2616 = vmatprep.mubr.f32.mxu0 0.0
    %2617 = vmatmul.mubr.f32.gmra.mrb[0].mxu0 %v2418
    %v2618 = vpop.f32.mrb[0].mxu0
    %v2619 = vadd.f32 0.0, %v2618
    %v2620 = vpop.f32.mrb[0].mxu0
    %2621 = vmatprep.mubr.f32.mxu0 0.0
    %2622 = vmatmul.mubr.f32.gmra.mrb[0].mxu0 %v2421
    %v2623 = vpop.f32.mrb[0].mxu0
    %v2624 = vadd.f32 0.0, %v2623
    %v2625 = vpop.f32.mrb[0].mxu0
    %2626 = vmatprep.mubr.f32.mxu0 0.0
    %2627 = vmatmul.mubr.f32.gmra.mrb[0].mxu0 %v2424
    %v2628 = vpop.f32.mrb[0].mxu0
    %v2629 = vadd.f32 0.0, %v2628
    %v2630 = vpop.f32.mrb[0].mxu0
    %2631 = vmatprep.mubr.f32.mxu0 0.0
    %2632 = vmatmul.mubr.f32.gmra.mrb[0].mxu0 %v2427
    %v2633 = vpop.f32.mrb[0].mxu0
    %v2634 = vadd.f32 0.0, %v2633
    %v2635 = vpop.f32.mrb[0].mxu0
    %2636 = vdwg.mxu0
    %v2637 = vadd.f32 %v1970, %v2499
    %v2638 = vadd.f32 %v1971, %v2504
    %v2639 = vadd.f32 %v1972, %v2509
    %v2640 = vadd.f32 %v1973, %v2514
    %v2641 = vadd.f32 %v1974, %v2519
    %v2642 = vadd.f32 %v1975, %v2524
    %v2643 = vadd.f32 %v1976, %v2529
    %v2644 = vadd.f32 %v1977, %v2534
    %v2645 = vadd.f32 %v1978, %v2539
    %v2646 = vadd.f32 %v1979, %v2544
    %v2647 = vadd.f32 %v1980, %v2549
    %v2648 = vadd.f32 %v1981, %v2554
    %v2649 = vadd.f32 %v1982, %v2559
    %v2650 = vadd.f32 %v1983, %v2564
    %v2651 = vadd.f32 %v1984, %v2569
    %v2652 = vadd.f32 %v1985, %v2574
    %v2653 = vadd.f32 %v1986, %v2579
    %v2654 = vadd.f32 %v1987, %v2584
    %v2655 = vadd.f32 %v1988, %v2589
    %v2656 = vadd.f32 %v1989, %v2594
    %v2657 = vadd.f32 %v1990, %v2599
    %v2658 = vadd.f32 %v1991, %v2604
    %v2659 = vadd.f32 %v1992, %v2609
    %v2660 = vadd.f32 %v1993, %v2614
    %v2661 = vadd.f32 %v1994, %v2619
    %v2662 = vadd.f32 %v1995, %v2624
    %v2663 = vadd.f32 %v1996, %v2629
    %v2664 = vadd.f32 %v1997, %v2634
    %v2665 = vld [vmem:[%s4] sm:$0x1]
    %v2667 = vlaneseq
    %v2668 = vshrl.u32 %v2667, 7
    %v2669 = vsub.s32 0, %v2668
    %v2670 = vrot.slane %v2665, %v2669
    %v2672 = vadd.f32 %v2637, %v2670
    %v2673 = vadd.f32 %v2638, %v2670
    %v2674 = vadd.f32 %v2639, %v2670
    %v2675 = vadd.f32 %v2640, %v2670
    %v2676 = vadd.f32 %v2641, %v2670
    %v2677 = vadd.f32 %v2642, %v2670
    %v2678 = vadd.f32 %v2643, %v2670
    %v2679 = vadd.f32 %v2644, %v2670
    %v2680 = vadd.f32 %v2645, %v2670
    %v2681 = vadd.f32 %v2646, %v2670
    %v2682 = vadd.f32 %v2647, %v2670
    %v2683 = vadd.f32 %v2648, %v2670
    %v2684 = vadd.f32 %v2649, %v2670
    %v2685 = vadd.f32 %v2650, %v2670
    %v2686 = vadd.f32 %v2651, %v2670
    %v2687 = vadd.f32 %v2652, %v2670
    %v2688 = vadd.f32 %v2653, %v2670
    %v2689 = vadd.f32 %v2654, %v2670
    %v2690 = vadd.f32 %v2655, %v2670
    %v2691 = vadd.f32 %v2656, %v2670
    %v2692 = vadd.f32 %v2657, %v2670
    %v2693 = vadd.f32 %v2658, %v2670
    %v2694 = vadd.f32 %v2659, %v2670
    %v2695 = vadd.f32 %v2660, %v2670
    %v2696 = vadd.f32 %v2661, %v2670
    %v2697 = vadd.f32 %v2662, %v2670
    %v2698 = vadd.f32 %v2663, %v2670
    %v2699 = vadd.f32 %v2664, %v2670
    %v2700 = vmax.f32 %v2672, 0.0
    %v2701 = vmax.f32 %v2673, 0.0
    %v2702 = vmax.f32 %v2674, 0.0
    %v2703 = vmax.f32 %v2675, 0.0
    %v2704 = vmax.f32 %v2676, 0.0
    %v2705 = vmax.f32 %v2677, 0.0
    %v2706 = vmax.f32 %v2678, 0.0
    %v2707 = vmax.f32 %v2679, 0.0
    %v2708 = vmax.f32 %v2680, 0.0
    %v2709 = vmax.f32 %v2681, 0.0
    %v2710 = vmax.f32 %v2682, 0.0
    %v2711 = vmax.f32 %v2683, 0.0
    %v2712 = vmax.f32 %v2684, 0.0
    %v2713 = vmax.f32 %v2685, 0.0
    %v2714 = vmax.f32 %v2686, 0.0
    %v2715 = vmax.f32 %v2687, 0.0
    %v2716 = vmax.f32 %v2688, 0.0
    %v2717 = vmax.f32 %v2689, 0.0
    %v2718 = vmax.f32 %v2690, 0.0
    %v2719 = vmax.f32 %v2691, 0.0
    %v2720 = vmax.f32 %v2692, 0.0
    %v2721 = vmax.f32 %v2693, 0.0
    %v2722 = vmax.f32 %v2694, 0.0
    %v2723 = vmax.f32 %v2695, 0.0
    %v2724 = vmax.f32 %v2696, 0.0
    %v2725 = vmax.f32 %v2697, 0.0
    %v2726 = vmax.f32 %v2698, 0.0
    %v2727 = vmax.f32 %v2699, 0.0
    %v2728 = vld [vmem:[%s5] sm:$0xff]
    %s2729 = scalar_lea.vmem %s5, 8
    %v2730 = vld [vmem:[%s2729] sm:$0xff]
    %vm2731 = vcmask 64512
    %v2733 = vsel %vm2731, %v2702, 0
    %v2736 = vsel %vm2731, %v2703, 0
    %2738 = vmatprep.subr.mxu0 0.0
    %2739 = vmatpush1.msra.mxu0 %v2730
    %2740 = vmatprep.subr.mxu0 0.0
    %2741 = vmatpush1.msra.mxu0 0.0
    %2742 = vmatprep.subr.mxu0 0.0
    %2743 = vmatpush1.msra.mxu0 0.0
    %2744 = vmatprep.subr.mxu0 0.0
    %2745 = vmatpush1.msra.mxu0 0.0
    %2746 = vmatprep.subr.mxu0 0.0
    %2747 = vmatpush1.msra.mxu0 0.0
    %2748 = vmatprep.subr.mxu0 0.0
    %2749 = vmatpush1.msra.mxu0 0.0
    %2750 = vmatprep.subr.mxu0 0.0
    %2751 = vmatpush1.msra.mxu0 0.0
    %2752 = vmatprep.subr.mxu0 0.0
    %2753 = vmatpush1.msra.mxu0 0.0
    %2754 = vmatprep.subr.mxu0 0.0
    %2755 = vmatpush1.msra.mxu0 0.0
    %2756 = vmatprep.subr.mxu0 0.0
    %2757 = vmatpush1.msra.mxu0 0.0
    %2758 = vmatprep.subr.mxu0 0.0
    %2759 = vmatpush1.msra.mxu0 0.0
    %2760 = vmatprep.subr.mxu0 0.0
    %2761 = vmatpush1.msra.mxu0 0.0
    %2762 = vmatprep.subr.mxu0 0.0
    %2763 = vmatpush1.msra.mxu0 0.0
    %2764 = vmatprep.subr.mxu0 0.0
    %2765 = vmatpush1.msra.mxu0 0.0
    %2766 = vmatprep.subr.mxu0 0.0
    %2767 = vmatpush1.msra.mxu0 0.0
    %2768 = vmatprep.subr.mxu0 0.0
    %2769 = vmatpush1.msra.mxu0 0.0
    %2770 = vmatprep.subr.mxu0 0.0
    %2771 = vmatpush1.msra.mxu0 0.0
    %2772 = vmatprep.subr.mxu0 0.0
    %2773 = vmatpush1.msra.mxu0 0.0
    %2774 = vmatprep.subr.mxu0 0.0
    %2775 = vmatpush1.msra.mxu0 0.0
    %2776 = vmatprep.subr.mxu0 0.0
    %2777 = vmatpush1.msra.mxu0 0.0
    %2778 = vmatprep.subr.mxu0 0.0
    %2779 = vmatpush1.msra.mxu0 0.0
    %2780 = vmatprep.subr.mxu0 0.0
    %2781 = vmatpush1.msra.mxu0 0.0
    %2782 = vmatprep.subr.mxu0 0.0
    %2783 = vmatpush1.msra.mxu0 0.0
    %2784 = vmatprep.subr.mxu0 0.0
    %2785 = vmatpush1.msra.mxu0 0.0
    %2786 = vmatprep.subr.mxu0 0.0
    %2787 = vmatpush1.msra.mxu0 0.0
    %2788 = vmatprep.subr.mxu0 0.0
    %2789 = vmatpush1.msra.mxu0 0.0
    %2790 = vmatprep.subr.mxu0 0.0
    %2791 = vmatpush1.msra.mxu0 0.0
    %2792 = vmatprep.subr.mxu0 0.0
    %2793 = vmatpush1.msra.mxu0 0.0
    %2794 = vmatprep.subr.mxu0 0.0
    %2795 = vmatpush1.msra.mxu0 0.0
    %2796 = vmatprep.subr.mxu0 0.0
    %2797 = vmatpush1.msra.mxu0 0.0
    %2798 = vmatprep.subr.mxu0 0.0
    %2799 = vmatpush1.msra.mxu0 0.0
    %2800 = vmatprep.subr.mxu0 0.0
    %2801 = vmatpush1.msra.mxu0 0.0
    %2802 = vmatprep.mubr.f32.mxu0 0.0
    %2803 = vmatmul.mubr.f32.gmra.mrb[0].mxu0 %v2733
    %v2804 = vpop.f32.mrb[0].mxu0
    %v2805 = vadd.f32 0.0, %v2804
    %v2806 = vpop.f32.mrb[0].mxu0
    %2807 = vmatprep.mubr.f32.mxu0 0.0
    %2808 = vmatmul.mubr.f32.gmra.mrb[0].mxu0 %v2736
    %v2809 = vpop.f32.mrb[0].mxu0
    %v2810 = vadd.f32 0.0, %v2809
    %v2811 = vpop.f32.mrb[0].mxu0
    %2812 = vdwg.mxu0
    %v2814 = vsel %vm2731, %v2700, 0
    %v2817 = vsel %vm2731, %v2701, 0
    %2819 = vmatprep.subr.mxu0 0.0
    %2820 = vmatpush1.msra.mxu0 %v2728
    %2821 = vmatprep.subr.mxu0 0.0
    %2822 = vmatpush1.msra.mxu0 0.0
    %2823 = vmatprep.subr.mxu0 0.0
    %2824 = vmatpush1.msra.mxu0 0.0
    %2825 = vmatprep.subr.mxu0 0.0
    %2826 = vmatpush1.msra.mxu0 0.0
    %2827 = vmatprep.subr.mxu0 0.0
    %2828 = vmatpush1.msra.mxu0 0.0
    %2829 = vmatprep.subr.mxu0 0.0
    %2830 = vmatpush1.msra.mxu0 0.0
    %2831 = vmatprep.subr.mxu0 0.0
    %2832 = vmatpush1.msra.mxu0 0.0
    %2833 = vmatprep.subr.mxu0 0.0
    %2834 = vmatpush1.msra.mxu0 0.0
    %2835 = vmatprep.subr.mxu0 0.0
    %2836 = vmatpush1.msra.mxu0 0.0
    %2837 = vmatprep.subr.mxu0 0.0
    %2838 = vmatpush1.msra.mxu0 0.0
    %2839 = vmatprep.subr.mxu0 0.0
    %2840 = vmatpush1.msra.mxu0 0.0
    %2841 = vmatprep.subr.mxu0 0.0
    %2842 = vmatpush1.msra.mxu0 0.0
    %2843 = vmatprep.subr.mxu0 0.0
    %2844 = vmatpush1.msra.mxu0 0.0
    %2845 = vmatprep.subr.mxu0 0.0
    %2846 = vmatpush1.msra.mxu0 0.0
    %2847 = vmatprep.subr.mxu0 0.0
    %2848 = vmatpush1.msra.mxu0 0.0
    %2849 = vmatprep.subr.mxu0 0.0
    %2850 = vmatpush1.msra.mxu0 0.0
    %2851 = vmatprep.subr.mxu0 0.0
    %2852 = vmatpush1.msra.mxu0 0.0
    %2853 = vmatprep.subr.mxu0 0.0
    %2854 = vmatpush1.msra.mxu0 0.0
    %2855 = vmatprep.subr.mxu0 0.0
    %2856 = vmatpush1.msra.mxu0 0.0
    %2857 = vmatprep.subr.mxu0 0.0
    %2858 = vmatpush1.msra.mxu0 0.0
    %2859 = vmatprep.subr.mxu0 0.0
    %2860 = vmatpush1.msra.mxu0 0.0
    %2861 = vmatprep.subr.mxu0 0.0
    %2862 = vmatpush1.msra.mxu0 0.0
    %2863 = vmatprep.subr.mxu0 0.0
    %2864 = vmatpush1.msra.mxu0 0.0
    %2865 = vmatprep.subr.mxu0 0.0
    %2866 = vmatpush1.msra.mxu0 0.0
    %2867 = vmatprep.subr.mxu0 0.0
    %2868 = vmatpush1.msra.mxu0 0.0
    %2869 = vmatprep.subr.mxu0 0.0
    %2870 = vmatpush1.msra.mxu0 0.0
    %2871 = vmatprep.subr.mxu0 0.0
    %2872 = vmatpush1.msra.mxu0 0.0
    %2873 = vmatprep.subr.mxu0 0.0
    %2874 = vmatpush1.msra.mxu0 0.0
    %2875 = vmatprep.subr.mxu0 0.0
    %2876 = vmatpush1.msra.mxu0 0.0
    %2877 = vmatprep.subr.mxu0 0.0
    %2878 = vmatpush1.msra.mxu0 0.0
    %2879 = vmatprep.subr.mxu0 0.0
    %2880 = vmatpush1.msra.mxu0 0.0
    %2881 = vmatprep.subr.mxu0 0.0
    %2882 = vmatpush1.msra.mxu0 0.0
    %2883 = vmatprep.mubr.f32.mxu0 0.0
    %2884 = vmatmul.mubr.f32.gmra.mrb[0].mxu0 %v2814
    %v2885 = vpop.f32.mrb[0].mxu0
    %v2886 = vadd.f32 %v2805, %v2885
    %v2887 = vpop.f32.mrb[0].mxu0
    %2888 = vmatprep.mubr.f32.mxu0 0.0
    %2889 = vmatmul.mubr.f32.gmra.mrb[0].mxu0 %v2817
    %v2890 = vpop.f32.mrb[0].mxu0
    %v2891 = vadd.f32 %v2810, %v2890
    %v2892 = vpop.f32.mrb[0].mxu0
    %2893 = vdwg.mxu0
    %s2894 = scalar_lea.vmem %s5, 16
    %v2895 = vld [vmem:[%s2894] sm:$0xff]
    %v2897 = vsel %vm2731, %v2704, 0
    %v2900 = vsel %vm2731, %v2705, 0
    %2902 = vmatprep.subr.mxu0 0.0
    %2903 = vmatpush1.msra.mxu0 %v2895
    %2904 = vmatprep.subr.mxu0 0.0
    %2905 = vmatpush1.msra.mxu0 0.0
    %2906 = vmatprep.subr.mxu0 0.0
    %2907 = vmatpush1.msra.mxu0 0.0
    %2908 = vmatprep.subr.mxu0 0.0
    %2909 = vmatpush1.msra.mxu0 0.0
    %2910 = vmatprep.subr.mxu0 0.0
    %2911 = vmatpush1.msra.mxu0 0.0
    %2912 = vmatprep.subr.mxu0 0.0
    %2913 = vmatpush1.msra.mxu0 0.0
    %2914 = vmatprep.subr.mxu0 0.0
    %2915 = vmatpush1.msra.mxu0 0.0
    %2916 = vmatprep.subr.mxu0 0.0
    %2917 = vmatpush1.msra.mxu0 0.0
    %2918 = vmatprep.subr.mxu0 0.0
    %2919 = vmatpush1.msra.mxu0 0.0
    %2920 = vmatprep.subr.mxu0 0.0
    %2921 = vmatpush1.msra.mxu0 0.0
    %2922 = vmatprep.subr.mxu0 0.0
    %2923 = vmatpush1.msra.mxu0 0.0
    %2924 = vmatprep.subr.mxu0 0.0
    %2925 = vmatpush1.msra.mxu0 0.0
    %2926 = vmatprep.subr.mxu0 0.0
    %2927 = vmatpush1.msra.mxu0 0.0
    %2928 = vmatprep.subr.mxu0 0.0
    %2929 = vmatpush1.msra.mxu0 0.0
    %2930 = vmatprep.subr.mxu0 0.0
    %2931 = vmatpush1.msra.mxu0 0.0
    %2932 = vmatprep.subr.mxu0 0.0
    %2933 = vmatpush1.msra.mxu0 0.0
    %2934 = vmatprep.subr.mxu0 0.0
    %2935 = vmatpush1.msra.mxu0 0.0
    %2936 = vmatprep.subr.mxu0 0.0
    %2937 = vmatpush1.msra.mxu0 0.0
    %2938 = vmatprep.subr.mxu0 0.0
    %2939 = vmatpush1.msra.mxu0 0.0
    %2940 = vmatprep.subr.mxu0 0.0
    %2941 = vmatpush1.msra.mxu0 0.0
    %2942 = vmatprep.subr.mxu0 0.0
    %2943 = vmatpush1.msra.mxu0 0.0
    %2944 = vmatprep.subr.mxu0 0.0
    %2945 = vmatpush1.msra.mxu0 0.0
    %2946 = vmatprep.subr.mxu0 0.0
    %2947 = vmatpush1.msra.mxu0 0.0
    %2948 = vmatprep.subr.mxu0 0.0
    %2949 = vmatpush1.msra.mxu0 0.0
    %2950 = vmatprep.subr.mxu0 0.0
    %2951 = vmatpush1.msra.mxu0 0.0
    %2952 = vmatprep.subr.mxu0 0.0
    %2953 = vmatpush1.msra.mxu0 0.0
    %2954 = vmatprep.subr.mxu0 0.0
    %2955 = vmatpush1.msra.mxu0 0.0
    %2956 = vmatprep.subr.mxu0 0.0
    %2957 = vmatpush1.msra.mxu0 0.0
    %2958 = vmatprep.subr.mxu0 0.0
    %2959 = vmatpush1.msra.mxu0 0.0
    %2960 = vmatprep.subr.mxu0 0.0
    %2961 = vmatpush1.msra.mxu0 0.0
    %2962 = vmatprep.subr.mxu0 0.0
    %2963 = vmatpush1.msra.mxu0 0.0
    %2964 = vmatprep.subr.mxu0 0.0
    %2965 = vmatpush1.msra.mxu0 0.0
    %2966 = vmatprep.mubr.f32.mxu0 0.0
    %2967 = vmatmul.mubr.f32.gmra.mrb[0].mxu0 %v2897
    %v2968 = vpop.f32.mrb[0].mxu0
    %v2969 = vadd.f32 0.0, %v2968
    %v2970 = vpop.f32.mrb[0].mxu0
    %2971 = vmatprep.mubr.f32.mxu0 0.0
    %2972 = vmatmul.mubr.f32.gmra.mrb[0].mxu0 %v2900
    %v2973 = vpop.f32.mrb[0].mxu0
    %v2974 = vadd.f32 0.0, %v2973
    %v2975 = vpop.f32.mrb[0].mxu0
    %2976 = vdwg.mxu0
    %v2977 = vadd.f32 %v2886, %v2969
    %v2978 = vadd.f32 %v2891, %v2974
    %s2979 = scalar_lea.vmem %s5, 24
    %v2980 = vld [vmem:[%s2979] sm:$0xff]
    %v2982 = vsel %vm2731, %v2706, 0
    %v2985 = vsel %vm2731, %v2707, 0
    %2987 = vmatprep.subr.mxu0 0.0
    %2988 = vmatpush1.msra.mxu0 %v2980
    %2989 = vmatprep.subr.mxu0 0.0
    %2990 = vmatpush1.msra.mxu0 0.0
    %2991 = vmatprep.subr.mxu0 0.0
    %2992 = vmatpush1.msra.mxu0 0.0
    %2993 = vmatprep.subr.mxu0 0.0
    %2994 = vmatpush1.msra.mxu0 0.0
    %2995 = vmatprep.subr.mxu0 0.0
    %2996 = vmatpush1.msra.mxu0 0.0
    %2997 = vmatprep.subr.mxu0 0.0
    %2998 = vmatpush1.msra.mxu0 0.0
    %2999 = vmatprep.subr.mxu0 0.0
    %3000 = vmatpush1.msra.mxu0 0.0
    %3001 = vmatprep.subr.mxu0 0.0
    %3002 = vmatpush1.msra.mxu0 0.0
    %3003 = vmatprep.subr.mxu0 0.0
    %3004 = vmatpush1.msra.mxu0 0.0
    %3005 = vmatprep.subr.mxu0 0.0
    %3006 = vmatpush1.msra.mxu0 0.0
    %3007 = vmatprep.subr.mxu0 0.0
    %3008 = vmatpush1.msra.mxu0 0.0
    %3009 = vmatprep.subr.mxu0 0.0
    %3010 = vmatpush1.msra.mxu0 0.0
    %3011 = vmatprep.subr.mxu0 0.0
    %3012 = vmatpush1.msra.mxu0 0.0
    %3013 = vmatprep.subr.mxu0 0.0
    %3014 = vmatpush1.msra.mxu0 0.0
    %3015 = vmatprep.subr.mxu0 0.0
    %3016 = vmatpush1.msra.mxu0 0.0
    %3017 = vmatprep.subr.mxu0 0.0
    %3018 = vmatpush1.msra.mxu0 0.0
    %3019 = vmatprep.subr.mxu0 0.0
    %3020 = vmatpush1.msra.mxu0 0.0
    %3021 = vmatprep.subr.mxu0 0.0
    %3022 = vmatpush1.msra.mxu0 0.0
    %3023 = vmatprep.subr.mxu0 0.0
    %3024 = vmatpush1.msra.mxu0 0.0
    %3025 = vmatprep.subr.mxu0 0.0
    %3026 = vmatpush1.msra.mxu0 0.0
    %3027 = vmatprep.subr.mxu0 0.0
    %3028 = vmatpush1.msra.mxu0 0.0
    %3029 = vmatprep.subr.mxu0 0.0
    %3030 = vmatpush1.msra.mxu0 0.0
    %3031 = vmatprep.subr.mxu0 0.0
    %3032 = vmatpush1.msra.mxu0 0.0
    %3033 = vmatprep.subr.mxu0 0.0
    %3034 = vmatpush1.msra.mxu0 0.0
    %3035 = vmatprep.subr.mxu0 0.0
    %3036 = vmatpush1.msra.mxu0 0.0
    %3037 = vmatprep.subr.mxu0 0.0
    %3038 = vmatpush1.msra.mxu0 0.0
    %3039 = vmatprep.subr.mxu0 0.0
    %3040 = vmatpush1.msra.mxu0 0.0
    %3041 = vmatprep.subr.mxu0 0.0
    %3042 = vmatpush1.msra.mxu0 0.0
    %3043 = vmatprep.subr.mxu0 0.0
    %3044 = vmatpush1.msra.mxu0 0.0
    %3045 = vmatprep.subr.mxu0 0.0
    %3046 = vmatpush1.msra.mxu0 0.0
    %3047 = vmatprep.subr.mxu0 0.0
    %3048 = vmatpush1.msra.mxu0 0.0
    %3049 = vmatprep.subr.mxu0 0.0
    %3050 = vmatpush1.msra.mxu0 0.0
    %3051 = vmatprep.mubr.f32.mxu0 0.0
    %3052 = vmatmul.mubr.f32.gmra.mrb[0].mxu0 %v2982
    %v3053 = vpop.f32.mrb[0].mxu0
    %v3054 = vadd.f32 0.0, %v3053
    %v3055 = vpop.f32.mrb[0].mxu0
    %3056 = vmatprep.mubr.f32.mxu0 0.0
    %3057 = vmatmul.mubr.f32.gmra.mrb[0].mxu0 %v2985
    %v3058 = vpop.f32.mrb[0].mxu0
    %v3059 = vadd.f32 0.0, %v3058
    %v3060 = vpop.f32.mrb[0].mxu0
    %3061 = vdwg.mxu0
    %v3062 = vadd.f32 %v2977, %v3054
    %v3063 = vadd.f32 %v2978, %v3059
    %s3064 = scalar_lea.vmem %s5, 32
    %v3065 = vld [vmem:[%s3064] sm:$0xff]
    %v3067 = vsel %vm2731, %v2708, 0
    %v3070 = vsel %vm2731, %v2709, 0
    %3072 = vmatprep.subr.mxu0 0.0
    %3073 = vmatpush1.msra.mxu0 %v3065
    %3074 = vmatprep.subr.mxu0 0.0
    %3075 = vmatpush1.msra.mxu0 0.0
    %3076 = vmatprep.subr.mxu0 0.0
    %3077 = vmatpush1.msra.mxu0 0.0
    %3078 = vmatprep.subr.mxu0 0.0
    %3079 = vmatpush1.msra.mxu0 0.0
    %3080 = vmatprep.subr.mxu0 0.0
    %3081 = vmatpush1.msra.mxu0 0.0
    %3082 = vmatprep.subr.mxu0 0.0
    %3083 = vmatpush1.msra.mxu0 0.0
    %3084 = vmatprep.subr.mxu0 0.0
    %3085 = vmatpush1.msra.mxu0 0.0
    %3086 = vmatprep.subr.mxu0 0.0
    %3087 = vmatpush1.msra.mxu0 0.0
    %3088 = vmatprep.subr.mxu0 0.0
    %3089 = vmatpush1.msra.mxu0 0.0
    %3090 = vmatprep.subr.mxu0 0.0
    %3091 = vmatpush1.msra.mxu0 0.0
    %3092 = vmatprep.subr.mxu0 0.0
    %3093 = vmatpush1.msra.mxu0 0.0
    %3094 = vmatprep.subr.mxu0 0.0
    %3095 = vmatpush1.msra.mxu0 0.0
    %3096 = vmatprep.subr.mxu0 0.0
    %3097 = vmatpush1.msra.mxu0 0.0
    %3098 = vmatprep.subr.mxu0 0.0
    %3099 = vmatpush1.msra.mxu0 0.0
    %3100 = vmatprep.subr.mxu0 0.0
    %3101 = vmatpush1.msra.mxu0 0.0
    %3102 = vmatprep.subr.mxu0 0.0
    %3103 = vmatpush1.msra.mxu0 0.0
    %3104 = vmatprep.subr.mxu0 0.0
    %3105 = vmatpush1.msra.mxu0 0.0
    %3106 = vmatprep.subr.mxu0 0.0
    %3107 = vmatpush1.msra.mxu0 0.0
    %3108 = vmatprep.subr.mxu0 0.0
    %3109 = vmatpush1.msra.mxu0 0.0
    %3110 = vmatprep.subr.mxu0 0.0
    %3111 = vmatpush1.msra.mxu0 0.0
    %3112 = vmatprep.subr.mxu0 0.0
    %3113 = vmatpush1.msra.mxu0 0.0
    %3114 = vmatprep.subr.mxu0 0.0
    %3115 = vmatpush1.msra.mxu0 0.0
    %3116 = vmatprep.subr.mxu0 0.0
    %3117 = vmatpush1.msra.mxu0 0.0
    %3118 = vmatprep.subr.mxu0 0.0
    %3119 = vmatpush1.msra.mxu0 0.0
    %3120 = vmatprep.subr.mxu0 0.0
    %3121 = vmatpush1.msra.mxu0 0.0
    %3122 = vmatprep.subr.mxu0 0.0
    %3123 = vmatpush1.msra.mxu0 0.0
    %3124 = vmatprep.subr.mxu0 0.0
    %3125 = vmatpush1.msra.mxu0 0.0
    %3126 = vmatprep.subr.mxu0 0.0
    %3127 = vmatpush1.msra.mxu0 0.0
    %3128 = vmatprep.subr.mxu0 0.0
    %3129 = vmatpush1.msra.mxu0 0.0
    %3130 = vmatprep.subr.mxu0 0.0
    %3131 = vmatpush1.msra.mxu0 0.0
    %3132 = vmatprep.subr.mxu0 0.0
    %3133 = vmatpush1.msra.mxu0 0.0
    %3134 = vmatprep.subr.mxu0 0.0
    %3135 = vmatpush1.msra.mxu0 0.0
    %3136 = vmatprep.mubr.f32.mxu0 0.0
    %3137 = vmatmul.mubr.f32.gmra.mrb[0].mxu0 %v3067
    %v3138 = vpop.f32.mrb[0].mxu0
    %v3139 = vadd.f32 0.0, %v3138
    %v3140 = vpop.f32.mrb[0].mxu0
    %3141 = vmatprep.mubr.f32.mxu0 0.0
    %3142 = vmatmul.mubr.f32.gmra.mrb[0].mxu0 %v3070
    %v3143 = vpop.f32.mrb[0].mxu0
    %v3144 = vadd.f32 0.0, %v3143
    %v3145 = vpop.f32.mrb[0].mxu0
    %3146 = vdwg.mxu0
    %v3147 = vadd.f32 %v3062, %v3139
    %v3148 = vadd.f32 %v3063, %v3144
    %s3149 = scalar_lea.vmem %s5, 40
    %v3150 = vld [vmem:[%s3149] sm:$0xff]
    %v3152 = vsel %vm2731, %v2710, 0
    %v3155 = vsel %vm2731, %v2711, 0
    %3157 = vmatprep.subr.mxu0 0.0
    %3158 = vmatpush1.msra.mxu0 %v3150
    %3159 = vmatprep.subr.mxu0 0.0
    %3160 = vmatpush1.msra.mxu0 0.0
    %3161 = vmatprep.subr.mxu0 0.0
    %3162 = vmatpush1.msra.mxu0 0.0
    %3163 = vmatprep.subr.mxu0 0.0
    %3164 = vmatpush1.msra.mxu0 0.0
    %3165 = vmatprep.subr.mxu0 0.0
    %3166 = vmatpush1.msra.mxu0 0.0
    %3167 = vmatprep.subr.mxu0 0.0
    %3168 = vmatpush1.msra.mxu0 0.0
    %3169 = vmatprep.subr.mxu0 0.0
    %3170 = vmatpush1.msra.mxu0 0.0
    %3171 = vmatprep.subr.mxu0 0.0
    %3172 = vmatpush1.msra.mxu0 0.0
    %3173 = vmatprep.subr.mxu0 0.0
    %3174 = vmatpush1.msra.mxu0 0.0
    %3175 = vmatprep.subr.mxu0 0.0
    %3176 = vmatpush1.msra.mxu0 0.0
    %3177 = vmatprep.subr.mxu0 0.0
    %3178 = vmatpush1.msra.mxu0 0.0
    %3179 = vmatprep.subr.mxu0 0.0
    %3180 = vmatpush1.msra.mxu0 0.0
    %3181 = vmatprep.subr.mxu0 0.0
    %3182 = vmatpush1.msra.mxu0 0.0
    %3183 = vmatprep.subr.mxu0 0.0
    %3184 = vmatpush1.msra.mxu0 0.0
    %3185 = vmatprep.subr.mxu0 0.0
    %3186 = vmatpush1.msra.mxu0 0.0
    %3187 = vmatprep.subr.mxu0 0.0
    %3188 = vmatpush1.msra.mxu0 0.0
    %3189 = vmatprep.subr.mxu0 0.0
    %3190 = vmatpush1.msra.mxu0 0.0
    %3191 = vmatprep.subr.mxu0 0.0
    %3192 = vmatpush1.msra.mxu0 0.0
    %3193 = vmatprep.subr.mxu0 0.0
    %3194 = vmatpush1.msra.mxu0 0.0
    %3195 = vmatprep.subr.mxu0 0.0
    %3196 = vmatpush1.msra.mxu0 0.0
    %3197 = vmatprep.subr.mxu0 0.0
    %3198 = vmatpush1.msra.mxu0 0.0
    %3199 = vmatprep.subr.mxu0 0.0
    %3200 = vmatpush1.msra.mxu0 0.0
    %3201 = vmatprep.subr.mxu0 0.0
    %3202 = vmatpush1.msra.mxu0 0.0
    %3203 = vmatprep.subr.mxu0 0.0
    %3204 = vmatpush1.msra.mxu0 0.0
    %3205 = vmatprep.subr.mxu0 0.0
    %3206 = vmatpush1.msra.mxu0 0.0
    %3207 = vmatprep.subr.mxu0 0.0
    %3208 = vmatpush1.msra.mxu0 0.0
    %3209 = vmatprep.subr.mxu0 0.0
    %3210 = vmatpush1.msra.mxu0 0.0
    %3211 = vmatprep.subr.mxu0 0.0
    %3212 = vmatpush1.msra.mxu0 0.0
    %3213 = vmatprep.subr.mxu0 0.0
    %3214 = vmatpush1.msra.mxu0 0.0
    %3215 = vmatprep.subr.mxu0 0.0
    %3216 = vmatpush1.msra.mxu0 0.0
    %3217 = vmatprep.subr.mxu0 0.0
    %3218 = vmatpush1.msra.mxu0 0.0
    %3219 = vmatprep.subr.mxu0 0.0
    %3220 = vmatpush1.msra.mxu0 0.0
    %3221 = vmatprep.mubr.f32.mxu0 0.0
    %3222 = vmatmul.mubr.f32.gmra.mrb[0].mxu0 %v3152
    %v3223 = vpop.f32.mrb[0].mxu0
    %v3224 = vadd.f32 0.0, %v3223
    %v3225 = vpop.f32.mrb[0].mxu0
    %3226 = vmatprep.mubr.f32.mxu0 0.0
    %3227 = vmatmul.mubr.f32.gmra.mrb[0].mxu0 %v3155
    %v3228 = vpop.f32.mrb[0].mxu0
    %v3229 = vadd.f32 0.0, %v3228
    %v3230 = vpop.f32.mrb[0].mxu0
    %3231 = vdwg.mxu0
    %v3232 = vadd.f32 %v3147, %v3224
    %v3233 = vadd.f32 %v3148, %v3229
    %s3234 = scalar_lea.vmem %s5, 48
    %v3235 = vld [vmem:[%s3234] sm:$0xff]
    %v3237 = vsel %vm2731, %v2712, 0
    %v3240 = vsel %vm2731, %v2713, 0
    %3242 = vmatprep.subr.mxu0 0.0
    %3243 = vmatpush1.msra.mxu0 %v3235
    %3244 = vmatprep.subr.mxu0 0.0
    %3245 = vmatpush1.msra.mxu0 0.0
    %3246 = vmatprep.subr.mxu0 0.0
    %3247 = vmatpush1.msra.mxu0 0.0
    %3248 = vmatprep.subr.mxu0 0.0
    %3249 = vmatpush1.msra.mxu0 0.0
    %3250 = vmatprep.subr.mxu0 0.0
    %3251 = vmatpush1.msra.mxu0 0.0
    %3252 = vmatprep.subr.mxu0 0.0
    %3253 = vmatpush1.msra.mxu0 0.0
    %3254 = vmatprep.subr.mxu0 0.0
    %3255 = vmatpush1.msra.mxu0 0.0
    %3256 = vmatprep.subr.mxu0 0.0
    %3257 = vmatpush1.msra.mxu0 0.0
    %3258 = vmatprep.subr.mxu0 0.0
    %3259 = vmatpush1.msra.mxu0 0.0
    %3260 = vmatprep.subr.mxu0 0.0
    %3261 = vmatpush1.msra.mxu0 0.0
    %3262 = vmatprep.subr.mxu0 0.0
    %3263 = vmatpush1.msra.mxu0 0.0
    %3264 = vmatprep.subr.mxu0 0.0
    %3265 = vmatpush1.msra.mxu0 0.0
    %3266 = vmatprep.subr.mxu0 0.0
    %3267 = vmatpush1.msra.mxu0 0.0
    %3268 = vmatprep.subr.mxu0 0.0
    %3269 = vmatpush1.msra.mxu0 0.0
    %3270 = vmatprep.subr.mxu0 0.0
    %3271 = vmatpush1.msra.mxu0 0.0
    %3272 = vmatprep.subr.mxu0 0.0
    %3273 = vmatpush1.msra.mxu0 0.0
    %3274 = vmatprep.subr.mxu0 0.0
    %3275 = vmatpush1.msra.mxu0 0.0
    %3276 = vmatprep.subr.mxu0 0.0
    %3277 = vmatpush1.msra.mxu0 0.0
    %3278 = vmatprep.subr.mxu0 0.0
    %3279 = vmatpush1.msra.mxu0 0.0
    %3280 = vmatprep.subr.mxu0 0.0
    %3281 = vmatpush1.msra.mxu0 0.0
    %3282 = vmatprep.subr.mxu0 0.0
    %3283 = vmatpush1.msra.mxu0 0.0
    %3284 = vmatprep.subr.mxu0 0.0
    %3285 = vmatpush1.msra.mxu0 0.0
    %3286 = vmatprep.subr.mxu0 0.0
    %3287 = vmatpush1.msra.mxu0 0.0
    %3288 = vmatprep.subr.mxu0 0.0
    %3289 = vmatpush1.msra.mxu0 0.0
    %3290 = vmatprep.subr.mxu0 0.0
    %3291 = vmatpush1.msra.mxu0 0.0
    %3292 = vmatprep.subr.mxu0 0.0
    %3293 = vmatpush1.msra.mxu0 0.0
    %3294 = vmatprep.subr.mxu0 0.0
    %3295 = vmatpush1.msra.mxu0 0.0
    %3296 = vmatprep.subr.mxu0 0.0
    %3297 = vmatpush1.msra.mxu0 0.0
    %3298 = vmatprep.subr.mxu0 0.0
    %3299 = vmatpush1.msra.mxu0 0.0
    %3300 = vmatprep.subr.mxu0 0.0
    %3301 = vmatpush1.msra.mxu0 0.0
    %3302 = vmatprep.subr.mxu0 0.0
    %3303 = vmatpush1.msra.mxu0 0.0
    %3304 = vmatprep.subr.mxu0 0.0
    %3305 = vmatpush1.msra.mxu0 0.0
    %3306 = vmatprep.mubr.f32.mxu0 0.0
    %3307 = vmatmul.mubr.f32.gmra.mrb[0].mxu0 %v3237
    %v3308 = vpop.f32.mrb[0].mxu0
    %v3309 = vadd.f32 0.0, %v3308
    %v3310 = vpop.f32.mrb[0].mxu0
    %3311 = vmatprep.mubr.f32.mxu0 0.0
    %3312 = vmatmul.mubr.f32.gmra.mrb[0].mxu0 %v3240
    %v3313 = vpop.f32.mrb[0].mxu0
    %v3314 = vadd.f32 0.0, %v3313
    %v3315 = vpop.f32.mrb[0].mxu0
    %3316 = vdwg.mxu0
    %v3317 = vadd.f32 %v3232, %v3309
    %v3318 = vadd.f32 %v3233, %v3314
    %s3319 = scalar_lea.vmem %s5, 56
    %v3320 = vld [vmem:[%s3319] sm:$0xff]
    %v3322 = vsel %vm2731, %v2714, 0
    %v3325 = vsel %vm2731, %v2715, 0
    %3327 = vmatprep.subr.mxu0 0.0
    %3328 = vmatpush1.msra.mxu0 %v3320
    %3329 = vmatprep.subr.mxu0 0.0
    %3330 = vmatpush1.msra.mxu0 0.0
    %3331 = vmatprep.subr.mxu0 0.0
    %3332 = vmatpush1.msra.mxu0 0.0
    %3333 = vmatprep.subr.mxu0 0.0
    %3334 = vmatpush1.msra.mxu0 0.0
    %3335 = vmatprep.subr.mxu0 0.0
    %3336 = vmatpush1.msra.mxu0 0.0
    %3337 = vmatprep.subr.mxu0 0.0
    %3338 = vmatpush1.msra.mxu0 0.0
    %3339 = vmatprep.subr.mxu0 0.0
    %3340 = vmatpush1.msra.mxu0 0.0
    %3341 = vmatprep.subr.mxu0 0.0
    %3342 = vmatpush1.msra.mxu0 0.0
    %3343 = vmatprep.subr.mxu0 0.0
    %3344 = vmatpush1.msra.mxu0 0.0
    %3345 = vmatprep.subr.mxu0 0.0
    %3346 = vmatpush1.msra.mxu0 0.0
    %3347 = vmatprep.subr.mxu0 0.0
    %3348 = vmatpush1.msra.mxu0 0.0
    %3349 = vmatprep.subr.mxu0 0.0
    %3350 = vmatpush1.msra.mxu0 0.0
    %3351 = vmatprep.subr.mxu0 0.0
    %3352 = vmatpush1.msra.mxu0 0.0
    %3353 = vmatprep.subr.mxu0 0.0
    %3354 = vmatpush1.msra.mxu0 0.0
    %3355 = vmatprep.subr.mxu0 0.0
    %3356 = vmatpush1.msra.mxu0 0.0
    %3357 = vmatprep.subr.mxu0 0.0
    %3358 = vmatpush1.msra.mxu0 0.0
    %3359 = vmatprep.subr.mxu0 0.0
    %3360 = vmatpush1.msra.mxu0 0.0
    %3361 = vmatprep.subr.mxu0 0.0
    %3362 = vmatpush1.msra.mxu0 0.0
    %3363 = vmatprep.subr.mxu0 0.0
    %3364 = vmatpush1.msra.mxu0 0.0
    %3365 = vmatprep.subr.mxu0 0.0
    %3366 = vmatpush1.msra.mxu0 0.0
    %3367 = vmatprep.subr.mxu0 0.0
    %3368 = vmatpush1.msra.mxu0 0.0
    %3369 = vmatprep.subr.mxu0 0.0
    %3370 = vmatpush1.msra.mxu0 0.0
    %3371 = vmatprep.subr.mxu0 0.0
    %3372 = vmatpush1.msra.mxu0 0.0
    %3373 = vmatprep.subr.mxu0 0.0
    %3374 = vmatpush1.msra.mxu0 0.0
    %3375 = vmatprep.subr.mxu0 0.0
    %3376 = vmatpush1.msra.mxu0 0.0
    %3377 = vmatprep.subr.mxu0 0.0
    %3378 = vmatpush1.msra.mxu0 0.0
    %3379 = vmatprep.subr.mxu0 0.0
    %3380 = vmatpush1.msra.mxu0 0.0
    %3381 = vmatprep.subr.mxu0 0.0
    %3382 = vmatpush1.msra.mxu0 0.0
    %3383 = vmatprep.subr.mxu0 0.0
    %3384 = vmatpush1.msra.mxu0 0.0
    %3385 = vmatprep.subr.mxu0 0.0
    %3386 = vmatpush1.msra.mxu0 0.0
    %3387 = vmatprep.subr.mxu0 0.0
    %3388 = vmatpush1.msra.mxu0 0.0
    %3389 = vmatprep.subr.mxu0 0.0
    %3390 = vmatpush1.msra.mxu0 0.0
    %3391 = vmatprep.mubr.f32.mxu0 0.0
    %3392 = vmatmul.mubr.f32.gmra.mrb[0].mxu0 %v3322
    %v3393 = vpop.f32.mrb[0].mxu0
    %v3394 = vadd.f32 0.0, %v3393
    %v3395 = vpop.f32.mrb[0].mxu0
    %3396 = vmatprep.mubr.f32.mxu0 0.0
    %3397 = vmatmul.mubr.f32.gmra.mrb[0].mxu0 %v3325
    %v3398 = vpop.f32.mrb[0].mxu0
    %v3399 = vadd.f32 0.0, %v3398
    %v3400 = vpop.f32.mrb[0].mxu0
    %3401 = vdwg.mxu0
    %v3402 = vadd.f32 %v3317, %v3394
    %v3403 = vadd.f32 %v3318, %v3399
    %s3404 = scalar_lea.vmem %s5, 64
    %v3405 = vld [vmem:[%s3404] sm:$0xff]
    %v3407 = vsel %vm2731, %v2716, 0
    %v3410 = vsel %vm2731, %v2717, 0
    %3412 = vmatprep.subr.mxu0 0.0
    %3413 = vmatpush1.msra.mxu0 %v3405
    %3414 = vmatprep.subr.mxu0 0.0
    %3415 = vmatpush1.msra.mxu0 0.0
    %3416 = vmatprep.subr.mxu0 0.0
    %3417 = vmatpush1.msra.mxu0 0.0
    %3418 = vmatprep.subr.mxu0 0.0
    %3419 = vmatpush1.msra.mxu0 0.0
    %3420 = vmatprep.subr.mxu0 0.0
    %3421 = vmatpush1.msra.mxu0 0.0
    %3422 = vmatprep.subr.mxu0 0.0
    %3423 = vmatpush1.msra.mxu0 0.0
    %3424 = vmatprep.subr.mxu0 0.0
    %3425 = vmatpush1.msra.mxu0 0.0
    %3426 = vmatprep.subr.mxu0 0.0
    %3427 = vmatpush1.msra.mxu0 0.0
    %3428 = vmatprep.subr.mxu0 0.0
    %3429 = vmatpush1.msra.mxu0 0.0
    %3430 = vmatprep.subr.mxu0 0.0
    %3431 = vmatpush1.msra.mxu0 0.0
    %3432 = vmatprep.subr.mxu0 0.0
    %3433 = vmatpush1.msra.mxu0 0.0
    %3434 = vmatprep.subr.mxu0 0.0
    %3435 = vmatpush1.msra.mxu0 0.0
    %3436 = vmatprep.subr.mxu0 0.0
    %3437 = vmatpush1.msra.mxu0 0.0
    %3438 = vmatprep.subr.mxu0 0.0
    %3439 = vmatpush1.msra.mxu0 0.0
    %3440 = vmatprep.subr.mxu0 0.0
    %3441 = vmatpush1.msra.mxu0 0.0
    %3442 = vmatprep.subr.mxu0 0.0
    %3443 = vmatpush1.msra.mxu0 0.0
    %3444 = vmatprep.subr.mxu0 0.0
    %3445 = vmatpush1.msra.mxu0 0.0
    %3446 = vmatprep.subr.mxu0 0.0
    %3447 = vmatpush1.msra.mxu0 0.0
    %3448 = vmatprep.subr.mxu0 0.0
    %3449 = vmatpush1.msra.mxu0 0.0
    %3450 = vmatprep.subr.mxu0 0.0
    %3451 = vmatpush1.msra.mxu0 0.0
    %3452 = vmatprep.subr.mxu0 0.0
    %3453 = vmatpush1.msra.mxu0 0.0
    %3454 = vmatprep.subr.mxu0 0.0
    %3455 = vmatpush1.msra.mxu0 0.0
    %3456 = vmatprep.subr.mxu0 0.0
    %3457 = vmatpush1.msra.mxu0 0.0
    %3458 = vmatprep.subr.mxu0 0.0
    %3459 = vmatpush1.msra.mxu0 0.0
    %3460 = vmatprep.subr.mxu0 0.0
    %3461 = vmatpush1.msra.mxu0 0.0
    %3462 = vmatprep.subr.mxu0 0.0
    %3463 = vmatpush1.msra.mxu0 0.0
    %3464 = vmatprep.subr.mxu0 0.0
    %3465 = vmatpush1.msra.mxu0 0.0
    %3466 = vmatprep.subr.mxu0 0.0
    %3467 = vmatpush1.msra.mxu0 0.0
    %3468 = vmatprep.subr.mxu0 0.0
    %3469 = vmatpush1.msra.mxu0 0.0
    %3470 = vmatprep.subr.mxu0 0.0
    %3471 = vmatpush1.msra.mxu0 0.0
    %3472 = vmatprep.subr.mxu0 0.0
    %3473 = vmatpush1.msra.mxu0 0.0
    %3474 = vmatprep.subr.mxu0 0.0
    %3475 = vmatpush1.msra.mxu0 0.0
    %3476 = vmatprep.mubr.f32.mxu0 0.0
    %3477 = vmatmul.mubr.f32.gmra.mrb[0].mxu0 %v3407
    %v3478 = vpop.f32.mrb[0].mxu0
    %v3479 = vadd.f32 0.0, %v3478
    %v3480 = vpop.f32.mrb[0].mxu0
    %3481 = vmatprep.mubr.f32.mxu0 0.0
    %3482 = vmatmul.mubr.f32.gmra.mrb[0].mxu0 %v3410
    %v3483 = vpop.f32.mrb[0].mxu0
    %v3484 = vadd.f32 0.0, %v3483
    %v3485 = vpop.f32.mrb[0].mxu0
    %3486 = vdwg.mxu0
    %v3487 = vadd.f32 %v3402, %v3479
    %v3488 = vadd.f32 %v3403, %v3484
    %s3489 = scalar_lea.vmem %s5, 72
    %v3490 = vld [vmem:[%s3489] sm:$0xff]
    %v3492 = vsel %vm2731, %v2718, 0
    %v3495 = vsel %vm2731, %v2719, 0
    %3497 = vmatprep.subr.mxu0 0.0
    %3498 = vmatpush1.msra.mxu0 %v3490
    %3499 = vmatprep.subr.mxu0 0.0
    %3500 = vmatpush1.msra.mxu0 0.0
    %3501 = vmatprep.subr.mxu0 0.0
    %3502 = vmatpush1.msra.mxu0 0.0
    %3503 = vmatprep.subr.mxu0 0.0
    %3504 = vmatpush1.msra.mxu0 0.0
    %3505 = vmatprep.subr.mxu0 0.0
    %3506 = vmatpush1.msra.mxu0 0.0
    %3507 = vmatprep.subr.mxu0 0.0
    %3508 = vmatpush1.msra.mxu0 0.0
    %3509 = vmatprep.subr.mxu0 0.0
    %3510 = vmatpush1.msra.mxu0 0.0
    %3511 = vmatprep.subr.mxu0 0.0
    %3512 = vmatpush1.msra.mxu0 0.0
    %3513 = vmatprep.subr.mxu0 0.0
    %3514 = vmatpush1.msra.mxu0 0.0
    %3515 = vmatprep.subr.mxu0 0.0
    %3516 = vmatpush1.msra.mxu0 0.0
    %3517 = vmatprep.subr.mxu0 0.0
    %3518 = vmatpush1.msra.mxu0 0.0
    %3519 = vmatprep.subr.mxu0 0.0
    %3520 = vmatpush1.msra.mxu0 0.0
    %3521 = vmatprep.subr.mxu0 0.0
    %3522 = vmatpush1.msra.mxu0 0.0
    %3523 = vmatprep.subr.mxu0 0.0
    %3524 = vmatpush1.msra.mxu0 0.0
    %3525 = vmatprep.subr.mxu0 0.0
    %3526 = vmatpush1.msra.mxu0 0.0
    %3527 = vmatprep.subr.mxu0 0.0
    %3528 = vmatpush1.msra.mxu0 0.0
    %3529 = vmatprep.subr.mxu0 0.0
    %3530 = vmatpush1.msra.mxu0 0.0
    %3531 = vmatprep.subr.mxu0 0.0
    %3532 = vmatpush1.msra.mxu0 0.0
    %3533 = vmatprep.subr.mxu0 0.0
    %3534 = vmatpush1.msra.mxu0 0.0
    %3535 = vmatprep.subr.mxu0 0.0
    %3536 = vmatpush1.msra.mxu0 0.0
    %3537 = vmatprep.subr.mxu0 0.0
    %3538 = vmatpush1.msra.mxu0 0.0
    %3539 = vmatprep.subr.mxu0 0.0
    %3540 = vmatpush1.msra.mxu0 0.0
    %3541 = vmatprep.subr.mxu0 0.0
    %3542 = vmatpush1.msra.mxu0 0.0
    %3543 = vmatprep.subr.mxu0 0.0
    %3544 = vmatpush1.msra.mxu0 0.0
    %3545 = vmatprep.subr.mxu0 0.0
    %3546 = vmatpush1.msra.mxu0 0.0
    %3547 = vmatprep.subr.mxu0 0.0
    %3548 = vmatpush1.msra.mxu0 0.0
    %3549 = vmatprep.subr.mxu0 0.0
    %3550 = vmatpush1.msra.mxu0 0.0
    %3551 = vmatprep.subr.mxu0 0.0
    %3552 = vmatpush1.msra.mxu0 0.0
    %3553 = vmatprep.subr.mxu0 0.0
    %3554 = vmatpush1.msra.mxu0 0.0
    %3555 = vmatprep.subr.mxu0 0.0
    %3556 = vmatpush1.msra.mxu0 0.0
    %3557 = vmatprep.subr.mxu0 0.0
    %3558 = vmatpush1.msra.mxu0 0.0
    %3559 = vmatprep.subr.mxu0 0.0
    %3560 = vmatpush1.msra.mxu0 0.0
    %3561 = vmatprep.mubr.f32.mxu0 0.0
    %3562 = vmatmul.mubr.f32.gmra.mrb[0].mxu0 %v3492
    %v3563 = vpop.f32.mrb[0].mxu0
    %v3564 = vadd.f32 0.0, %v3563
    %v3565 = vpop.f32.mrb[0].mxu0
    %3566 = vmatprep.mubr.f32.mxu0 0.0
    %3567 = vmatmul.mubr.f32.gmra.mrb[0].mxu0 %v3495
    %v3568 = vpop.f32.mrb[0].mxu0
    %v3569 = vadd.f32 0.0, %v3568
    %v3570 = vpop.f32.mrb[0].mxu0
    %3571 = vdwg.mxu0
    %v3572 = vadd.f32 %v3487, %v3564
    %v3573 = vadd.f32 %v3488, %v3569
    %s3574 = scalar_lea.vmem %s5, 80
    %v3575 = vld [vmem:[%s3574] sm:$0xff]
    %v3577 = vsel %vm2731, %v2720, 0
    %v3580 = vsel %vm2731, %v2721, 0
    %3582 = vmatprep.subr.mxu0 0.0
    %3583 = vmatpush1.msra.mxu0 %v3575
    %3584 = vmatprep.subr.mxu0 0.0
    %3585 = vmatpush1.msra.mxu0 0.0
    %3586 = vmatprep.subr.mxu0 0.0
    %3587 = vmatpush1.msra.mxu0 0.0
    %3588 = vmatprep.subr.mxu0 0.0
    %3589 = vmatpush1.msra.mxu0 0.0
    %3590 = vmatprep.subr.mxu0 0.0
    %3591 = vmatpush1.msra.mxu0 0.0
    %3592 = vmatprep.subr.mxu0 0.0
    %3593 = vmatpush1.msra.mxu0 0.0
    %3594 = vmatprep.subr.mxu0 0.0
    %3595 = vmatpush1.msra.mxu0 0.0
    %3596 = vmatprep.subr.mxu0 0.0
    %3597 = vmatpush1.msra.mxu0 0.0
    %3598 = vmatprep.subr.mxu0 0.0
    %3599 = vmatpush1.msra.mxu0 0.0
    %3600 = vmatprep.subr.mxu0 0.0
    %3601 = vmatpush1.msra.mxu0 0.0
    %3602 = vmatprep.subr.mxu0 0.0
    %3603 = vmatpush1.msra.mxu0 0.0
    %3604 = vmatprep.subr.mxu0 0.0
    %3605 = vmatpush1.msra.mxu0 0.0
    %3606 = vmatprep.subr.mxu0 0.0
    %3607 = vmatpush1.msra.mxu0 0.0
    %3608 = vmatprep.subr.mxu0 0.0
    %3609 = vmatpush1.msra.mxu0 0.0
    %3610 = vmatprep.subr.mxu0 0.0
    %3611 = vmatpush1.msra.mxu0 0.0
    %3612 = vmatprep.subr.mxu0 0.0
    %3613 = vmatpush1.msra.mxu0 0.0
    %3614 = vmatprep.subr.mxu0 0.0
    %3615 = vmatpush1.msra.mxu0 0.0
    %3616 = vmatprep.subr.mxu0 0.0
    %3617 = vmatpush1.msra.mxu0 0.0
    %3618 = vmatprep.subr.mxu0 0.0
    %3619 = vmatpush1.msra.mxu0 0.0
    %3620 = vmatprep.subr.mxu0 0.0
    %3621 = vmatpush1.msra.mxu0 0.0
    %3622 = vmatprep.subr.mxu0 0.0
    %3623 = vmatpush1.msra.mxu0 0.0
    %3624 = vmatprep.subr.mxu0 0.0
    %3625 = vmatpush1.msra.mxu0 0.0
    %3626 = vmatprep.subr.mxu0 0.0
    %3627 = vmatpush1.msra.mxu0 0.0
    %3628 = vmatprep.subr.mxu0 0.0
    %3629 = vmatpush1.msra.mxu0 0.0
    %3630 = vmatprep.subr.mxu0 0.0
    %3631 = vmatpush1.msra.mxu0 0.0
    %3632 = vmatprep.subr.mxu0 0.0
    %3633 = vmatpush1.msra.mxu0 0.0
    %3634 = vmatprep.subr.mxu0 0.0
    %3635 = vmatpush1.msra.mxu0 0.0
    %3636 = vmatprep.subr.mxu0 0.0
    %3637 = vmatpush1.msra.mxu0 0.0
    %3638 = vmatprep.subr.mxu0 0.0
    %3639 = vmatpush1.msra.mxu0 0.0
    %3640 = vmatprep.subr.mxu0 0.0
    %3641 = vmatpush1.msra.mxu0 0.0
    %3642 = vmatprep.subr.mxu0 0.0
    %3643 = vmatpush1.msra.mxu0 0.0
    %3644 = vmatprep.subr.mxu0 0.0
    %3645 = vmatpush1.msra.mxu0 0.0
    %3646 = vmatprep.mubr.f32.mxu0 0.0
    %3647 = vmatmul.mubr.f32.gmra.mrb[0].mxu0 %v3577
    %v3648 = vpop.f32.mrb[0].mxu0
    %v3649 = vadd.f32 0.0, %v3648
    %v3650 = vpop.f32.mrb[0].mxu0
    %3651 = vmatprep.mubr.f32.mxu0 0.0
    %3652 = vmatmul.mubr.f32.gmra.mrb[0].mxu0 %v3580
    %v3653 = vpop.f32.mrb[0].mxu0
    %v3654 = vadd.f32 0.0, %v3653
    %v3655 = vpop.f32.mrb[0].mxu0
    %3656 = vdwg.mxu0
    %v3657 = vadd.f32 %v3572, %v3649
    %v3658 = vadd.f32 %v3573, %v3654
    %s3659 = scalar_lea.vmem %s5, 88
    %v3660 = vld [vmem:[%s3659] sm:$0xff]
    %v3662 = vsel %vm2731, %v2722, 0
    %v3665 = vsel %vm2731, %v2723, 0
    %3667 = vmatprep.subr.mxu0 0.0
    %3668 = vmatpush1.msra.mxu0 %v3660
    %3669 = vmatprep.subr.mxu0 0.0
    %3670 = vmatpush1.msra.mxu0 0.0
    %3671 = vmatprep.subr.mxu0 0.0
    %3672 = vmatpush1.msra.mxu0 0.0
    %3673 = vmatprep.subr.mxu0 0.0
    %3674 = vmatpush1.msra.mxu0 0.0
    %3675 = vmatprep.subr.mxu0 0.0
    %3676 = vmatpush1.msra.mxu0 0.0
    %3677 = vmatprep.subr.mxu0 0.0
    %3678 = vmatpush1.msra.mxu0 0.0
    %3679 = vmatprep.subr.mxu0 0.0
    %3680 = vmatpush1.msra.mxu0 0.0
    %3681 = vmatprep.subr.mxu0 0.0
    %3682 = vmatpush1.msra.mxu0 0.0
    %3683 = vmatprep.subr.mxu0 0.0
    %3684 = vmatpush1.msra.mxu0 0.0
    %3685 = vmatprep.subr.mxu0 0.0
    %3686 = vmatpush1.msra.mxu0 0.0
    %3687 = vmatprep.subr.mxu0 0.0
    %3688 = vmatpush1.msra.mxu0 0.0
    %3689 = vmatprep.subr.mxu0 0.0
    %3690 = vmatpush1.msra.mxu0 0.0
    %3691 = vmatprep.subr.mxu0 0.0
    %3692 = vmatpush1.msra.mxu0 0.0
    %3693 = vmatprep.subr.mxu0 0.0
    %3694 = vmatpush1.msra.mxu0 0.0
    %3695 = vmatprep.subr.mxu0 0.0
    %3696 = vmatpush1.msra.mxu0 0.0
    %3697 = vmatprep.subr.mxu0 0.0
    %3698 = vmatpush1.msra.mxu0 0.0
    %3699 = vmatprep.subr.mxu0 0.0
    %3700 = vmatpush1.msra.mxu0 0.0
    %3701 = vmatprep.subr.mxu0 0.0
    %3702 = vmatpush1.msra.mxu0 0.0
    %3703 = vmatprep.subr.mxu0 0.0
    %3704 = vmatpush1.msra.mxu0 0.0
    %3705 = vmatprep.subr.mxu0 0.0
    %3706 = vmatpush1.msra.mxu0 0.0
    %3707 = vmatprep.subr.mxu0 0.0
    %3708 = vmatpush1.msra.mxu0 0.0
    %3709 = vmatprep.subr.mxu0 0.0
    %3710 = vmatpush1.msra.mxu0 0.0
    %3711 = vmatprep.subr.mxu0 0.0
    %3712 = vmatpush1.msra.mxu0 0.0
    %3713 = vmatprep.subr.mxu0 0.0
    %3714 = vmatpush1.msra.mxu0 0.0
    %3715 = vmatprep.subr.mxu0 0.0
    %3716 = vmatpush1.msra.mxu0 0.0
    %3717 = vmatprep.subr.mxu0 0.0
    %3718 = vmatpush1.msra.mxu0 0.0
    %3719 = vmatprep.subr.mxu0 0.0
    %3720 = vmatpush1.msra.mxu0 0.0
    %3721 = vmatprep.subr.mxu0 0.0
    %3722 = vmatpush1.msra.mxu0 0.0
    %3723 = vmatprep.subr.mxu0 0.0
    %3724 = vmatpush1.msra.mxu0 0.0
    %3725 = vmatprep.subr.mxu0 0.0
    %3726 = vmatpush1.msra.mxu0 0.0
    %3727 = vmatprep.subr.mxu0 0.0
    %3728 = vmatpush1.msra.mxu0 0.0
    %3729 = vmatprep.subr.mxu0 0.0
    %3730 = vmatpush1.msra.mxu0 0.0
    %3731 = vmatprep.mubr.f32.mxu0 0.0
    %3732 = vmatmul.mubr.f32.gmra.mrb[0].mxu0 %v3662
    %v3733 = vpop.f32.mrb[0].mxu0
    %v3734 = vadd.f32 0.0, %v3733
    %v3735 = vpop.f32.mrb[0].mxu0
    %3736 = vmatprep.mubr.f32.mxu0 0.0
    %3737 = vmatmul.mubr.f32.gmra.mrb[0].mxu0 %v3665
    %v3738 = vpop.f32.mrb[0].mxu0
    %v3739 = vadd.f32 0.0, %v3738
    %v3740 = vpop.f32.mrb[0].mxu0
    %3741 = vdwg.mxu0
    %v3742 = vadd.f32 %v3657, %v3734
    %v3743 = vadd.f32 %v3658, %v3739
    %s3744 = scalar_lea.vmem %s5, 96
    %v3745 = vld [vmem:[%s3744] sm:$0xff]
    %v3747 = vsel %vm2731, %v2724, 0
    %v3750 = vsel %vm2731, %v2725, 0
    %3752 = vmatprep.subr.mxu0 0.0
    %3753 = vmatpush1.msra.mxu0 %v3745
    %3754 = vmatprep.subr.mxu0 0.0
    %3755 = vmatpush1.msra.mxu0 0.0
    %3756 = vmatprep.subr.mxu0 0.0
    %3757 = vmatpush1.msra.mxu0 0.0
    %3758 = vmatprep.subr.mxu0 0.0
    %3759 = vmatpush1.msra.mxu0 0.0
    %3760 = vmatprep.subr.mxu0 0.0
    %3761 = vmatpush1.msra.mxu0 0.0
    %3762 = vmatprep.subr.mxu0 0.0
    %3763 = vmatpush1.msra.mxu0 0.0
    %3764 = vmatprep.subr.mxu0 0.0
    %3765 = vmatpush1.msra.mxu0 0.0
    %3766 = vmatprep.subr.mxu0 0.0
    %3767 = vmatpush1.msra.mxu0 0.0
    %3768 = vmatprep.subr.mxu0 0.0
    %3769 = vmatpush1.msra.mxu0 0.0
    %3770 = vmatprep.subr.mxu0 0.0
    %3771 = vmatpush1.msra.mxu0 0.0
    %3772 = vmatprep.subr.mxu0 0.0
    %3773 = vmatpush1.msra.mxu0 0.0
    %3774 = vmatprep.subr.mxu0 0.0
    %3775 = vmatpush1.msra.mxu0 0.0
    %3776 = vmatprep.subr.mxu0 0.0
    %3777 = vmatpush1.msra.mxu0 0.0
    %3778 = vmatprep.subr.mxu0 0.0
    %3779 = vmatpush1.msra.mxu0 0.0
    %3780 = vmatprep.subr.mxu0 0.0
    %3781 = vmatpush1.msra.mxu0 0.0
    %3782 = vmatprep.subr.mxu0 0.0
    %3783 = vmatpush1.msra.mxu0 0.0
    %3784 = vmatprep.subr.mxu0 0.0
    %3785 = vmatpush1.msra.mxu0 0.0
    %3786 = vmatprep.subr.mxu0 0.0
    %3787 = vmatpush1.msra.mxu0 0.0
    %3788 = vmatprep.subr.mxu0 0.0
    %3789 = vmatpush1.msra.mxu0 0.0
    %3790 = vmatprep.subr.mxu0 0.0
    %3791 = vmatpush1.msra.mxu0 0.0
    %3792 = vmatprep.subr.mxu0 0.0
    %3793 = vmatpush1.msra.mxu0 0.0
    %3794 = vmatprep.subr.mxu0 0.0
    %3795 = vmatpush1.msra.mxu0 0.0
    %3796 = vmatprep.subr.mxu0 0.0
    %3797 = vmatpush1.msra.mxu0 0.0
    %3798 = vmatprep.subr.mxu0 0.0
    %3799 = vmatpush1.msra.mxu0 0.0
    %3800 = vmatprep.subr.mxu0 0.0
    %3801 = vmatpush1.msra.mxu0 0.0
    %3802 = vmatprep.subr.mxu0 0.0
    %3803 = vmatpush1.msra.mxu0 0.0
    %3804 = vmatprep.subr.mxu0 0.0
    %3805 = vmatpush1.msra.mxu0 0.0
    %3806 = vmatprep.subr.mxu0 0.0
    %3807 = vmatpush1.msra.mxu0 0.0
    %3808 = vmatprep.subr.mxu0 0.0
    %3809 = vmatpush1.msra.mxu0 0.0
    %3810 = vmatprep.subr.mxu0 0.0
    %3811 = vmatpush1.msra.mxu0 0.0
    %3812 = vmatprep.subr.mxu0 0.0
    %3813 = vmatpush1.msra.mxu0 0.0
    %3814 = vmatprep.subr.mxu0 0.0
    %3815 = vmatpush1.msra.mxu0 0.0
    %3816 = vmatprep.mubr.f32.mxu0 0.0
    %3817 = vmatmul.mubr.f32.gmra.mrb[0].mxu0 %v3747
    %v3818 = vpop.f32.mrb[0].mxu0
    %v3819 = vadd.f32 0.0, %v3818
    %v3820 = vpop.f32.mrb[0].mxu0
    %3821 = vmatprep.mubr.f32.mxu0 0.0
    %3822 = vmatmul.mubr.f32.gmra.mrb[0].mxu0 %v3750
    %v3823 = vpop.f32.mrb[0].mxu0
    %v3824 = vadd.f32 0.0, %v3823
    %v3825 = vpop.f32.mrb[0].mxu0
    %3826 = vdwg.mxu0
    %v3827 = vadd.f32 %v3742, %v3819
    %v3828 = vadd.f32 %v3743, %v3824
    %s3829 = scalar_lea.vmem %s5, 104
    %v3830 = vld [vmem:[%s3829] sm:$0xff]
    %v3832 = vsel %vm2731, %v2726, 0
    %v3835 = vsel %vm2731, %v2727, 0
    %3837 = vmatprep.subr.mxu0 0.0
    %3838 = vmatpush1.msra.mxu0 %v3830
    %3839 = vmatprep.subr.mxu0 0.0
    %3840 = vmatpush1.msra.mxu0 0.0
    %3841 = vmatprep.subr.mxu0 0.0
    %3842 = vmatpush1.msra.mxu0 0.0
    %3843 = vmatprep.subr.mxu0 0.0
    %3844 = vmatpush1.msra.mxu0 0.0
    %3845 = vmatprep.subr.mxu0 0.0
    %3846 = vmatpush1.msra.mxu0 0.0
    %3847 = vmatprep.subr.mxu0 0.0
    %3848 = vmatpush1.msra.mxu0 0.0
    %3849 = vmatprep.subr.mxu0 0.0
    %3850 = vmatpush1.msra.mxu0 0.0
    %3851 = vmatprep.subr.mxu0 0.0
    %3852 = vmatpush1.msra.mxu0 0.0
    %3853 = vmatprep.subr.mxu0 0.0
    %3854 = vmatpush1.msra.mxu0 0.0
    %3855 = vmatprep.subr.mxu0 0.0
    %3856 = vmatpush1.msra.mxu0 0.0
    %3857 = vmatprep.subr.mxu0 0.0
    %3858 = vmatpush1.msra.mxu0 0.0
    %3859 = vmatprep.subr.mxu0 0.0
    %3860 = vmatpush1.msra.mxu0 0.0
    %3861 = vmatprep.subr.mxu0 0.0
    %3862 = vmatpush1.msra.mxu0 0.0
    %3863 = vmatprep.subr.mxu0 0.0
    %3864 = vmatpush1.msra.mxu0 0.0
    %3865 = vmatprep.subr.mxu0 0.0
    %3866 = vmatpush1.msra.mxu0 0.0
    %3867 = vmatprep.subr.mxu0 0.0
    %3868 = vmatpush1.msra.mxu0 0.0
    %3869 = vmatprep.subr.mxu0 0.0
    %3870 = vmatpush1.msra.mxu0 0.0
    %3871 = vmatprep.subr.mxu0 0.0
    %3872 = vmatpush1.msra.mxu0 0.0
    %3873 = vmatprep.subr.mxu0 0.0
    %3874 = vmatpush1.msra.mxu0 0.0
    %3875 = vmatprep.subr.mxu0 0.0
    %3876 = vmatpush1.msra.mxu0 0.0
    %3877 = vmatprep.subr.mxu0 0.0
    %3878 = vmatpush1.msra.mxu0 0.0
    %3879 = vmatprep.subr.mxu0 0.0
    %3880 = vmatpush1.msra.mxu0 0.0
    %3881 = vmatprep.subr.mxu0 0.0
    %3882 = vmatpush1.msra.mxu0 0.0
    %3883 = vmatprep.subr.mxu0 0.0
    %3884 = vmatpush1.msra.mxu0 0.0
    %3885 = vmatprep.subr.mxu0 0.0
    %3886 = vmatpush1.msra.mxu0 0.0
    %3887 = vmatprep.subr.mxu0 0.0
    %3888 = vmatpush1.msra.mxu0 0.0
    %3889 = vmatprep.subr.mxu0 0.0
    %3890 = vmatpush1.msra.mxu0 0.0
    %3891 = vmatprep.subr.mxu0 0.0
    %3892 = vmatpush1.msra.mxu0 0.0
    %3893 = vmatprep.subr.mxu0 0.0
    %3894 = vmatpush1.msra.mxu0 0.0
    %3895 = vmatprep.subr.mxu0 0.0
    %3896 = vmatpush1.msra.mxu0 0.0
    %3897 = vmatprep.subr.mxu0 0.0
    %3898 = vmatpush1.msra.mxu0 0.0
    %3899 = vmatprep.subr.mxu0 0.0
    %3900 = vmatpush1.msra.mxu0 0.0
    %3901 = vmatprep.mubr.f32.mxu0 0.0
    %3902 = vmatmul.mubr.f32.gmra.mrb[0].mxu0 %v3832
    %v3903 = vpop.f32.mrb[0].mxu0
    %v3904 = vadd.f32 0.0, %v3903
    %v3905 = vpop.f32.mrb[0].mxu0
    %3906 = vmatprep.mubr.f32.mxu0 0.0
    %3907 = vmatmul.mubr.f32.gmra.mrb[0].mxu0 %v3835
    %v3908 = vpop.f32.mrb[0].mxu0
    %v3909 = vadd.f32 0.0, %v3908
    %v3910 = vpop.f32.mrb[0].mxu0
    %3911 = vdwg.mxu0
    %v3912 = vadd.f32 %v3827, %v3904
    %v3913 = vadd.f32 %v3828, %v3909
    %v3914 = vld [vmem:[%s6] sm:$0x1]
    %v3916 = vlaneseq
    %v3917 = vshrl.u32 %v3916, 7
    %v3918 = vsub.s32 0, %v3917
    %v3919 = vrot.slane %v3914, %v3918
    %v3921 = vadd.f32 %v3912, %v3919
    %v3922 = vadd.f32 %v3913, %v3919
    %v3923 = vmax.f32 %v3921, 0.0
    %v3924 = vmax.f32 %v3922, 0.0
    %v3925 = vld [vmem:[%s7] sm:$0xff]
    %v3926 = vld [vmem:[%s7 + $0x8] sm:$0xff]
    %v3927 = vld [vmem:[%s7 + $0x10] sm:$0xff]
    %s3928 = scalar_lea.vmem %s7, 24
    %v3929 = vld [vmem:[%s3928] sm:$0xff]
    %v3930 = vld [vmem:[%s3928 + $0x8] sm:$0xff]
    %v3931 = vld [vmem:[%s3928 + $0x10] sm:$0xff]
    %v3933 = vrot.slane %v3923, 2
    %vm3934 = vcmask 195584
    %v3935 = vsel %vm3934, %v3933, 0
    %3937 = vmatprep.subr.mxu0 0.0
    %3938 = vmatpush1.msra.mxu0 %v3929
    %3939 = vmatprep.subr.mxu0 0.0
    %3940 = vmatpush1.msra.mxu0 %v3930
    %3941 = vmatprep.subr.mxu0 0.0
    %3942 = vmatpush1.msra.mxu0 %v3931
    %3943 = vmatprep.subr.mxu0 0.0
    %3944 = vmatpush1.msra.mxu0 0.0
    %3945 = vmatprep.subr.mxu0 0.0
    %3946 = vmatpush1.msra.mxu0 0.0
    %3947 = vmatprep.subr.mxu0 0.0
    %3948 = vmatpush1.msra.mxu0 0.0
    %3949 = vmatprep.subr.mxu0 0.0
    %3950 = vmatpush1.msra.mxu0 0.0
    %3951 = vmatprep.subr.mxu0 0.0
    %3952 = vmatpush1.msra.mxu0 0.0
    %3953 = vmatprep.subr.mxu0 0.0
    %3954 = vmatpush1.msra.mxu0 0.0
    %3955 = vmatprep.subr.mxu0 0.0
    %3956 = vmatpush1.msra.mxu0 0.0
    %3957 = vmatprep.subr.mxu0 0.0
    %3958 = vmatpush1.msra.mxu0 0.0
    %3959 = vmatprep.subr.mxu0 0.0
    %3960 = vmatpush1.msra.mxu0 0.0
    %3961 = vmatprep.subr.mxu0 0.0
    %3962 = vmatpush1.msra.mxu0 0.0
    %3963 = vmatprep.subr.mxu0 0.0
    %3964 = vmatpush1.msra.mxu0 0.0
    %3965 = vmatprep.subr.mxu0 0.0
    %3966 = vmatpush1.msra.mxu0 0.0
    %3967 = vmatprep.subr.mxu0 0.0
    %3968 = vmatpush1.msra.mxu0 0.0
    %3969 = vmatprep.subr.mxu0 0.0
    %3970 = vmatpush1.msra.mxu0 0.0
    %3971 = vmatprep.subr.mxu0 0.0
    %3972 = vmatpush1.msra.mxu0 0.0
    %3973 = vmatprep.subr.mxu0 0.0
    %3974 = vmatpush1.msra.mxu0 0.0
    %3975 = vmatprep.subr.mxu0 0.0
    %3976 = vmatpush1.msra.mxu0 0.0
    %3977 = vmatprep.subr.mxu0 0.0
    %3978 = vmatpush1.msra.mxu0 0.0
    %3979 = vmatprep.subr.mxu0 0.0
    %3980 = vmatpush1.msra.mxu0 0.0
    %3981 = vmatprep.subr.mxu0 0.0
    %3982 = vmatpush1.msra.mxu0 0.0
    %3983 = vmatprep.subr.mxu0 0.0
    %3984 = vmatpush1.msra.mxu0 0.0
    %3985 = vmatprep.subr.mxu0 0.0
    %3986 = vmatpush1.msra.mxu0 0.0
    %3987 = vmatprep.subr.mxu0 0.0
    %3988 = vmatpush1.msra.mxu0 0.0
    %3989 = vmatprep.subr.mxu0 0.0
    %3990 = vmatpush1.msra.mxu0 0.0
    %3991 = vmatprep.subr.mxu0 0.0
    %3992 = vmatpush1.msra.mxu0 0.0
    %3993 = vmatprep.subr.mxu0 0.0
    %3994 = vmatpush1.msra.mxu0 0.0
    %3995 = vmatprep.subr.mxu0 0.0
    %3996 = vmatpush1.msra.mxu0 0.0
    %3997 = vmatprep.subr.mxu0 0.0
    %3998 = vmatpush1.msra.mxu0 0.0
    %3999 = vmatprep.subr.mxu0 0.0
    %4000 = vmatpush1.msra.mxu0 0.0
    %4001 = vmatprep.mubr.f32.mxu0 0.0
    %4002 = vmatmul.mubr.f32.gmra.mrb[0].mxu0 %v3935
    %v4003 = vpop.f32.mrb[0].mxu0
    %v4004 = vadd.f32 0.0, %v4003
    %v4005 = vpop.f32.mrb[0].mxu0
    %4006 = vdwg.mxu0
    %v4007 = vsel %vm3934, %v3923, 0
    %4009 = vmatprep.subr.mxu0 0.0
    %4010 = vmatpush1.msra.mxu0 %v3925
    %4011 = vmatprep.subr.mxu0 0.0
    %4012 = vmatpush1.msra.mxu0 %v3926
    %4013 = vmatprep.subr.mxu0 0.0
    %4014 = vmatpush1.msra.mxu0 %v3927
    %4015 = vmatprep.subr.mxu0 0.0
    %4016 = vmatpush1.msra.mxu0 0.0
    %4017 = vmatprep.subr.mxu0 0.0
    %4018 = vmatpush1.msra.mxu0 0.0
    %4019 = vmatprep.subr.mxu0 0.0
    %4020 = vmatpush1.msra.mxu0 0.0
    %4021 = vmatprep.subr.mxu0 0.0
    %4022 = vmatpush1.msra.mxu0 0.0
    %4023 = vmatprep.subr.mxu0 0.0
    %4024 = vmatpush1.msra.mxu0 0.0
    %4025 = vmatprep.subr.mxu0 0.0
    %4026 = vmatpush1.msra.mxu0 0.0
    %4027 = vmatprep.subr.mxu0 0.0
    %4028 = vmatpush1.msra.mxu0 0.0
    %4029 = vmatprep.subr.mxu0 0.0
    %4030 = vmatpush1.msra.mxu0 0.0
    %4031 = vmatprep.subr.mxu0 0.0
    %4032 = vmatpush1.msra.mxu0 0.0
    %4033 = vmatprep.subr.mxu0 0.0
    %4034 = vmatpush1.msra.mxu0 0.0
    %4035 = vmatprep.subr.mxu0 0.0
    %4036 = vmatpush1.msra.mxu0 0.0
    %4037 = vmatprep.subr.mxu0 0.0
    %4038 = vmatpush1.msra.mxu0 0.0
    %4039 = vmatprep.subr.mxu0 0.0
    %4040 = vmatpush1.msra.mxu0 0.0
    %4041 = vmatprep.subr.mxu0 0.0
    %4042 = vmatpush1.msra.mxu0 0.0
    %4043 = vmatprep.subr.mxu0 0.0
    %4044 = vmatpush1.msra.mxu0 0.0
    %4045 = vmatprep.subr.mxu0 0.0
    %4046 = vmatpush1.msra.mxu0 0.0
    %4047 = vmatprep.subr.mxu0 0.0
    %4048 = vmatpush1.msra.mxu0 0.0
    %4049 = vmatprep.subr.mxu0 0.0
    %4050 = vmatpush1.msra.mxu0 0.0
    %4051 = vmatprep.subr.mxu0 0.0
    %4052 = vmatpush1.msra.mxu0 0.0
    %4053 = vmatprep.subr.mxu0 0.0
    %4054 = vmatpush1.msra.mxu0 0.0
    %4055 = vmatprep.subr.mxu0 0.0
    %4056 = vmatpush1.msra.mxu0 0.0
    %4057 = vmatprep.subr.mxu0 0.0
    %4058 = vmatpush1.msra.mxu0 0.0
    %4059 = vmatprep.subr.mxu0 0.0
    %4060 = vmatpush1.msra.mxu0 0.0
    %4061 = vmatprep.subr.mxu0 0.0
    %4062 = vmatpush1.msra.mxu0 0.0
    %4063 = vmatprep.subr.mxu0 0.0
    %4064 = vmatpush1.msra.mxu0 0.0
    %4065 = vmatprep.subr.mxu0 0.0
    %4066 = vmatpush1.msra.mxu0 0.0
    %4067 = vmatprep.subr.mxu0 0.0
    %4068 = vmatpush1.msra.mxu0 0.0
    %4069 = vmatprep.subr.mxu0 0.0
    %4070 = vmatpush1.msra.mxu0 0.0
    %4071 = vmatprep.subr.mxu0 0.0
    %4072 = vmatpush1.msra.mxu0 0.0
    %4073 = vmatprep.mubr.f32.mxu0 0.0
    %4074 = vmatmul.mubr.f32.gmra.mrb[0].mxu0 %v4007
    %v4075 = vpop.f32.mrb[0].mxu0
    %v4076 = vadd.f32 %v4004, %v4075
    %v4077 = vpop.f32.mrb[0].mxu0
    %4078 = vdwg.mxu0
    %s4079 = scalar_lea.vmem %s7, 48
    %v4080 = vld [vmem:[%s4079] sm:$0xff]
    %v4081 = vld [vmem:[%s4079 + $0x8] sm:$0xff]
    %v4082 = vld [vmem:[%s4079 + $0x10] sm:$0xff]
    %v4083 = vrot.slane %v3923, 4
    %v4084 = vsel %vm3934, %v4083, 0
    %4086 = vmatprep.subr.mxu0 0.0
    %4087 = vmatpush1.msra.mxu0 %v4080
    %4088 = vmatprep.subr.mxu0 0.0
    %4089 = vmatpush1.msra.mxu0 %v4081
    %4090 = vmatprep.subr.mxu0 0.0
    %4091 = vmatpush1.msra.mxu0 %v4082
    %4092 = vmatprep.subr.mxu0 0.0
    %4093 = vmatpush1.msra.mxu0 0.0
    %4094 = vmatprep.subr.mxu0 0.0
    %4095 = vmatpush1.msra.mxu0 0.0
    %4096 = vmatprep.subr.mxu0 0.0
    %4097 = vmatpush1.msra.mxu0 0.0
    %4098 = vmatprep.subr.mxu0 0.0
    %4099 = vmatpush1.msra.mxu0 0.0
    %4100 = vmatprep.subr.mxu0 0.0
    %4101 = vmatpush1.msra.mxu0 0.0
    %4102 = vmatprep.subr.mxu0 0.0
    %4103 = vmatpush1.msra.mxu0 0.0
    %4104 = vmatprep.subr.mxu0 0.0
    %4105 = vmatpush1.msra.mxu0 0.0
    %4106 = vmatprep.subr.mxu0 0.0
    %4107 = vmatpush1.msra.mxu0 0.0
    %4108 = vmatprep.subr.mxu0 0.0
    %4109 = vmatpush1.msra.mxu0 0.0
    %4110 = vmatprep.subr.mxu0 0.0
    %4111 = vmatpush1.msra.mxu0 0.0
    %4112 = vmatprep.subr.mxu0 0.0
    %4113 = vmatpush1.msra.mxu0 0.0
    %4114 = vmatprep.subr.mxu0 0.0
    %4115 = vmatpush1.msra.mxu0 0.0
    %4116 = vmatprep.subr.mxu0 0.0
    %4117 = vmatpush1.msra.mxu0 0.0
    %4118 = vmatprep.subr.mxu0 0.0
    %4119 = vmatpush1.msra.mxu0 0.0
    %4120 = vmatprep.subr.mxu0 0.0
    %4121 = vmatpush1.msra.mxu0 0.0
    %4122 = vmatprep.subr.mxu0 0.0
    %4123 = vmatpush1.msra.mxu0 0.0
    %4124 = vmatprep.subr.mxu0 0.0
    %4125 = vmatpush1.msra.mxu0 0.0
    %4126 = vmatprep.subr.mxu0 0.0
    %4127 = vmatpush1.msra.mxu0 0.0
    %4128 = vmatprep.subr.mxu0 0.0
    %4129 = vmatpush1.msra.mxu0 0.0
    %4130 = vmatprep.subr.mxu0 0.0
    %4131 = vmatpush1.msra.mxu0 0.0
    %4132 = vmatprep.subr.mxu0 0.0
    %4133 = vmatpush1.msra.mxu0 0.0
    %4134 = vmatprep.subr.mxu0 0.0
    %4135 = vmatpush1.msra.mxu0 0.0
    %4136 = vmatprep.subr.mxu0 0.0
    %4137 = vmatpush1.msra.mxu0 0.0
    %4138 = vmatprep.subr.mxu0 0.0
    %4139 = vmatpush1.msra.mxu0 0.0
    %4140 = vmatprep.subr.mxu0 0.0
    %4141 = vmatpush1.msra.mxu0 0.0
    %4142 = vmatprep.subr.mxu0 0.0
    %4143 = vmatpush1.msra.mxu0 0.0
    %4144 = vmatprep.subr.mxu0 0.0
    %4145 = vmatpush1.msra.mxu0 0.0
    %4146 = vmatprep.subr.mxu0 0.0
    %4147 = vmatpush1.msra.mxu0 0.0
    %4148 = vmatprep.subr.mxu0 0.0
    %4149 = vmatpush1.msra.mxu0 0.0
    %4150 = vmatprep.mubr.f32.mxu0 0.0
    %4151 = vmatmul.mubr.f32.gmra.mrb[0].mxu0 %v4084
    %v4152 = vpop.f32.mrb[0].mxu0
    %v4153 = vadd.f32 0.0, %v4152
    %v4154 = vpop.f32.mrb[0].mxu0
    %4155 = vdwg.mxu0
    %v4156 = vadd.f32 %v4076, %v4153
    %s4157 = scalar_lea.vmem %s7, 72
    %v4158 = vld [vmem:[%s4157] sm:$0xff]
    %v4159 = vld [vmem:[%s4157 + $0x8] sm:$0xff]
    %v4160 = vld [vmem:[%s4157 + $0x10] sm:$0xff]
    %v4161 = vrot.slane %v3923, 6
    %v4162 = vsel %vm3934, %v4161, 0
    %4164 = vmatprep.subr.mxu0 0.0
    %4165 = vmatpush1.msra.mxu0 %v4158
    %4166 = vmatprep.subr.mxu0 0.0
    %4167 = vmatpush1.msra.mxu0 %v4159
    %4168 = vmatprep.subr.mxu0 0.0
    %4169 = vmatpush1.msra.mxu0 %v4160
    %4170 = vmatprep.subr.mxu0 0.0
    %4171 = vmatpush1.msra.mxu0 0.0
    %4172 = vmatprep.subr.mxu0 0.0
    %4173 = vmatpush1.msra.mxu0 0.0
    %4174 = vmatprep.subr.mxu0 0.0
    %4175 = vmatpush1.msra.mxu0 0.0
    %4176 = vmatprep.subr.mxu0 0.0
    %4177 = vmatpush1.msra.mxu0 0.0
    %4178 = vmatprep.subr.mxu0 0.0
    %4179 = vmatpush1.msra.mxu0 0.0
    %4180 = vmatprep.subr.mxu0 0.0
    %4181 = vmatpush1.msra.mxu0 0.0
    %4182 = vmatprep.subr.mxu0 0.0
    %4183 = vmatpush1.msra.mxu0 0.0
    %4184 = vmatprep.subr.mxu0 0.0
    %4185 = vmatpush1.msra.mxu0 0.0
    %4186 = vmatprep.subr.mxu0 0.0
    %4187 = vmatpush1.msra.mxu0 0.0
    %4188 = vmatprep.subr.mxu0 0.0
    %4189 = vmatpush1.msra.mxu0 0.0
    %4190 = vmatprep.subr.mxu0 0.0
    %4191 = vmatpush1.msra.mxu0 0.0
    %4192 = vmatprep.subr.mxu0 0.0
    %4193 = vmatpush1.msra.mxu0 0.0
    %4194 = vmatprep.subr.mxu0 0.0
    %4195 = vmatpush1.msra.mxu0 0.0
    %4196 = vmatprep.subr.mxu0 0.0
    %4197 = vmatpush1.msra.mxu0 0.0
    %4198 = vmatprep.subr.mxu0 0.0
    %4199 = vmatpush1.msra.mxu0 0.0
    %4200 = vmatprep.subr.mxu0 0.0
    %4201 = vmatpush1.msra.mxu0 0.0
    %4202 = vmatprep.subr.mxu0 0.0
    %4203 = vmatpush1.msra.mxu0 0.0
    %4204 = vmatprep.subr.mxu0 0.0
    %4205 = vmatpush1.msra.mxu0 0.0
    %4206 = vmatprep.subr.mxu0 0.0
    %4207 = vmatpush1.msra.mxu0 0.0
    %4208 = vmatprep.subr.mxu0 0.0
    %4209 = vmatpush1.msra.mxu0 0.0
    %4210 = vmatprep.subr.mxu0 0.0
    %4211 = vmatpush1.msra.mxu0 0.0
    %4212 = vmatprep.subr.mxu0 0.0
    %4213 = vmatpush1.msra.mxu0 0.0
    %4214 = vmatprep.subr.mxu0 0.0
    %4215 = vmatpush1.msra.mxu0 0.0
    %4216 = vmatprep.subr.mxu0 0.0
    %4217 = vmatpush1.msra.mxu0 0.0
    %4218 = vmatprep.subr.mxu0 0.0
    %4219 = vmatpush1.msra.mxu0 0.0
    %4220 = vmatprep.subr.mxu0 0.0
    %4221 = vmatpush1.msra.mxu0 0.0
    %4222 = vmatprep.subr.mxu0 0.0
    %4223 = vmatpush1.msra.mxu0 0.0
    %4224 = vmatprep.subr.mxu0 0.0
    %4225 = vmatpush1.msra.mxu0 0.0
    %4226 = vmatprep.subr.mxu0 0.0
    %4227 = vmatpush1.msra.mxu0 0.0
    %4228 = vmatprep.mubr.f32.mxu0 0.0
    %4229 = vmatmul.mubr.f32.gmra.mrb[0].mxu0 %v4162
    %v4230 = vpop.f32.mrb[0].mxu0
    %v4231 = vadd.f32 0.0, %v4230
    %v4232 = vpop.f32.mrb[0].mxu0
    %4233 = vdwg.mxu0
    %v4234 = vadd.f32 %v4156, %v4231
    %s4235 = scalar_lea.vmem %s7, 96
    %v4236 = vld [vmem:[%s4235] sm:$0xff]
    %v4237 = vld [vmem:[%s4235 + $0x8] sm:$0xff]
    %v4238 = vld [vmem:[%s4235 + $0x10] sm:$0xff]
    %v4240 = vsel %vm3934, %v3924, 0
    %4242 = vmatprep.subr.mxu0 0.0
    %4243 = vmatpush1.msra.mxu0 %v4236
    %4244 = vmatprep.subr.mxu0 0.0
    %4245 = vmatpush1.msra.mxu0 %v4237
    %4246 = vmatprep.subr.mxu0 0.0
    %4247 = vmatpush1.msra.mxu0 %v4238
    %4248 = vmatprep.subr.mxu0 0.0
    %4249 = vmatpush1.msra.mxu0 0.0
    %4250 = vmatprep.subr.mxu0 0.0
    %4251 = vmatpush1.msra.mxu0 0.0
    %4252 = vmatprep.subr.mxu0 0.0
    %4253 = vmatpush1.msra.mxu0 0.0
    %4254 = vmatprep.subr.mxu0 0.0
    %4255 = vmatpush1.msra.mxu0 0.0
    %4256 = vmatprep.subr.mxu0 0.0
    %4257 = vmatpush1.msra.mxu0 0.0
    %4258 = vmatprep.subr.mxu0 0.0
    %4259 = vmatpush1.msra.mxu0 0.0
    %4260 = vmatprep.subr.mxu0 0.0
    %4261 = vmatpush1.msra.mxu0 0.0
    %4262 = vmatprep.subr.mxu0 0.0
    %4263 = vmatpush1.msra.mxu0 0.0
    %4264 = vmatprep.subr.mxu0 0.0
    %4265 = vmatpush1.msra.mxu0 0.0
    %4266 = vmatprep.subr.mxu0 0.0
    %4267 = vmatpush1.msra.mxu0 0.0
    %4268 = vmatprep.subr.mxu0 0.0
    %4269 = vmatpush1.msra.mxu0 0.0
    %4270 = vmatprep.subr.mxu0 0.0
    %4271 = vmatpush1.msra.mxu0 0.0
    %4272 = vmatprep.subr.mxu0 0.0
    %4273 = vmatpush1.msra.mxu0 0.0
    %4274 = vmatprep.subr.mxu0 0.0
    %4275 = vmatpush1.msra.mxu0 0.0
    %4276 = vmatprep.subr.mxu0 0.0
    %4277 = vmatpush1.msra.mxu0 0.0
    %4278 = vmatprep.subr.mxu0 0.0
    %4279 = vmatpush1.msra.mxu0 0.0
    %4280 = vmatprep.subr.mxu0 0.0
    %4281 = vmatpush1.msra.mxu0 0.0
    %4282 = vmatprep.subr.mxu0 0.0
    %4283 = vmatpush1.msra.mxu0 0.0
    %4284 = vmatprep.subr.mxu0 0.0
    %4285 = vmatpush1.msra.mxu0 0.0
    %4286 = vmatprep.subr.mxu0 0.0
    %4287 = vmatpush1.msra.mxu0 0.0
    %4288 = vmatprep.subr.mxu0 0.0
    %4289 = vmatpush1.msra.mxu0 0.0
    %4290 = vmatprep.subr.mxu0 0.0
    %4291 = vmatpush1.msra.mxu0 0.0
    %4292 = vmatprep.subr.mxu0 0.0
    %4293 = vmatpush1.msra.mxu0 0.0
    %4294 = vmatprep.subr.mxu0 0.0
    %4295 = vmatpush1.msra.mxu0 0.0
    %4296 = vmatprep.subr.mxu0 0.0
    %4297 = vmatpush1.msra.mxu0 0.0
    %4298 = vmatprep.subr.mxu0 0.0
    %4299 = vmatpush1.msra.mxu0 0.0
    %4300 = vmatprep.subr.mxu0 0.0
    %4301 = vmatpush1.msra.mxu0 0.0
    %4302 = vmatprep.subr.mxu0 0.0
    %4303 = vmatpush1.msra.mxu0 0.0
    %4304 = vmatprep.subr.mxu0 0.0
    %4305 = vmatpush1.msra.mxu0 0.0
    %4306 = vmatprep.mubr.f32.mxu0 0.0
    %4307 = vmatmul.mubr.f32.gmra.mrb[0].mxu0 %v4240
    %v4308 = vpop.f32.mrb[0].mxu0
    %v4309 = vadd.f32 0.0, %v4308
    %v4310 = vpop.f32.mrb[0].mxu0
    %4311 = vdwg.mxu0
    %v4312 = vadd.f32 %v4234, %v4309
    %s4313 = scalar_lea.vmem %s7, 120
    %v4314 = vld [vmem:[%s4313] sm:$0xff]
    %v4315 = vld [vmem:[%s4313 + $0x8] sm:$0xff]
    %v4316 = vld [vmem:[%s4313 + $0x10] sm:$0xff]
    %v4317 = vrot.slane %v3924, 2
    %v4318 = vsel %vm3934, %v4317, 0
    %4320 = vmatprep.subr.mxu0 0.0
    %4321 = vmatpush1.msra.mxu0 %v4314
    %4322 = vmatprep.subr.mxu0 0.0
    %4323 = vmatpush1.msra.mxu0 %v4315
    %4324 = vmatprep.subr.mxu0 0.0
    %4325 = vmatpush1.msra.mxu0 %v4316
    %4326 = vmatprep.subr.mxu0 0.0
    %4327 = vmatpush1.msra.mxu0 0.0
    %4328 = vmatprep.subr.mxu0 0.0
    %4329 = vmatpush1.msra.mxu0 0.0
    %4330 = vmatprep.subr.mxu0 0.0
    %4331 = vmatpush1.msra.mxu0 0.0
    %4332 = vmatprep.subr.mxu0 0.0
    %4333 = vmatpush1.msra.mxu0 0.0
    %4334 = vmatprep.subr.mxu0 0.0
    %4335 = vmatpush1.msra.mxu0 0.0
    %4336 = vmatprep.subr.mxu0 0.0
    %4337 = vmatpush1.msra.mxu0 0.0
    %4338 = vmatprep.subr.mxu0 0.0
    %4339 = vmatpush1.msra.mxu0 0.0
    %4340 = vmatprep.subr.mxu0 0.0
    %4341 = vmatpush1.msra.mxu0 0.0
    %4342 = vmatprep.subr.mxu0 0.0
    %4343 = vmatpush1.msra.mxu0 0.0
    %4344 = vmatprep.subr.mxu0 0.0
    %4345 = vmatpush1.msra.mxu0 0.0
    %4346 = vmatprep.subr.mxu0 0.0
    %4347 = vmatpush1.msra.mxu0 0.0
    %4348 = vmatprep.subr.mxu0 0.0
    %4349 = vmatpush1.msra.mxu0 0.0
    %4350 = vmatprep.subr.mxu0 0.0
    %4351 = vmatpush1.msra.mxu0 0.0
    %4352 = vmatprep.subr.mxu0 0.0
    %4353 = vmatpush1.msra.mxu0 0.0
    %4354 = vmatprep.subr.mxu0 0.0
    %4355 = vmatpush1.msra.mxu0 0.0
    %4356 = vmatprep.subr.mxu0 0.0
    %4357 = vmatpush1.msra.mxu0 0.0
    %4358 = vmatprep.subr.mxu0 0.0
    %4359 = vmatpush1.msra.mxu0 0.0
    %4360 = vmatprep.subr.mxu0 0.0
    %4361 = vmatpush1.msra.mxu0 0.0
    %4362 = vmatprep.subr.mxu0 0.0
    %4363 = vmatpush1.msra.mxu0 0.0
    %4364 = vmatprep.subr.mxu0 0.0
    %4365 = vmatpush1.msra.mxu0 0.0
    %4366 = vmatprep.subr.mxu0 0.0
    %4367 = vmatpush1.msra.mxu0 0.0
    %4368 = vmatprep.subr.mxu0 0.0
    %4369 = vmatpush1.msra.mxu0 0.0
    %4370 = vmatprep.subr.mxu0 0.0
    %4371 = vmatpush1.msra.mxu0 0.0
    %4372 = vmatprep.subr.mxu0 0.0
    %4373 = vmatpush1.msra.mxu0 0.0
    %4374 = vmatprep.subr.mxu0 0.0
    %4375 = vmatpush1.msra.mxu0 0.0
    %4376 = vmatprep.subr.mxu0 0.0
    %4377 = vmatpush1.msra.mxu0 0.0
    %4378 = vmatprep.subr.mxu0 0.0
    %4379 = vmatpush1.msra.mxu0 0.0
    %4380 = vmatprep.subr.mxu0 0.0
    %4381 = vmatpush1.msra.mxu0 0.0
    %4382 = vmatprep.subr.mxu0 0.0
    %4383 = vmatpush1.msra.mxu0 0.0
    %4384 = vmatprep.mubr.f32.mxu0 0.0
    %4385 = vmatmul.mubr.f32.gmra.mrb[0].mxu0 %v4318
    %v4386 = vpop.f32.mrb[0].mxu0
    %v4387 = vadd.f32 0.0, %v4386
    %v4388 = vpop.f32.mrb[0].mxu0
    %4389 = vdwg.mxu0
    %v4390 = vadd.f32 %v4312, %v4387
    %s4391 = scalar_lea.vmem %s7, 144
    %v4392 = vld [vmem:[%s4391] sm:$0xff]
    %v4393 = vld [vmem:[%s4391 + $0x8] sm:$0xff]
    %v4394 = vld [vmem:[%s4391 + $0x10] sm:$0xff]
    %v4395 = vrot.slane %v3924, 4
    %v4396 = vsel %vm3934, %v4395, 0
    %4398 = vmatprep.subr.mxu0 0.0
    %4399 = vmatpush1.msra.mxu0 %v4392
    %4400 = vmatprep.subr.mxu0 0.0
    %4401 = vmatpush1.msra.mxu0 %v4393
    %4402 = vmatprep.subr.mxu0 0.0
    %4403 = vmatpush1.msra.mxu0 %v4394
    %4404 = vmatprep.subr.mxu0 0.0
    %4405 = vmatpush1.msra.mxu0 0.0
    %4406 = vmatprep.subr.mxu0 0.0
    %4407 = vmatpush1.msra.mxu0 0.0
    %4408 = vmatprep.subr.mxu0 0.0
    %4409 = vmatpush1.msra.mxu0 0.0
    %4410 = vmatprep.subr.mxu0 0.0
    %4411 = vmatpush1.msra.mxu0 0.0
    %4412 = vmatprep.subr.mxu0 0.0
    %4413 = vmatpush1.msra.mxu0 0.0
    %4414 = vmatprep.subr.mxu0 0.0
    %4415 = vmatpush1.msra.mxu0 0.0
    %4416 = vmatprep.subr.mxu0 0.0
    %4417 = vmatpush1.msra.mxu0 0.0
    %4418 = vmatprep.subr.mxu0 0.0
    %4419 = vmatpush1.msra.mxu0 0.0
    %4420 = vmatprep.subr.mxu0 0.0
    %4421 = vmatpush1.msra.mxu0 0.0
    %4422 = vmatprep.subr.mxu0 0.0
    %4423 = vmatpush1.msra.mxu0 0.0
    %4424 = vmatprep.subr.mxu0 0.0
    %4425 = vmatpush1.msra.mxu0 0.0
    %4426 = vmatprep.subr.mxu0 0.0
    %4427 = vmatpush1.msra.mxu0 0.0
    %4428 = vmatprep.subr.mxu0 0.0
    %4429 = vmatpush1.msra.mxu0 0.0
    %4430 = vmatprep.subr.mxu0 0.0
    %4431 = vmatpush1.msra.mxu0 0.0
    %4432 = vmatprep.subr.mxu0 0.0
    %4433 = vmatpush1.msra.mxu0 0.0
    %4434 = vmatprep.subr.mxu0 0.0
    %4435 = vmatpush1.msra.mxu0 0.0
    %4436 = vmatprep.subr.mxu0 0.0
    %4437 = vmatpush1.msra.mxu0 0.0
    %4438 = vmatprep.subr.mxu0 0.0
    %4439 = vmatpush1.msra.mxu0 0.0
    %4440 = vmatprep.subr.mxu0 0.0
    %4441 = vmatpush1.msra.mxu0 0.0
    %4442 = vmatprep.subr.mxu0 0.0
    %4443 = vmatpush1.msra.mxu0 0.0
    %4444 = vmatprep.subr.mxu0 0.0
    %4445 = vmatpush1.msra.mxu0 0.0
    %4446 = vmatprep.subr.mxu0 0.0
    %4447 = vmatpush1.msra.mxu0 0.0
    %4448 = vmatprep.subr.mxu0 0.0
    %4449 = vmatpush1.msra.mxu0 0.0
    %4450 = vmatprep.subr.mxu0 0.0
    %4451 = vmatpush1.msra.mxu0 0.0
    %4452 = vmatprep.subr.mxu0 0.0
    %4453 = vmatpush1.msra.mxu0 0.0
    %4454 = vmatprep.subr.mxu0 0.0
    %4455 = vmatpush1.msra.mxu0 0.0
    %4456 = vmatprep.subr.mxu0 0.0
    %4457 = vmatpush1.msra.mxu0 0.0
    %4458 = vmatprep.subr.mxu0 0.0
    %4459 = vmatpush1.msra.mxu0 0.0
    %4460 = vmatprep.subr.mxu0 0.0
    %4461 = vmatpush1.msra.mxu0 0.0
    %4462 = vmatprep.mubr.f32.mxu0 0.0
    %4463 = vmatmul.mubr.f32.gmra.mrb[0].mxu0 %v4396
    %v4464 = vpop.f32.mrb[0].mxu0
    %v4465 = vadd.f32 0.0, %v4464
    %v4466 = vpop.f32.mrb[0].mxu0
    %4467 = vdwg.mxu0
    %v4468 = vadd.f32 %v4390, %v4465
    %s4469 = scalar_lea.vmem %s7, 168
    %v4470 = vld [vmem:[%s4469] sm:$0xff]
    %v4471 = vld [vmem:[%s4469 + $0x8] sm:$0xff]
    %v4472 = vld [vmem:[%s4469 + $0x10] sm:$0xff]
    %v4473 = vrot.slane %v3924, 6
    %v4474 = vsel %vm3934, %v4473, 0
    %4476 = vmatprep.subr.mxu0 0.0
    %4477 = vmatpush1.msra.mxu0 %v4470
    %4478 = vmatprep.subr.mxu0 0.0
    %4479 = vmatpush1.msra.mxu0 %v4471
    %4480 = vmatprep.subr.mxu0 0.0
    %4481 = vmatpush1.msra.mxu0 %v4472
    %4482 = vmatprep.subr.mxu0 0.0
    %4483 = vmatpush1.msra.mxu0 0.0
    %4484 = vmatprep.subr.mxu0 0.0
    %4485 = vmatpush1.msra.mxu0 0.0
    %4486 = vmatprep.subr.mxu0 0.0
    %4487 = vmatpush1.msra.mxu0 0.0
    %4488 = vmatprep.subr.mxu0 0.0
    %4489 = vmatpush1.msra.mxu0 0.0
    %4490 = vmatprep.subr.mxu0 0.0
    %4491 = vmatpush1.msra.mxu0 0.0
    %4492 = vmatprep.subr.mxu0 0.0
    %4493 = vmatpush1.msra.mxu0 0.0
    %4494 = vmatprep.subr.mxu0 0.0
    %4495 = vmatpush1.msra.mxu0 0.0
    %4496 = vmatprep.subr.mxu0 0.0
    %4497 = vmatpush1.msra.mxu0 0.0
    %4498 = vmatprep.subr.mxu0 0.0
    %4499 = vmatpush1.msra.mxu0 0.0
    %4500 = vmatprep.subr.mxu0 0.0
    %4501 = vmatpush1.msra.mxu0 0.0
    %4502 = vmatprep.subr.mxu0 0.0
    %4503 = vmatpush1.msra.mxu0 0.0
    %4504 = vmatprep.subr.mxu0 0.0
    %4505 = vmatpush1.msra.mxu0 0.0
    %4506 = vmatprep.subr.mxu0 0.0
    %4507 = vmatpush1.msra.mxu0 0.0
    %4508 = vmatprep.subr.mxu0 0.0
    %4509 = vmatpush1.msra.mxu0 0.0
    %4510 = vmatprep.subr.mxu0 0.0
    %4511 = vmatpush1.msra.mxu0 0.0
    %4512 = vmatprep.subr.mxu0 0.0
    %4513 = vmatpush1.msra.mxu0 0.0
    %4514 = vmatprep.subr.mxu0 0.0
    %4515 = vmatpush1.msra.mxu0 0.0
    %4516 = vmatprep.subr.mxu0 0.0
    %4517 = vmatpush1.msra.mxu0 0.0
    %4518 = vmatprep.subr.mxu0 0.0
    %4519 = vmatpush1.msra.mxu0 0.0
    %4520 = vmatprep.subr.mxu0 0.0
    %4521 = vmatpush1.msra.mxu0 0.0
    %4522 = vmatprep.subr.mxu0 0.0
    %4523 = vmatpush1.msra.mxu0 0.0
    %4524 = vmatprep.subr.mxu0 0.0
    %4525 = vmatpush1.msra.mxu0 0.0
    %4526 = vmatprep.subr.mxu0 0.0
    %4527 = vmatpush1.msra.mxu0 0.0
    %4528 = vmatprep.subr.mxu0 0.0
    %4529 = vmatpush1.msra.mxu0 0.0
    %4530 = vmatprep.subr.mxu0 0.0
    %4531 = vmatpush1.msra.mxu0 0.0
    %4532 = vmatprep.subr.mxu0 0.0
    %4533 = vmatpush1.msra.mxu0 0.0
    %4534 = vmatprep.subr.mxu0 0.0
    %4535 = vmatpush1.msra.mxu0 0.0
    %4536 = vmatprep.subr.mxu0 0.0
    %4537 = vmatpush1.msra.mxu0 0.0
    %4538 = vmatprep.subr.mxu0 0.0
    %4539 = vmatpush1.msra.mxu0 0.0
    %4540 = vmatprep.mubr.f32.mxu0 0.0
    %4541 = vmatmul.mubr.f32.gmra.mrb[0].mxu0 %v4474
    %v4542 = vpop.f32.mrb[0].mxu0
    %v4543 = vadd.f32 0.0, %v4542
    %v4544 = vpop.f32.mrb[0].mxu0
    %4545 = vdwg.mxu0
    %v4546 = vadd.f32 %v4468, %v4543
    %v4547 = vld [vmem:[%s8] sm:$0x1]
    %v4549 = vlaneseq
    %v4550 = vshrl.u32 %v4549, 7
    %v4551 = vsub.s32 0, %v4550
    %v4552 = vrot.slane %v4547, %v4551
    %v4554 = vadd.f32 %v4546, %v4552
    %v4555 = vld [vmem:[%s9] sm:$0xff]
    %v4556 = vld [vmem:[%s9 + $0x8] sm:$0xff]
    %v4557 = vld [vmem:[%s10] sm:$0x1]
    %v4559 = vlaneseq
    %v4560 = vshrl.u32 %v4559, 7
    %v4561 = vsub.s32 0, %v4560
    %v4562 = vrot.slane %v4557, %v4561
    %vm4564 = vcmask 130048
    %v4566 = vsel %vm4564, %v4554, 0
    %4568 = vmatprep.subr.mxu0 0.0
    %4569 = vmatpush1.msra.mxu0 %v4555
    %4570 = vmatprep.subr.mxu0 0.0
    %4571 = vmatpush1.msra.mxu0 %v4556
    %4572 = vmatprep.subr.mxu0 0.0
    %4573 = vmatpush1.msra.mxu0 0.0
    %4574 = vmatprep.subr.mxu0 0.0
    %4575 = vmatpush1.msra.mxu0 0.0
    %4576 = vmatprep.subr.mxu0 0.0
    %4577 = vmatpush1.msra.mxu0 0.0
    %4578 = vmatprep.subr.mxu0 0.0
    %4579 = vmatpush1.msra.mxu0 0.0
    %4580 = vmatprep.subr.mxu0 0.0
    %4581 = vmatpush1.msra.mxu0 0.0
    %4582 = vmatprep.subr.mxu0 0.0
    %4583 = vmatpush1.msra.mxu0 0.0
    %4584 = vmatprep.subr.mxu0 0.0
    %4585 = vmatpush1.msra.mxu0 0.0
    %4586 = vmatprep.subr.mxu0 0.0
    %4587 = vmatpush1.msra.mxu0 0.0
    %4588 = vmatprep.subr.mxu0 0.0
    %4589 = vmatpush1.msra.mxu0 0.0
    %4590 = vmatprep.subr.mxu0 0.0
    %4591 = vmatpush1.msra.mxu0 0.0
    %4592 = vmatprep.subr.mxu0 0.0
    %4593 = vmatpush1.msra.mxu0 0.0
    %4594 = vmatprep.subr.mxu0 0.0
    %4595 = vmatpush1.msra.mxu0 0.0
    %4596 = vmatprep.subr.mxu0 0.0
    %4597 = vmatpush1.msra.mxu0 0.0
    %4598 = vmatprep.subr.mxu0 0.0
    %4599 = vmatpush1.msra.mxu0 0.0
    %4600 = vmatprep.subr.mxu0 0.0
    %4601 = vmatpush1.msra.mxu0 0.0
    %4602 = vmatprep.subr.mxu0 0.0
    %4603 = vmatpush1.msra.mxu0 0.0
    %4604 = vmatprep.subr.mxu0 0.0
    %4605 = vmatpush1.msra.mxu0 0.0
    %4606 = vmatprep.subr.mxu0 0.0
    %4607 = vmatpush1.msra.mxu0 0.0
    %4608 = vmatprep.subr.mxu0 0.0
    %4609 = vmatpush1.msra.mxu0 0.0
    %4610 = vmatprep.subr.mxu0 0.0
    %4611 = vmatpush1.msra.mxu0 0.0
    %4612 = vmatprep.subr.mxu0 0.0
    %4613 = vmatpush1.msra.mxu0 0.0
    %4614 = vmatprep.subr.mxu0 0.0
    %4615 = vmatpush1.msra.mxu0 0.0
    %4616 = vmatprep.subr.mxu0 0.0
    %4617 = vmatpush1.msra.mxu0 0.0
    %4618 = vmatprep.subr.mxu0 0.0
    %4619 = vmatpush1.msra.mxu0 0.0
    %4620 = vmatprep.subr.mxu0 0.0
    %4621 = vmatpush1.msra.mxu0 0.0
    %4622 = vmatprep.subr.mxu0 0.0
    %4623 = vmatpush1.msra.mxu0 0.0
    %4624 = vmatprep.subr.mxu0 0.0
    %4625 = vmatpush1.msra.mxu0 0.0
    %4626 = vmatprep.subr.mxu0 0.0
    %4627 = vmatpush1.msra.mxu0 0.0
    %4628 = vmatprep.subr.mxu0 0.0
    %4629 = vmatpush1.msra.mxu0 0.0
    %4630 = vmatprep.subr.mxu0 0.0
    %4631 = vmatpush1.msra.mxu0 0.0
    %4632 = vmatprep.mubr.f32.mxu0 0.0
    %4633 = vmatmul.mubr.f32.gmra.mrb[0].mxu0 %v4566
    %v4634 = vpop.f32.mrb[0].mxu0
    %v4635 = vadd.f32 %v4562, %v4634
    %v4636 = vpop.f32.mrb[0].mxu0
    %4637 = vdwg.mxu0
    %vm4638 = vcmask 33792
    %4639 = vst.msk [vmem:[#allocation2] sm:$0x3] %vm4638, %v4635
    // Predicated region
    $region46: #{ecnn_forward.1} parent=1 // pred_check
      _
    $region47: #{ecnn_forward.1} parent=1 // pred_check_branch
      %4641 = sbr.rel (0) target = $region49
    $region48: #{ecnn_forward.1} parent=1 // pred_region
      %s4643 = ssub.s32 32, 32
      %4644 = vsyncadd [#allocation3], %s4643
      %s4646 = sshll.u32 [#allocation2], 4
      %s4647 = int_to_ptr.vmem [resolvable:$true] %s4646
      %4649 = dma.vmem_to_hbm [thread:$0]  %s4647, 32, %s11, [#allocation3]
    $region49: #{ecnn_forward.1} parent=1 // pred_fallthru
      _
    // Predicated region
    $region50: #{ecnn_forward.1} parent=1 // pred_check
      _
    $region51: #{ecnn_forward.1} parent=1 // pred_check_branch
      %4651 = sbr.rel (0) target = $region53
    $region52: #{ecnn_forward.1} parent=1 // pred_region
      %4652 = dma.done [#allocation3], 32
    $region53: #{ecnn_forward.1} parent=1 // pred_fallthru
      _
    %4653 = vsyncpa [#allocation3], 1

</llo_original>
